<compile_context>
chip_gen: v7x
topology: tpu7x:2x2x1
jax: 0.10.0
libtpu: 0.0.40
codegen_flags: <defaults>
</compile_context>

<pallas_src>
import math

import jax
import jax.numpy as jnp
from jax.experimental import pallas as pl
from jax.experimental.pallas import tpu as pltpu

# ---------------- small synthetic GPT-2 config ----------------
N_LAYER = 2
N_HEAD = 4
N_EMBD = 32
HEAD_DIM = N_EMBD // N_HEAD
VOCAB = 64
N_POS = 64
LN_EPS = 1e-5          # GPT-2 layer_norm_epsilon
BATCH = 2
SEQ = 8
PAST = 4               # length of past_key_values


def _ln_f32(x, gamma, beta):
    """LayerNorm in f32 on a (rows, D) slab; gamma/beta are (1, D)."""
    mu = jnp.mean(x, axis=-1, keepdims=True)
    xc = x - mu
    var = jnp.mean(xc * xc, axis=-1, keepdims=True)
    return xc * jax.lax.rsqrt(var + LN_EPS) * gamma + beta


# ---------------- fused transformer-block kernel ----------------
def _block_kernel(h_ref, ln1_g_ref, ln1_b_ref, attn_w_ref, attn_b_ref,
                  proj_w_ref, proj_b_ref, ln2_g_ref, ln2_b_ref,
                  fc_w_ref, fc_b_ref, mp_w_ref, mp_b_ref,
                  pk_ref, pv_ref, bias_ref,
                  h_out_ref, k_new_ref, v_new_ref,
                  attn_acc_ref):
    B, H, past_len, hd = pk_ref.shape
    BS, D = h_ref.shape
    S = BS // B
    scale = 1.0 / math.sqrt(hd)

    x = h_ref[...].astype(jnp.float32)                          # (BS, D)

    # ---- LN1 + fused QKV projection (one MXU pass for the whole batch) ----
    hn = _ln_f32(x, ln1_g_ref[...], ln1_b_ref[...])
    qkv = jnp.dot(hn, attn_w_ref[...],
                  preferred_element_type=jnp.float32) + attn_b_ref[...]

    proj_w = proj_w_ref[...].astype(jnp.float32)                # (D, D)

    # ---- multi-head attention: all (batch, head) pairs in this grid step ----
    for b in range(B):
        r0 = b * S
        bias_b = bias_ref[b].astype(jnp.float32)                # (S, T)
        bias_past = bias_b[:, :past_len]
        bias_new = bias_b[:, past_len:]
        acc_b = jnp.zeros((S, D), jnp.float32)
        for hh in range(H):
            c0 = hh * hd
            q = qkv[r0:r0 + S, c0:c0 + hd]                          # (S, hd)
            k_new = qkv[r0:r0 + S, D + c0:D + c0 + hd]              # (S, hd)
            v_new = qkv[r0:r0 + S, 2 * D + c0:2 * D + c0 + hd]      # (S, hd)

            # new K/V for this layer's `present` (HF layout assembled outside)
            k_new_ref[b, hh] = k_new.astype(k_new_ref.dtype)
            v_new_ref[b, hh] = v_new.astype(v_new_ref.dtype)

            pk = pk_ref[b, hh].astype(jnp.float32)                  # (past, hd)
            pv = pv_ref[b, hh].astype(jnp.float32)

            # scores split over (past | new) keys — avoids an in-kernel concat,
            # mathematically identical to softmax over the concatenated keys.
            s_past = jax.lax.dot_general(
                q, pk, (((1,), (1,)), ((), ())),
                preferred_element_type=jnp.float32) * scale + bias_past
            s_new = jax.lax.dot_general(
                q, k_new, (((1,), (1,)), ((), ())),
                preferred_element_type=jnp.float32) * scale + bias_new

            m = jnp.maximum(jnp.max(s_past, axis=-1, keepdims=True),
                            jnp.max(s_new, axis=-1, keepdims=True))
            p_past = jnp.exp(s_past - m)
            p_new = jnp.exp(s_new - m)
            denom = (jnp.sum(p_past, axis=-1, keepdims=True)
                     + jnp.sum(p_new, axis=-1, keepdims=True))
            inv = pl.reciprocal(denom, approx=True)                 # EUP slot
            o = (jnp.dot(p_past, pv, preferred_element_type=jnp.float32)
                 + jnp.dot(p_new, v_new, preferred_element_type=jnp.float32)) * inv

            # fold head-merge + c_proj: attn @ W_proj == sum_h o_h @ W_proj[h*hd:(h+1)*hd]
            acc_b = acc_b + jnp.dot(o, proj_w[c0:c0 + hd, :],
                                    preferred_element_type=jnp.float32)
        attn_acc_ref[r0:r0 + S, :] = acc_b

    h1 = x + attn_acc_ref[...] + proj_b_ref[...]                 # residual

    # ---- LN2 + MLP with gelu_new epilogue + residual ----
    hn2 = _ln_f32(h1, ln2_g_ref[...], ln2_b_ref[...])
    ff = jnp.dot(hn2, fc_w_ref[...],
                 preferred_element_type=jnp.float32) + fc_b_ref[...]
    c = math.sqrt(2.0 / math.pi)
    ff = 0.5 * ff * (1.0 + jnp.tanh(c * (ff + 0.044715 * ff * ff * ff)))
    ff = jnp.dot(ff, mp_w_ref[...],
                 preferred_element_type=jnp.float32) + mp_b_ref[...]
    h_out_ref[...] = (h1 + ff).astype(h_out_ref.dtype)


def gpt2_block(h, blk, past_k, past_v, bias):
    B, S, D = h.shape
    H, hd = N_HEAD, HEAD_DIM
    past_len = past_k.shape[2]
    T = past_len + S
    h2 = h.reshape(B * S, D)

    def full(shape):
        return pl.BlockSpec(shape, lambda i, shape=shape: (0,) * len(shape))

    h_out, k_new, v_new = pl.pallas_call(
        _block_kernel,
        out_shape=(jax.ShapeDtypeStruct((B * S, D), jnp.float32),
                   jax.ShapeDtypeStruct((B, H, S, hd), jnp.float32),
                   jax.ShapeDtypeStruct((B, H, S, hd), jnp.float32)),
        grid=(1,),
        in_specs=[full((B * S, D)),
                  full((1, D)), full((1, D)),
                  full((D, 3 * D)), full((1, 3 * D)),
                  full((D, D)), full((1, D)),
                  full((1, D)), full((1, D)),
                  full((D, 4 * D)), full((1, 4 * D)),
                  full((4 * D, D)), full((1, D)),
                  full((B, H, past_len, hd)),
                  full((B, H, past_len, hd)),
                  full((B, S, T))],
        out_specs=(full((B * S, D)),
                   full((B, H, S, hd)),
                   full((B, H, S, hd))),
        scratch_shapes=[pltpu.VMEM((B * S, D), jnp.float32)],
        compiler_params=pltpu.CompilerParams(
            dimension_semantics=("arbitrary",)),
    )(h2,
      blk["ln1_g"].reshape(1, D), blk["ln1_b"].reshape(1, D),
      blk["c_attn_w"], blk["c_attn_b"].reshape(1, 3 * D),
      blk["c_proj_w"], blk["c_proj_b"].reshape(1, D),
      blk["ln2_g"].reshape(1, D), blk["ln2_b"].reshape(1, D),
      blk["c_fc_w"], blk["c_fc_b"].reshape(1, 4 * D),
      blk["mlp_proj_w"], blk["mlp_proj_b"].reshape(1, D),
      past_k, past_v, bias)

    # presents in HF cache layout [B, H, past+S, hd] (use_cache=True)
    pres_k = jnp.concatenate([past_k, k_new], axis=2)
    pres_v = jnp.concatenate([past_v, v_new], axis=2)
    return h_out.reshape(B, S, D), pres_k, pres_v


# ---------------- fused ln_f + tied lm_head kernel ----------------
def _lm_head_kernel(h_ref, g_ref, b_ref, wte_ref, logits_ref, hfin_ref):
    x = h_ref[...].astype(jnp.float32)
    hn = _ln_f32(x, g_ref[...], b_ref[...])
    hfin_ref[...] = hn.astype(hfin_ref.dtype)
    # tied lm_head (no bias): hn @ wte.T without materializing the transpose
    logits_ref[...] = jax.lax.dot_general(
        hn, wte_ref[...], (((1,), (1,)), ((), ())),
        preferred_element_type=jnp.float32).astype(logits_ref.dtype)


def lm_head(h, gamma, beta, wte):
    B, S, D = h.shape
    V = wte.shape[0]
    h2 = h.reshape(B * S, D)

    def full(shape):
        return pl.BlockSpec(shape, lambda i, shape=shape: (0,) * len(shape))

    logits, hfin = pl.pallas_call(
        _lm_head_kernel,
        out_shape=(jax.ShapeDtypeStruct((B * S, V), jnp.float32),
                   jax.ShapeDtypeStruct((B * S, D), jnp.float32)),
        grid=(1,),
        in_specs=[full((B * S, D)), full((1, D)), full((1, D)), full((V, D))],
        out_specs=(full((B * S, V)), full((B * S, D))),
        compiler_params=pltpu.CompilerParams(
            dimension_semantics=("arbitrary",)),
    )(h2, gamma.reshape(1, D), beta.reshape(1, D), wte)
    return logits.reshape(B, S, V), hfin.reshape(B, S, D)


# ---------------- deterministic parameter init ----------------
def init_params(key):
    ks = jax.random.split(key, 2 + N_LAYER)
    init = lambda k, shape: (0.02 * jax.random.normal(k, shape)).astype(jnp.float32)
    params = {
        "wte": init(ks[0], (VOCAB, N_EMBD)),
        "wpe": init(ks[1], (N_POS, N_EMBD)),
        "ln_f_g": jnp.ones((N_EMBD,), jnp.float32),
        "ln_f_b": jnp.zeros((N_EMBD,), jnp.float32),
        "blocks": [],
    }
    for l in range(N_LAYER):
        bk = jax.random.split(ks[2 + l], 4)
        params["blocks"].append({
            "ln1_g": jnp.ones((N_EMBD,), jnp.float32),
            "ln1_b": jnp.zeros((N_EMBD,), jnp.float32),
            "c_attn_w": init(bk[0], (N_EMBD, 3 * N_EMBD)),
            "c_attn_b": jnp.zeros((3 * N_EMBD,), jnp.float32),
            "c_proj_w": init(bk[1], (N_EMBD, N_EMBD)),
            "c_proj_b": jnp.zeros((N_EMBD,), jnp.float32),
            "ln2_g": jnp.ones((N_EMBD,), jnp.float32),
            "ln2_b": jnp.zeros((N_EMBD,), jnp.float32),
            "c_fc_w": init(bk[2], (N_EMBD, 4 * N_EMBD)),
            "c_fc_b": jnp.zeros((4 * N_EMBD,), jnp.float32),
            "mlp_proj_w": init(bk[3], (4 * N_EMBD, N_EMBD)),
            "mlp_proj_b": jnp.zeros((N_EMBD,), jnp.float32),
        })
    return params


# ---------------- GPT2LMHeadModel forward (return_dict=False) ----------------
def gpt2_forward(params, input_ids, position_ids, attention_mask, past_key_values):
    B, S = input_ids.shape
    past_len = past_key_values[0][0].shape[2]
    T = past_len + S

    # embeddings (gather kept as JAX glue); dropout is identity in eval mode
    h = (jnp.take(params["wte"], input_ids, axis=0)
         + jnp.take(params["wpe"], position_ids, axis=0))

    # additive attention bias (B, S, T): causal (offset by past) AND padding
    # mask combined with jnp.where (no -inf + -inf addition).
    mask_value = jnp.finfo(jnp.float32).min
    causal = jnp.arange(T)[None, :] <= (jnp.arange(S)[:, None] + past_len)   # (S, T)
    keep = causal[None, :, :] & (attention_mask[:, None, :] > 0)             # (B, S, T)
    bias = jnp.where(keep, 0.0, mask_value).astype(jnp.float32)

    presents = []
    all_hidden_states = []
    for l, blk in enumerate(params["blocks"]):
        all_hidden_states.append(h)                      # hidden state entering block l
        pk, pv = past_key_values[l]
        h, pres_k, pres_v = gpt2_block(h, blk, pk, pv, bias)
        presents.append((pres_k, pres_v))                # use_cache=True

    logits, h_final = lm_head(h, params["ln_f_g"], params["ln_f_b"], params["wte"])
    all_hidden_states.append(h_final)                    # output_hidden_states=True

    # return_dict=False: (lm_logits, presents, all_hidden_states)
    return logits, tuple(presents), tuple(all_hidden_states)


if __name__ == "__main__":
    key = jax.random.PRNGKey(0)
    kp, ki, kpast = jax.random.split(key, 3)
    params = init_params(kp)

    my_input_ids = jax.random.randint(ki, (BATCH, SEQ), 0, VOCAB, dtype=jnp.int32)
    position_ids = jnp.broadcast_to(
        jnp.arange(PAST, PAST + SEQ, dtype=jnp.int32)[None, :], (BATCH, SEQ))
    attention_mask = jnp.ones((BATCH, PAST + SEQ), dtype=jnp.int32)
    pk = jax.random.split(kpast, 2 * N_LAYER)
    past_key_values = tuple(
        ((0.02 * jax.random.normal(pk[2 * l], (BATCH, N_HEAD, PAST, HEAD_DIM))).astype(jnp.float32),
         (0.02 * jax.random.normal(pk[2 * l + 1], (BATCH, N_HEAD, PAST, HEAD_DIM))).astype(jnp.float32))
        for l in range(N_LAYER))

    fwd = jax.jit(gpt2_forward)
    logits, presents, hidden_states = fwd(
        params, my_input_ids, position_ids, attention_mask, past_key_values)

    jax.block_until_ready(logits)
    for kv in presents:
        jax.block_until_ready(kv[0])
        jax.block_until_ready(kv[1])
    for hs in hidden_states:
        jax.block_until_ready(hs)

    assert logits.shape == (BATCH, SEQ, VOCAB)
    assert presents[0][0].shape == (BATCH, N_HEAD, PAST + SEQ, HEAD_DIM)
    assert len(hidden_states) == N_LAYER + 1
    # TODO(synk): pretrained gpt2-large checkpoint + tokenizer have no Pallas
    # equivalent; weights are deterministic synthetic init at a reduced config.
    print("KERNEL_OK")
</pallas_src>

<mosaic_0001>
module attributes {stable_mosaic.version = 11 : i64} {
  func.func @_lm_head_kernel(%arg0: i32, %arg1: memref<16x32xf32, #tpu.memory_space<vmem>>, %arg2: memref<1x32xf32, #tpu.memory_space<vmem>>, %arg3: memref<1x32xf32, #tpu.memory_space<vmem>>, %arg4: memref<64x32xf32, #tpu.memory_space<vmem>>, %arg5: memref<16x64xf32, #tpu.memory_space<vmem>>, %arg6: memref<16x32xf32, #tpu.memory_space<vmem>>) attributes {dimension_semantics = [#tpu.dimension_semantics<arbitrary>], iteration_bounds = array<i64: 1>, scalar_prefetch = 0 : i64, scratch_operands = 0 : i64, tpu.core_type = #tpu.core_type<tc>, window_params = [{pipeline_mode = #tpu.pipeline_mode<synchronous>, transform_indices = @transform_0, window_bounds = array<i64: 16, 32>}, {pipeline_mode = #tpu.pipeline_mode<synchronous>, transform_indices = @transform_1, window_bounds = array<i64: 1, 32>}, {pipeline_mode = #tpu.pipeline_mode<synchronous>, transform_indices = @transform_2, window_bounds = array<i64: 1, 32>}, {pipeline_mode = #tpu.pipeline_mode<synchronous>, transform_indices = @transform_3, window_bounds = array<i64: 64, 32>}, {pipeline_mode = #tpu.pipeline_mode<synchronous>, transform_indices = @transform_4, window_bounds = array<i64: 16, 64>}, {pipeline_mode = #tpu.pipeline_mode<synchronous>, transform_indices = @transform_5, window_bounds = array<i64: 16, 32>}]} {
    %c0 = arith.constant 0 : index
    %c0_0 = arith.constant 0 : index
    %0 = vector.load %arg1[%c0, %c0_0] : memref<16x32xf32, #tpu.memory_space<vmem>>, vector<16x32xf32>
    %c0_1 = arith.constant 0 : index
    %c0_2 = arith.constant 0 : index
    %1 = vector.load %arg2[%c0_1, %c0_2] : memref<1x32xf32, #tpu.memory_space<vmem>>, vector<1x32xf32>
    %c0_3 = arith.constant 0 : index
    %c0_4 = arith.constant 0 : index
    %2 = vector.load %arg3[%c0_3, %c0_4] : memref<1x32xf32, #tpu.memory_space<vmem>>, vector<1x32xf32>
    %cst = arith.constant dense<0.000000e+00> : vector<16xf32>
    %3 = vector.multi_reduction <add>, %0, %cst [1] : vector<16x32xf32> to vector<16xf32>
    %4 = vector.shape_cast %3 : vector<16xf32> to vector<16x1xf32>
    %cst_5 = arith.constant 3.200000e+01 : f32
    %5 = vector.broadcast %cst_5 : f32 to vector<16x1xf32>
    %6 = arith.divf %4, %5 : vector<16x1xf32>
    %7 = vector.broadcast %6 : vector<16x1xf32> to vector<16x32xf32>
    %8 = arith.subf %0, %7 : vector<16x32xf32>
    %9 = arith.mulf %8, %8 : vector<16x32xf32>
    %cst_6 = arith.constant dense<0.000000e+00> : vector<16xf32>
    %10 = vector.multi_reduction <add>, %9, %cst_6 [1] : vector<16x32xf32> to vector<16xf32>
    %11 = vector.shape_cast %10 : vector<16xf32> to vector<16x1xf32>
    %cst_7 = arith.constant 3.200000e+01 : f32
    %12 = vector.broadcast %cst_7 : f32 to vector<16x1xf32>
    %13 = arith.divf %11, %12 : vector<16x1xf32>
    %cst_8 = arith.constant 9.99999974E-6 : f32
    %14 = vector.broadcast %cst_8 : f32 to vector<16x1xf32>
    %15 = arith.addf %13, %14 : vector<16x1xf32>
    %16 = math.rsqrt %15 : vector<16x1xf32>
    %17 = vector.broadcast %16 : vector<16x1xf32> to vector<16x32xf32>
    %18 = arith.mulf %8, %17 : vector<16x32xf32>
    %19 = vector.broadcast %1 : vector<1x32xf32> to vector<16x32xf32>
    %20 = arith.mulf %18, %19 : vector<16x32xf32>
    %21 = vector.broadcast %2 : vector<1x32xf32> to vector<16x32xf32>
    %22 = arith.addf %20, %21 : vector<16x32xf32>
    %c0_9 = arith.constant 0 : index
    %c0_10 = arith.constant 0 : index
    %23 = vector.load %arg6[%c0_9, %c0_10] : memref<16x32xf32, #tpu.memory_space<vmem>>, vector<16x32xf32>
    tpu.vector_store %arg6[%c0_9, %c0_10], %22 {strides = array<i32>} : memref<16x32xf32, #tpu.memory_space<vmem>>, vector<16x32xf32>,
    %c0_11 = arith.constant 0 : index
    %c0_12 = arith.constant 0 : index
    %24 = vector.load %arg4[%c0_11, %c0_12] : memref<64x32xf32, #tpu.memory_space<vmem>>, vector<64x32xf32>
    %cst_13 = arith.constant dense<0.000000e+00> : vector<16x64xf32>
    %25 = tpu.matmul %22, %24, %cst_13 {dimension_numbers = #tpu.dot_dimension_numbers<[1], [1], [0], [0], [0, 0, 1, 0], [], []>} : vector<16x32xf32>, vector<64x32xf32>, vector<16x64xf32> -> vector<16x64xf32>
    %c0_14 = arith.constant 0 : index
    %c0_15 = arith.constant 0 : index
    %26 = vector.load %arg5[%c0_14, %c0_15] : memref<16x64xf32, #tpu.memory_space<vmem>>, vector<16x64xf32>
    tpu.vector_store %arg5[%c0_14, %c0_15], %25 {strides = array<i32>} : memref<16x64xf32, #tpu.memory_space<vmem>>, vector<16x64xf32>,
    return
  }
  func.func @transform_0(%arg0: i32) -> (i32, i32) {
    %c0_i32 = arith.constant 0 : i32
    %c0_i32_0 = arith.constant 0 : i32
    %c0_i32_1 = arith.constant 0 : i32
    return %c0_i32, %c0_i32_0 : i32, i32
  }
  func.func @transform_1(%arg0: i32) -> (i32, i32) {
    %c0_i32 = arith.constant 0 : i32
    %c0_i32_0 = arith.constant 0 : i32
    %c0_i32_1 = arith.constant 0 : i32
    return %c0_i32, %c0_i32_0 : i32, i32
  }
  func.func @transform_2(%arg0: i32) -> (i32, i32) {
    %c0_i32 = arith.constant 0 : i32
    %c0_i32_0 = arith.constant 0 : i32
    %c0_i32_1 = arith.constant 0 : i32
    return %c0_i32, %c0_i32_0 : i32, i32
  }
  func.func @transform_3(%arg0: i32) -> (i32, i32) {
    %c0_i32 = arith.constant 0 : i32
    %c0_i32_0 = arith.constant 0 : i32
    %c0_i32_1 = arith.constant 0 : i32
    return %c0_i32, %c0_i32_0 : i32, i32
  }
  func.func @transform_4(%arg0: i32) -> (i32, i32) {
    %c0_i32 = arith.constant 0 : i32
    %c0_i32_0 = arith.constant 0 : i32
    %c0_i32_1 = arith.constant 0 : i32
    return %c0_i32, %c0_i32_0 : i32, i32
  }
  func.func @transform_5(%arg0: i32) -> (i32, i32) {
    %c0_i32 = arith.constant 0 : i32
    %c0_i32_0 = arith.constant 0 : i32
    %c0_i32_1 = arith.constant 0 : i32
    return %c0_i32, %c0_i32_0 : i32, i32
  }
}

module attributes {stable_mosaic.version = 11 : i64} {
  func.func @_block_kernel(%arg0: i32, %arg1: memref<16x32xf32, #tpu.memory_space<vmem>>, %arg2: memref<1x32xf32, #tpu.memory_space<vmem>>, %arg3: memref<1x32xf32, #tpu.memory_space<vmem>>, %arg4: memref<32x96xf32, #tpu.memory_space<vmem>>, %arg5: memref<1x96xf32, #tpu.memory_space<vmem>>, %arg6: memref<32x32xf32, #tpu.memory_space<vmem>>, %arg7: memref<1x32xf32, #tpu.memory_space<vmem>>, %arg8: memref<1x32xf32, #tpu.memory_space<vmem>>, %arg9: memref<1x32xf32, #tpu.memory_space<vmem>>, %arg10: memref<32x128xf32, #tpu.memory_space<vmem>>, %arg11: memref<1x128xf32, #tpu.memory_space<vmem>>, %arg12: memref<128x32xf32, #tpu.memory_space<vmem>>, %arg13: memref<1x32xf32, #tpu.memory_space<vmem>>, %arg14: memref<2x4x4x8xf32, #tpu.memory_space<vmem>>, %arg15: memref<2x4x4x8xf32, #tpu.memory_space<vmem>>, %arg16: memref<2x8x12xf32, #tpu.memory_space<vmem>>, %arg17: memref<16x32xf32, #tpu.memory_space<vmem>>, %arg18: memref<2x4x8x8xf32, #tpu.memory_space<vmem>>, %arg19: memref<2x4x8x8xf32, #tpu.memory_space<vmem>>, %arg20: memref<16x32xf32, #tpu.memory_space<vmem>>) attributes {dimension_semantics = [#tpu.dimension_semantics<arbitrary>], iteration_bounds = array<i64: 1>, scalar_prefetch = 0 : i64, scratch_operands = 1 : i64, tpu.core_type = #tpu.core_type<tc>, window_params = [{pipeline_mode = #tpu.pipeline_mode<synchronous>, transform_indices = @transform_0, window_bounds = array<i64: 16, 32>}, {pipeline_mode = #tpu.pipeline_mode<synchronous>, transform_indices = @transform_1, window_bounds = array<i64: 1, 32>}, {pipeline_mode = #tpu.pipeline_mode<synchronous>, transform_indices = @transform_2, window_bounds = array<i64: 1, 32>}, {pipeline_mode = #tpu.pipeline_mode<synchronous>, transform_indices = @transform_3, window_bounds = array<i64: 32, 96>}, {pipeline_mode = #tpu.pipeline_mode<synchronous>, transform_indices = @transform_4, window_bounds = array<i64: 1, 96>}, {pipeline_mode = #tpu.pipeline_mode<synchronous>, transform_indices = @transform_5, window_bounds = array<i64: 32, 32>}, {pipeline_mode = #tpu.pipeline_mode<synchronous>, transform_indices = @transform_6, window_bounds = array<i64: 1, 32>}, {pipeline_mode = #tpu.pipeline_mode<synchronous>, transform_indices = @transform_7, window_bounds = array<i64: 1, 32>}, {pipeline_mode = #tpu.pipeline_mode<synchronous>, transform_indices = @transform_8, window_bounds = array<i64: 1, 32>}, {pipeline_mode = #tpu.pipeline_mode<synchronous>, transform_indices = @transform_9, window_bounds = array<i64: 32, 128>}, {pipeline_mode = #tpu.pipeline_mode<synchronous>, transform_indices = @transform_10, window_bounds = array<i64: 1, 128>}, {pipeline_mode = #tpu.pipeline_mode<synchronous>, transform_indices = @transform_11, window_bounds = array<i64: 128, 32>}, {pipeline_mode = #tpu.pipeline_mode<synchronous>, transform_indices = @transform_12, window_bounds = array<i64: 1, 32>}, {pipeline_mode = #tpu.pipeline_mode<synchronous>, transform_indices = @transform_13, window_bounds = array<i64: 2, 4, 4, 8>}, {pipeline_mode = #tpu.pipeline_mode<synchronous>, transform_indices = @transform_14, window_bounds = array<i64: 2, 4, 4, 8>}, {pipeline_mode = #tpu.pipeline_mode<synchronous>, transform_indices = @transform_15, window_bounds = array<i64: 2, 8, 12>}, {pipeline_mode = #tpu.pipeline_mode<synchronous>, transform_indices = @transform_16, window_bounds = array<i64: 16, 32>}, {pipeline_mode = #tpu.pipeline_mode<synchronous>, transform_indices = @transform_17, window_bounds = array<i64: 2, 4, 8, 8>}, {pipeline_mode = #tpu.pipeline_mode<synchronous>, transform_indices = @transform_18, window_bounds = array<i64: 2, 4, 8, 8>}]} {
    %c0 = arith.constant 0 : index
    %c0_0 = arith.constant 0 : index
    %0 = vector.load %arg1[%c0, %c0_0] : memref<16x32xf32, #tpu.memory_space<vmem>>, vector<16x32xf32>
    %c0_1 = arith.constant 0 : index
    %c0_2 = arith.constant 0 : index
    %1 = vector.load %arg2[%c0_1, %c0_2] : memref<1x32xf32, #tpu.memory_space<vmem>>, vector<1x32xf32>
    %c0_3 = arith.constant 0 : index
    %c0_4 = arith.constant 0 : index
    %2 = vector.load %arg3[%c0_3, %c0_4] : memref<1x32xf32, #tpu.memory_space<vmem>>, vector<1x32xf32>
    %cst = arith.constant dense<0.000000e+00> : vector<16xf32>
    %3 = vector.multi_reduction <add>, %0, %cst [1] : vector<16x32xf32> to vector<16xf32>
    %4 = vector.shape_cast %3 : vector<16xf32> to vector<16x1xf32>
    %cst_5 = arith.constant 3.200000e+01 : f32
    %5 = vector.broadcast %cst_5 : f32 to vector<16x1xf32>
    %6 = arith.divf %4, %5 : vector<16x1xf32>
    %7 = vector.broadcast %6 : vector<16x1xf32> to vector<16x32xf32>
    %8 = arith.subf %0, %7 : vector<16x32xf32>
    %9 = arith.mulf %8, %8 : vector<16x32xf32>
    %cst_6 = arith.constant dense<0.000000e+00> : vector<16xf32>
    %10 = vector.multi_reduction <add>, %9, %cst_6 [1] : vector<16x32xf32> to vector<16xf32>
    %11 = vector.shape_cast %10 : vector<16xf32> to vector<16x1xf32>
    %cst_7 = arith.constant 3.200000e+01 : f32
    %12 = vector.broadcast %cst_7 : f32 to vector<16x1xf32>
    %13 = arith.divf %11, %12 : vector<16x1xf32>
    %cst_8 = arith.constant 9.99999974E-6 : f32
    %14 = vector.broadcast %cst_8 : f32 to vector<16x1xf32>
    %15 = arith.addf %13, %14 : vector<16x1xf32>
    %16 = math.rsqrt %15 : vector<16x1xf32>
    %17 = vector.broadcast %16 : vector<16x1xf32> to vector<16x32xf32>
    %18 = arith.mulf %8, %17 : vector<16x32xf32>
    %19 = vector.broadcast %1 : vector<1x32xf32> to vector<16x32xf32>
    %20 = arith.mulf %18, %19 : vector<16x32xf32>
    %21 = vector.broadcast %2 : vector<1x32xf32> to vector<16x32xf32>
    %22 = arith.addf %20, %21 : vector<16x32xf32>
    %c0_9 = arith.constant 0 : index
    %c0_10 = arith.constant 0 : index
    %23 = vector.load %arg4[%c0_9, %c0_10] : memref<32x96xf32, #tpu.memory_space<vmem>>, vector<32x96xf32>
    %cst_11 = arith.constant dense<0.000000e+00> : vector<16x96xf32>
    %24 = tpu.matmul %22, %23, %cst_11 {dimension_numbers = #tpu.dot_dimension_numbers<[1], [0], [0], [1], [0, 0, 1, 1], [], []>} : vector<16x32xf32>, vector<32x96xf32>, vector<16x96xf32> -> vector<16x96xf32>
    %c0_12 = arith.constant 0 : index
    %c0_13 = arith.constant 0 : index
    %25 = vector.load %arg5[%c0_12, %c0_13] : memref<1x96xf32, #tpu.memory_space<vmem>>, vector<1x96xf32>
    %26 = vector.broadcast %25 : vector<1x96xf32> to vector<16x96xf32>
    %27 = arith.addf %24, %26 : vector<16x96xf32>
    %c0_14 = arith.constant 0 : index
    %c0_15 = arith.constant 0 : index
    %28 = vector.load %arg6[%c0_14, %c0_15] : memref<32x32xf32, #tpu.memory_space<vmem>>, vector<32x32xf32>
    %c0_16 = arith.constant 0 : index
    %c0_17 = arith.constant 0 : index
    %c0_18 = arith.constant 0 : index
    %29 = vector.load %arg16[%c0_16, %c0_17, %c0_18] : memref<2x8x12xf32, #tpu.memory_space<vmem>>, vector<1x8x12xf32>
    %30 = vector.shape_cast %29 : vector<1x8x12xf32> to vector<8x12xf32>
    %31 = vector.extract_strided_slice %30 {offsets = [0, 0], sizes = [8, 4], strides = [1, 1]} : vector<8x12xf32> to vector<8x4xf32>
    %32 = vector.extract_strided_slice %30 {offsets = [0, 4], sizes = [8, 8], strides = [1, 1]} : vector<8x12xf32> to vector<8x8xf32>
    %cst_19 = arith.constant 0.000000e+00 : f32
    %33 = vector.broadcast %cst_19 : f32 to vector<8x32xf32>
    %34 = vector.extract_strided_slice %27 {offsets = [0, 0], sizes = [8, 8], strides = [1, 1]} : vector<16x96xf32> to vector<8x8xf32>
    %35 = vector.extract_strided_slice %27 {offsets = [0, 32], sizes = [8, 8], strides = [1, 1]} : vector<16x96xf32> to vector<8x8xf32>
    %36 = vector.extract_strided_slice %27 {offsets = [0, 64], sizes = [8, 8], strides = [1, 1]} : vector<16x96xf32> to vector<8x8xf32>
    %c0_20 = arith.constant 0 : index
    %c0_21 = arith.constant 0 : index
    %c0_22 = arith.constant 0 : index
    %c0_23 = arith.constant 0 : index
    %37 = vector.load %arg18[%c0_20, %c0_21, %c0_22, %c0_23] : memref<2x4x8x8xf32, #tpu.memory_space<vmem>>, vector<1x1x8x8xf32>
    %38 = vector.shape_cast %37 : vector<1x1x8x8xf32> to vector<8x8xf32>
    %39 = vector.shape_cast %35 : vector<8x8xf32> to vector<1x1x8x8xf32>
    tpu.vector_store %arg18[%c0_20, %c0_21, %c0_22, %c0_23], %39 {strides = array<i32>} : memref<2x4x8x8xf32, #tpu.memory_space<vmem>>, vector<1x1x8x8xf32>,
    %c0_24 = arith.constant 0 : index
    %c0_25 = arith.constant 0 : index
    %c0_26 = arith.constant 0 : index
    %c0_27 = arith.constant 0 : index
    %40 = vector.load %arg19[%c0_24, %c0_25, %c0_26, %c0_27] : memref<2x4x8x8xf32, #tpu.memory_space<vmem>>, vector<1x1x8x8xf32>
    %41 = vector.shape_cast %40 : vector<1x1x8x8xf32> to vector<8x8xf32>
    %42 = vector.shape_cast %36 : vector<8x8xf32> to vector<1x1x8x8xf32>
    tpu.vector_store %arg19[%c0_24, %c0_25, %c0_26, %c0_27], %42 {strides = array<i32>} : memref<2x4x8x8xf32, #tpu.memory_space<vmem>>, vector<1x1x8x8xf32>,
    %c0_28 = arith.constant 0 : index
    %c0_29 = arith.constant 0 : index
    %c0_30 = arith.constant 0 : index
    %c0_31 = arith.constant 0 : index
    %43 = vector.load %arg14[%c0_28, %c0_29, %c0_30, %c0_31] : memref<2x4x4x8xf32, #tpu.memory_space<vmem>>, vector<1x1x4x8xf32>
    %44 = vector.shape_cast %43 : vector<1x1x4x8xf32> to vector<4x8xf32>
    %c0_32 = arith.constant 0 : index
    %c0_33 = arith.constant 0 : index
    %c0_34 = arith.constant 0 : index
    %c0_35 = arith.constant 0 : index
    %45 = vector.load %arg15[%c0_32, %c0_33, %c0_34, %c0_35] : memref<2x4x4x8xf32, #tpu.memory_space<vmem>>, vector<1x1x4x8xf32>
    %46 = vector.shape_cast %45 : vector<1x1x4x8xf32> to vector<4x8xf32>
    %cst_36 = arith.constant dense<0.000000e+00> : vector<8x4xf32>
    %47 = tpu.matmul %34, %44, %cst_36 {dimension_numbers = #tpu.dot_dimension_numbers<[1], [1], [0], [0], [0, 0, 1, 0], [], []>} : vector<8x8xf32>, vector<4x8xf32>, vector<8x4xf32> -> vector<8x4xf32>
    %cst_37 = arith.constant 0.353553385 : f32
    %48 = vector.broadcast %cst_37 : f32 to vector<8x4xf32>
    %49 = arith.mulf %47, %48 : vector<8x4xf32>
    %50 = arith.addf %49, %31 : vector<8x4xf32>
    %cst_38 = arith.constant dense<0.000000e+00> : vector<8x8xf32>
    %51 = tpu.matmul %34, %35, %cst_38 {dimension_numbers = #tpu.dot_dimension_numbers<[1], [1], [0], [0], [0, 0, 1, 0], [], []>} : vector<8x8xf32>, vector<8x8xf32>, vector<8x8xf32> -> vector<8x8xf32>
    %cst_39 = arith.constant 0.353553385 : f32
    %52 = vector.broadcast %cst_39 : f32 to vector<8x8xf32>
    %53 = arith.mulf %51, %52 : vector<8x8xf32>
    %54 = arith.addf %53, %32 : vector<8x8xf32>
    %cst_40 = arith.constant dense<0xFF800000> : vector<8xf32>
    %55 = vector.multi_reduction <maximumf>, %50, %cst_40 [1] : vector<8x4xf32> to vector<8xf32>
    %56 = vector.shape_cast %55 : vector<8xf32> to vector<8x1xf32>
    %cst_41 = arith.constant dense<0xFF800000> : vector<8xf32>
    %57 = vector.multi_reduction <maximumf>, %54, %cst_41 [1] : vector<8x8xf32> to vector<8xf32>
    %58 = vector.shape_cast %57 : vector<8xf32> to vector<8x1xf32>
    %59 = arith.maximumf %56, %58 : vector<8x1xf32>
    %60 = vector.broadcast %59 : vector<8x1xf32> to vector<8x4xf32>
    %61 = arith.subf %50, %60 : vector<8x4xf32>
    %62 = math.exp %61 : vector<8x4xf32>
    %63 = vector.broadcast %59 : vector<8x1xf32> to vector<8x8xf32>
    %64 = arith.subf %54, %63 : vector<8x8xf32>
    %65 = math.exp %64 : vector<8x8xf32>
    %cst_42 = arith.constant dense<0.000000e+00> : vector<8xf32>
    %66 = vector.multi_reduction <add>, %62, %cst_42 [1] : vector<8x4xf32> to vector<8xf32>
    %67 = vector.shape_cast %66 : vector<8xf32> to vector<8x1xf32>
    %cst_43 = arith.constant dense<0.000000e+00> : vector<8xf32>
    %68 = vector.multi_reduction <add>, %65, %cst_43 [1] : vector<8x8xf32> to vector<8xf32>
    %69 = vector.shape_cast %68 : vector<8xf32> to vector<8x1xf32>
    %70 = arith.addf %67, %69 : vector<8x1xf32>
    %71 = tpu.reciprocal %70 {approx = true} : vector<8x1xf32> -> vector<8x1xf32>
    %cst_44 = arith.constant dense<0.000000e+00> : vector<8x8xf32>
    %72 = tpu.matmul %62, %46, %cst_44 {dimension_numbers = #tpu.dot_dimension_numbers<[1], [0], [0], [1], [0, 0, 1, 1], [], []>} : vector<8x4xf32>, vector<4x8xf32>, vector<8x8xf32> -> vector<8x8xf32>
    %cst_45 = arith.constant dense<0.000000e+00> : vector<8x8xf32>
    %73 = tpu.matmul %65, %36, %cst_45 {dimension_numbers = #tpu.dot_dimension_numbers<[1], [0], [0], [1], [0, 0, 1, 1], [], []>} : vector<8x8xf32>, vector<8x8xf32>, vector<8x8xf32> -> vector<8x8xf32>
    %74 = arith.addf %72, %73 : vector<8x8xf32>
    %75 = vector.broadcast %71 : vector<8x1xf32> to vector<8x8xf32>
    %76 = arith.mulf %74, %75 : vector<8x8xf32>
    %77 = vector.extract_strided_slice %28 {offsets = [0, 0], sizes = [8, 32], strides = [1, 1]} : vector<32x32xf32> to vector<8x32xf32>
    %cst_46 = arith.constant dense<0.000000e+00> : vector<8x32xf32>
    %78 = tpu.matmul %76, %77, %cst_46 {dimension_numbers = #tpu.dot_dimension_numbers<[1], [0], [0], [1], [0, 0, 1, 1], [], []>} : vector<8x8xf32>, vector<8x32xf32>, vector<8x32xf32> -> vector<8x32xf32>
    %79 = arith.addf %33, %78 : vector<8x32xf32>
    %80 = vector.extract_strided_slice %27 {offsets = [0, 8], sizes = [8, 8], strides = [1, 1]} : vector<16x96xf32> to vector<8x8xf32>
    %81 = vector.extract_strided_slice %27 {offsets = [0, 40], sizes = [8, 8], strides = [1, 1]} : vector<16x96xf32> to vector<8x8xf32>
    %82 = vector.extract_strided_slice %27 {offsets = [0, 72], sizes = [8, 8], strides = [1, 1]} : vector<16x96xf32> to vector<8x8xf32>
    %c0_47 = arith.constant 0 : index
    %c1 = arith.constant 1 : index
    %c0_48 = arith.constant 0 : index
    %c0_49 = arith.constant 0 : index
    %83 = vector.load %arg18[%c0_47, %c1, %c0_48, %c0_49] : memref<2x4x8x8xf32, #tpu.memory_space<vmem>>, vector<1x1x8x8xf32>
    %84 = vector.shape_cast %83 : vector<1x1x8x8xf32> to vector<8x8xf32>
    %85 = vector.shape_cast %81 : vector<8x8xf32> to vector<1x1x8x8xf32>
    tpu.vector_store %arg18[%c0_47, %c1, %c0_48, %c0_49], %85 {strides = array<i32>} : memref<2x4x8x8xf32, #tpu.memory_space<vmem>>, vector<1x1x8x8xf32>,
    %c0_50 = arith.constant 0 : index
    %c1_51 = arith.constant 1 : index
    %c0_52 = arith.constant 0 : index
    %c0_53 = arith.constant 0 : index
    %86 = vector.load %arg19[%c0_50, %c1_51, %c0_52, %c0_53] : memref<2x4x8x8xf32, #tpu.memory_space<vmem>>, vector<1x1x8x8xf32>
    %87 = vector.shape_cast %86 : vector<1x1x8x8xf32> to vector<8x8xf32>
    %88 = vector.shape_cast %82 : vector<8x8xf32> to vector<1x1x8x8xf32>
    tpu.vector_store %arg19[%c0_50, %c1_51, %c0_52, %c0_53], %88 {strides = array<i32>} : memref<2x4x8x8xf32, #tpu.memory_space<vmem>>, vector<1x1x8x8xf32>,
    %c0_54 = arith.constant 0 : index
    %c1_55 = arith.constant 1 : index
    %c0_56 = arith.constant 0 : index
    %c0_57 = arith.constant 0 : index
    %89 = vector.load %arg14[%c0_54, %c1_55, %c0_56, %c0_57] : memref<2x4x4x8xf32, #tpu.memory_space<vmem>>, vector<1x1x4x8xf32>
    %90 = vector.shape_cast %89 : vector<1x1x4x8xf32> to vector<4x8xf32>
    %c0_58 = arith.constant 0 : index
    %c1_59 = arith.constant 1 : index
    %c0_60 = arith.constant 0 : index
    %c0_61 = arith.constant 0 : index
    %91 = vector.load %arg15[%c0_58, %c1_59, %c0_60, %c0_61] : memref<2x4x4x8xf32, #tpu.memory_space<vmem>>, vector<1x1x4x8xf32>
    %92 = vector.shape_cast %91 : vector<1x1x4x8xf32> to vector<4x8xf32>
    %cst_62 = arith.constant dense<0.000000e+00> : vector<8x4xf32>
    %93 = tpu.matmul %80, %90, %cst_62 {dimension_numbers = #tpu.dot_dimension_numbers<[1], [1], [0], [0], [0, 0, 1, 0], [], []>} : vector<8x8xf32>, vector<4x8xf32>, vector<8x4xf32> -> vector<8x4xf32>
    %cst_63 = arith.constant 0.353553385 : f32
    %94 = vector.broadcast %cst_63 : f32 to vector<8x4xf32>
    %95 = arith.mulf %93, %94 : vector<8x4xf32>
    %96 = arith.addf %95, %31 : vector<8x4xf32>
    %cst_64 = arith.constant dense<0.000000e+00> : vector<8x8xf32>
    %97 = tpu.matmul %80, %81, %cst_64 {dimension_numbers = #tpu.dot_dimension_numbers<[1], [1], [0], [0], [0, 0, 1, 0], [], []>} : vector<8x8xf32>, vector<8x8xf32>, vector<8x8xf32> -> vector<8x8xf32>
    %cst_65 = arith.constant 0.353553385 : f32
    %98 = vector.broadcast %cst_65 : f32 to vector<8x8xf32>
    %99 = arith.mulf %97, %98 : vector<8x8xf32>
    %100 = arith.addf %99, %32 : vector<8x8xf32>
    %cst_66 = arith.constant dense<0xFF800000> : vector<8xf32>
    %101 = vector.multi_reduction <maximumf>, %96, %cst_66 [1] : vector<8x4xf32> to vector<8xf32>
    %102 = vector.shape_cast %101 : vector<8xf32> to vector<8x1xf32>
    %cst_67 = arith.constant dense<0xFF800000> : vector<8xf32>
    %103 = vector.multi_reduction <maximumf>, %100, %cst_67 [1] : vector<8x8xf32> to vector<8xf32>
    %104 = vector.shape_cast %103 : vector<8xf32> to vector<8x1xf32>
    %105 = arith.maximumf %102, %104 : vector<8x1xf32>
    %106 = vector.broadcast %105 : vector<8x1xf32> to vector<8x4xf32>
    %107 = arith.subf %96, %106 : vector<8x4xf32>
    %108 = math.exp %107 : vector<8x4xf32>
    %109 = vector.broadcast %105 : vector<8x1xf32> to vector<8x8xf32>
    %110 = arith.subf %100, %109 : vector<8x8xf32>
    %111 = math.exp %110 : vector<8x8xf32>
    %cst_68 = arith.constant dense<0.000000e+00> : vector<8xf32>
    %112 = vector.multi_reduction <add>, %108, %cst_68 [1] : vector<8x4xf32> to vector<8xf32>
    %113 = vector.shape_cast %112 : vector<8xf32> to vector<8x1xf32>
    %cst_69 = arith.constant dense<0.000000e+00> : vector<8xf32>
    %114 = vector.multi_reduction <add>, %111, %cst_69 [1] : vector<8x8xf32> to vector<8xf32>
    %115 = vector.shape_cast %114 : vector<8xf32> to vector<8x1xf32>
    %116 = arith.addf %113, %115 : vector<8x1xf32>
    %117 = tpu.reciprocal %116 {approx = true} : vector<8x1xf32> -> vector<8x1xf32>
    %cst_70 = arith.constant dense<0.000000e+00> : vector<8x8xf32>
    %118 = tpu.matmul %108, %92, %cst_70 {dimension_numbers = #tpu.dot_dimension_numbers<[1], [0], [0], [1], [0, 0, 1, 1], [], []>} : vector<8x4xf32>, vector<4x8xf32>, vector<8x8xf32> -> vector<8x8xf32>
    %cst_71 = arith.constant dense<0.000000e+00> : vector<8x8xf32>
    %119 = tpu.matmul %111, %82, %cst_71 {dimension_numbers = #tpu.dot_dimension_numbers<[1], [0], [0], [1], [0, 0, 1, 1], [], []>} : vector<8x8xf32>, vector<8x8xf32>, vector<8x8xf32> -> vector<8x8xf32>
    %120 = arith.addf %118, %119 : vector<8x8xf32>
    %121 = vector.broadcast %117 : vector<8x1xf32> to vector<8x8xf32>
    %122 = arith.mulf %120, %121 : vector<8x8xf32>
    %123 = vector.extract_strided_slice %28 {offsets = [8, 0], sizes = [8, 32], strides = [1, 1]} : vector<32x32xf32> to vector<8x32xf32>
    %cst_72 = arith.constant dense<0.000000e+00> : vector<8x32xf32>
    %124 = tpu.matmul %122, %123, %cst_72 {dimension_numbers = #tpu.dot_dimension_numbers<[1], [0], [0], [1], [0, 0, 1, 1], [], []>} : vector<8x8xf32>, vector<8x32xf32>, vector<8x32xf32> -> vector<8x32xf32>
    %125 = arith.addf %79, %124 : vector<8x32xf32>
    %126 = vector.extract_strided_slice %27 {offsets = [0, 16], sizes = [8, 8], strides = [1, 1]} : vector<16x96xf32> to vector<8x8xf32>
    %127 = vector.extract_strided_slice %27 {offsets = [0, 48], sizes = [8, 8], strides = [1, 1]} : vector<16x96xf32> to vector<8x8xf32>
    %128 = vector.extract_strided_slice %27 {offsets = [0, 80], sizes = [8, 8], strides = [1, 1]} : vector<16x96xf32> to vector<8x8xf32>
    %c0_73 = arith.constant 0 : index
    %c2 = arith.constant 2 : index
    %c0_74 = arith.constant 0 : index
    %c0_75 = arith.constant 0 : index
    %129 = vector.load %arg18[%c0_73, %c2, %c0_74, %c0_75] : memref<2x4x8x8xf32, #tpu.memory_space<vmem>>, vector<1x1x8x8xf32>
    %130 = vector.shape_cast %129 : vector<1x1x8x8xf32> to vector<8x8xf32>
    %131 = vector.shape_cast %127 : vector<8x8xf32> to vector<1x1x8x8xf32>
    tpu.vector_store %arg18[%c0_73, %c2, %c0_74, %c0_75], %131 {strides = array<i32>} : memref<2x4x8x8xf32, #tpu.memory_space<vmem>>, vector<1x1x8x8xf32>,
    %c0_76 = arith.constant 0 : index
    %c2_77 = arith.constant 2 : index
    %c0_78 = arith.constant 0 : index
    %c0_79 = arith.constant 0 : index
    %132 = vector.load %arg19[%c0_76, %c2_77, %c0_78, %c0_79] : memref<2x4x8x8xf32, #tpu.memory_space<vmem>>, vector<1x1x8x8xf32>
    %133 = vector.shape_cast %132 : vector<1x1x8x8xf32> to vector<8x8xf32>
    %134 = vector.shape_cast %128 : vector<8x8xf32> to vector<1x1x8x8xf32>
    tpu.vector_store %arg19[%c0_76, %c2_77, %c0_78, %c0_79], %134 {strides = array<i32>} : memref<2x4x8x8xf32, #tpu.memory_space<vmem>>, vector<1x1x8x8xf32>,
    %c0_80 = arith.constant 0 : index
    %c2_81 = arith.constant 2 : index
    %c0_82 = arith.constant 0 : index
    %c0_83 = arith.constant 0 : index
    %135 = vector.load %arg14[%c0_80, %c2_81, %c0_82, %c0_83] : memref<2x4x4x8xf32, #tpu.memory_space<vmem>>, vector<1x1x4x8xf32>
    %136 = vector.shape_cast %135 : vector<1x1x4x8xf32> to vector<4x8xf32>
    %c0_84 = arith.constant 0 : index
    %c2_85 = arith.constant 2 : index
    %c0_86 = arith.constant 0 : index
    %c0_87 = arith.constant 0 : index
    %137 = vector.load %arg15[%c0_84, %c2_85, %c0_86, %c0_87] : memref<2x4x4x8xf32, #tpu.memory_space<vmem>>, vector<1x1x4x8xf32>
    %138 = vector.shape_cast %137 : vector<1x1x4x8xf32> to vector<4x8xf32>
    %cst_88 = arith.constant dense<0.000000e+00> : vector<8x4xf32>
    %139 = tpu.matmul %126, %136, %cst_88 {dimension_numbers = #tpu.dot_dimension_numbers<[1], [1], [0], [0], [0, 0, 1, 0], [], []>} : vector<8x8xf32>, vector<4x8xf32>, vector<8x4xf32> -> vector<8x4xf32>
    %cst_89 = arith.constant 0.353553385 : f32
    %140 = vector.broadcast %cst_89 : f32 to vector<8x4xf32>
    %141 = arith.mulf %139, %140 : vector<8x4xf32>
    %142 = arith.addf %141, %31 : vector<8x4xf32>
    %cst_90 = arith.constant dense<0.000000e+00> : vector<8x8xf32>
    %143 = tpu.matmul %126, %127, %cst_90 {dimension_numbers = #tpu.dot_dimension_numbers<[1], [1], [0], [0], [0, 0, 1, 0], [], []>} : vector<8x8xf32>, vector<8x8xf32>, vector<8x8xf32> -> vector<8x8xf32>
    %cst_91 = arith.constant 0.353553385 : f32
    %144 = vector.broadcast %cst_91 : f32 to vector<8x8xf32>
    %145 = arith.mulf %143, %144 : vector<8x8xf32>
    %146 = arith.addf %145, %32 : vector<8x8xf32>
    %cst_92 = arith.constant dense<0xFF800000> : vector<8xf32>
    %147 = vector.multi_reduction <maximumf>, %142, %cst_92 [1] : vector<8x4xf32> to vector<8xf32>
    %148 = vector.shape_cast %147 : vector<8xf32> to vector<8x1xf32>
    %cst_93 = arith.constant dense<0xFF800000> : vector<8xf32>
    %149 = vector.multi_reduction <maximumf>, %146, %cst_93 [1] : vector<8x8xf32> to vector<8xf32>
    %150 = vector.shape_cast %149 : vector<8xf32> to vector<8x1xf32>
    %151 = arith.maximumf %148, %150 : vector<8x1xf32>
    %152 = vector.broadcast %151 : vector<8x1xf32> to vector<8x4xf32>
    %153 = arith.subf %142, %152 : vector<8x4xf32>
    %154 = math.exp %153 : vector<8x4xf32>
    %155 = vector.broadcast %151 : vector<8x1xf32> to vector<8x8xf32>
    %156 = arith.subf %146, %155 : vector<8x8xf32>
    %157 = math.exp %156 : vector<8x8xf32>
    %cst_94 = arith.constant dense<0.000000e+00> : vector<8xf32>
    %158 = vector.multi_reduction <add>, %154, %cst_94 [1] : vector<8x4xf32> to vector<8xf32>
    %159 = vector.shape_cast %158 : vector<8xf32> to vector<8x1xf32>
    %cst_95 = arith.constant dense<0.000000e+00> : vector<8xf32>
    %160 = vector.multi_reduction <add>, %157, %cst_95 [1] : vector<8x8xf32> to vector<8xf32>
    %161 = vector.shape_cast %160 : vector<8xf32> to vector<8x1xf32>
    %162 = arith.addf %159, %161 : vector<8x1xf32>
    %163 = tpu.reciprocal %162 {approx = true} : vector<8x1xf32> -> vector<8x1xf32>
    %cst_96 = arith.constant dense<0.000000e+00> : vector<8x8xf32>
    %164 = tpu.matmul %154, %138, %cst_96 {dimension_numbers = #tpu.dot_dimension_numbers<[1], [0], [0], [1], [0, 0, 1, 1], [], []>} : vector<8x4xf32>, vector<4x8xf32>, vector<8x8xf32> -> vector<8x8xf32>
    %cst_97 = arith.constant dense<0.000000e+00> : vector<8x8xf32>
    %165 = tpu.matmul %157, %128, %cst_97 {dimension_numbers = #tpu.dot_dimension_numbers<[1], [0], [0], [1], [0, 0, 1, 1], [], []>} : vector<8x8xf32>, vector<8x8xf32>, vector<8x8xf32> -> vector<8x8xf32>
    %166 = arith.addf %164, %165 : vector<8x8xf32>
    %167 = vector.broadcast %163 : vector<8x1xf32> to vector<8x8xf32>
    %168 = arith.mulf %166, %167 : vector<8x8xf32>
    %169 = vector.extract_strided_slice %28 {offsets = [16, 0], sizes = [8, 32], strides = [1, 1]} : vector<32x32xf32> to vector<8x32xf32>
    %cst_98 = arith.constant dense<0.000000e+00> : vector<8x32xf32>
    %170 = tpu.matmul %168, %169, %cst_98 {dimension_numbers = #tpu.dot_dimension_numbers<[1], [0], [0], [1], [0, 0, 1, 1], [], []>} : vector<8x8xf32>, vector<8x32xf32>, vector<8x32xf32> -> vector<8x32xf32>
    %171 = arith.addf %125, %170 : vector<8x32xf32>
    %172 = vector.extract_strided_slice %27 {offsets = [0, 24], sizes = [8, 8], strides = [1, 1]} : vector<16x96xf32> to vector<8x8xf32>
    %173 = vector.extract_strided_slice %27 {offsets = [0, 56], sizes = [8, 8], strides = [1, 1]} : vector<16x96xf32> to vector<8x8xf32>
    %174 = vector.extract_strided_slice %27 {offsets = [0, 88], sizes = [8, 8], strides = [1, 1]} : vector<16x96xf32> to vector<8x8xf32>
    %c0_99 = arith.constant 0 : index
    %c3 = arith.constant 3 : index
    %c0_100 = arith.constant 0 : index
    %c0_101 = arith.constant 0 : index
    %175 = vector.load %arg18[%c0_99, %c3, %c0_100, %c0_101] : memref<2x4x8x8xf32, #tpu.memory_space<vmem>>, vector<1x1x8x8xf32>
    %176 = vector.shape_cast %175 : vector<1x1x8x8xf32> to vector<8x8xf32>
    %177 = vector.shape_cast %173 : vector<8x8xf32> to vector<1x1x8x8xf32>
    tpu.vector_store %arg18[%c0_99, %c3, %c0_100, %c0_101], %177 {strides = array<i32>} : memref<2x4x8x8xf32, #tpu.memory_space<vmem>>, vector<1x1x8x8xf32>,
    %c0_102 = arith.constant 0 : index
    %c3_103 = arith.constant 3 : index
    %c0_104 = arith.constant 0 : index
    %c0_105 = arith.constant 0 : index
    %178 = vector.load %arg19[%c0_102, %c3_103, %c0_104, %c0_105] : memref<2x4x8x8xf32, #tpu.memory_space<vmem>>, vector<1x1x8x8xf32>
    %179 = vector.shape_cast %178 : vector<1x1x8x8xf32> to vector<8x8xf32>
    %180 = vector.shape_cast %174 : vector<8x8xf32> to vector<1x1x8x8xf32>
    tpu.vector_store %arg19[%c0_102, %c3_103, %c0_104, %c0_105], %180 {strides = array<i32>} : memref<2x4x8x8xf32, #tpu.memory_space<vmem>>, vector<1x1x8x8xf32>,
    %c0_106 = arith.constant 0 : index
    %c3_107 = arith.constant 3 : index
    %c0_108 = arith.constant 0 : index
    %c0_109 = arith.constant 0 : index
    %181 = vector.load %arg14[%c0_106, %c3_107, %c0_108, %c0_109] : memref<2x4x4x8xf32, #tpu.memory_space<vmem>>, vector<1x1x4x8xf32>
    %182 = vector.shape_cast %181 : vector<1x1x4x8xf32> to vector<4x8xf32>
    %c0_110 = arith.constant 0 : index
    %c3_111 = arith.constant 3 : index
    %c0_112 = arith.constant 0 : index
    %c0_113 = arith.constant 0 : index
    %183 = vector.load %arg15[%c0_110, %c3_111, %c0_112, %c0_113] : memref<2x4x4x8xf32, #tpu.memory_space<vmem>>, vector<1x1x4x8xf32>
    %184 = vector.shape_cast %183 : vector<1x1x4x8xf32> to vector<4x8xf32>
    %cst_114 = arith.constant dense<0.000000e+00> : vector<8x4xf32>
    %185 = tpu.matmul %172, %182, %cst_114 {dimension_numbers = #tpu.dot_dimension_numbers<[1], [1], [0], [0], [0, 0, 1, 0], [], []>} : vector<8x8xf32>, vector<4x8xf32>, vector<8x4xf32> -> vector<8x4xf32>
    %cst_115 = arith.constant 0.353553385 : f32
    %186 = vector.broadcast %cst_115 : f32 to vector<8x4xf32>
    %187 = arith.mulf %185, %186 : vector<8x4xf32>
    %188 = arith.addf %187, %31 : vector<8x4xf32>
    %cst_116 = arith.constant dense<0.000000e+00> : vector<8x8xf32>
    %189 = tpu.matmul %172, %173, %cst_116 {dimension_numbers = #tpu.dot_dimension_numbers<[1], [1], [0], [0], [0, 0, 1, 0], [], []>} : vector<8x8xf32>, vector<8x8xf32>, vector<8x8xf32> -> vector<8x8xf32>
    %cst_117 = arith.constant 0.353553385 : f32
    %190 = vector.broadcast %cst_117 : f32 to vector<8x8xf32>
    %191 = arith.mulf %189, %190 : vector<8x8xf32>
    %192 = arith.addf %191, %32 : vector<8x8xf32>
    %cst_118 = arith.constant dense<0xFF800000> : vector<8xf32>
    %193 = vector.multi_reduction <maximumf>, %188, %cst_118 [1] : vector<8x4xf32> to vector<8xf32>
    %194 = vector.shape_cast %193 : vector<8xf32> to vector<8x1xf32>
    %cst_119 = arith.constant dense<0xFF800000> : vector<8xf32>
    %195 = vector.multi_reduction <maximumf>, %192, %cst_119 [1] : vector<8x8xf32> to vector<8xf32>
    %196 = vector.shape_cast %195 : vector<8xf32> to vector<8x1xf32>
    %197 = arith.maximumf %194, %196 : vector<8x1xf32>
    %198 = vector.broadcast %197 : vector<8x1xf32> to vector<8x4xf32>
    %199 = arith.subf %188, %198 : vector<8x4xf32>
    %200 = math.exp %199 : vector<8x4xf32>
    %201 = vector.broadcast %197 : vector<8x1xf32> to vector<8x8xf32>
    %202 = arith.subf %192, %201 : vector<8x8xf32>
    %203 = math.exp %202 : vector<8x8xf32>
    %cst_120 = arith.constant dense<0.000000e+00> : vector<8xf32>
    %204 = vector.multi_reduction <add>, %200, %cst_120 [1] : vector<8x4xf32> to vector<8xf32>
    %205 = vector.shape_cast %204 : vector<8xf32> to vector<8x1xf32>
    %cst_121 = arith.constant dense<0.000000e+00> : vector<8xf32>
    %206 = vector.multi_reduction <add>, %203, %cst_121 [1] : vector<8x8xf32> to vector<8xf32>
    %207 = vector.shape_cast %206 : vector<8xf32> to vector<8x1xf32>
    %208 = arith.addf %205, %207 : vector<8x1xf32>
    %209 = tpu.reciprocal %208 {approx = true} : vector<8x1xf32> -> vector<8x1xf32>
    %cst_122 = arith.constant dense<0.000000e+00> : vector<8x8xf32>
    %210 = tpu.matmul %200, %184, %cst_122 {dimension_numbers = #tpu.dot_dimension_numbers<[1], [0], [0], [1], [0, 0, 1, 1], [], []>} : vector<8x4xf32>, vector<4x8xf32>, vector<8x8xf32> -> vector<8x8xf32>
    %cst_123 = arith.constant dense<0.000000e+00> : vector<8x8xf32>
    %211 = tpu.matmul %203, %174, %cst_123 {dimension_numbers = #tpu.dot_dimension_numbers<[1], [0], [0], [1], [0, 0, 1, 1], [], []>} : vector<8x8xf32>, vector<8x8xf32>, vector<8x8xf32> -> vector<8x8xf32>
    %212 = arith.addf %210, %211 : vector<8x8xf32>
    %213 = vector.broadcast %209 : vector<8x1xf32> to vector<8x8xf32>
    %214 = arith.mulf %212, %213 : vector<8x8xf32>
    %215 = vector.extract_strided_slice %28 {offsets = [24, 0], sizes = [8, 32], strides = [1, 1]} : vector<32x32xf32> to vector<8x32xf32>
    %cst_124 = arith.constant dense<0.000000e+00> : vector<8x32xf32>
    %216 = tpu.matmul %214, %215, %cst_124 {dimension_numbers = #tpu.dot_dimension_numbers<[1], [0], [0], [1], [0, 0, 1, 1], [], []>} : vector<8x8xf32>, vector<8x32xf32>, vector<8x32xf32> -> vector<8x32xf32>
    %217 = arith.addf %171, %216 : vector<8x32xf32>
    %c0_125 = arith.constant 0 : index
    %c0_126 = arith.constant 0 : index
    %218 = vector.load %arg20[%c0_125, %c0_126] : memref<16x32xf32, #tpu.memory_space<vmem>>, vector<8x32xf32>
    tpu.vector_store %arg20[%c0_125, %c0_126], %217 {strides = array<i32>} : memref<16x32xf32, #tpu.memory_space<vmem>>, vector<8x32xf32>,
    %c1_127 = arith.constant 1 : index
    %c0_128 = arith.constant 0 : index
    %c0_129 = arith.constant 0 : index
    %219 = vector.load %arg16[%c1_127, %c0_128, %c0_129] : memref<2x8x12xf32, #tpu.memory_space<vmem>>, vector<1x8x12xf32>
    %220 = vector.shape_cast %219 : vector<1x8x12xf32> to vector<8x12xf32>
    %221 = vector.extract_strided_slice %220 {offsets = [0, 0], sizes = [8, 4], strides = [1, 1]} : vector<8x12xf32> to vector<8x4xf32>
    %222 = vector.extract_strided_slice %220 {offsets = [0, 4], sizes = [8, 8], strides = [1, 1]} : vector<8x12xf32> to vector<8x8xf32>
    %cst_130 = arith.constant 0.000000e+00 : f32
    %223 = vector.broadcast %cst_130 : f32 to vector<8x32xf32>
    %224 = vector.extract_strided_slice %27 {offsets = [8, 0], sizes = [8, 8], strides = [1, 1]} : vector<16x96xf32> to vector<8x8xf32>
    %225 = vector.extract_strided_slice %27 {offsets = [8, 32], sizes = [8, 8], strides = [1, 1]} : vector<16x96xf32> to vector<8x8xf32>
    %226 = vector.extract_strided_slice %27 {offsets = [8, 64], sizes = [8, 8], strides = [1, 1]} : vector<16x96xf32> to vector<8x8xf32>
    %c1_131 = arith.constant 1 : index
    %c0_132 = arith.constant 0 : index
    %c0_133 = arith.constant 0 : index
    %c0_134 = arith.constant 0 : index
    %227 = vector.load %arg18[%c1_131, %c0_132, %c0_133, %c0_134] : memref<2x4x8x8xf32, #tpu.memory_space<vmem>>, vector<1x1x8x8xf32>
    %228 = vector.shape_cast %227 : vector<1x1x8x8xf32> to vector<8x8xf32>
    %229 = vector.shape_cast %225 : vector<8x8xf32> to vector<1x1x8x8xf32>
    tpu.vector_store %arg18[%c1_131, %c0_132, %c0_133, %c0_134], %229 {strides = array<i32>} : memref<2x4x8x8xf32, #tpu.memory_space<vmem>>, vector<1x1x8x8xf32>,
    %c1_135 = arith.constant 1 : index
    %c0_136 = arith.constant 0 : index
    %c0_137 = arith.constant 0 : index
    %c0_138 = arith.constant 0 : index
    %230 = vector.load %arg19[%c1_135, %c0_136, %c0_137, %c0_138] : memref<2x4x8x8xf32, #tpu.memory_space<vmem>>, vector<1x1x8x8xf32>
    %231 = vector.shape_cast %230 : vector<1x1x8x8xf32> to vector<8x8xf32>
    %232 = vector.shape_cast %226 : vector<8x8xf32> to vector<1x1x8x8xf32>
    tpu.vector_store %arg19[%c1_135, %c0_136, %c0_137, %c0_138], %232 {strides = array<i32>} : memref<2x4x8x8xf32, #tpu.memory_space<vmem>>, vector<1x1x8x8xf32>,
    %c1_139 = arith.constant 1 : index
    %c0_140 = arith.constant 0 : index
    %c0_141 = arith.constant 0 : index
    %c0_142 = arith.constant 0 : index
    %233 = vector.load %arg14[%c1_139, %c0_140, %c0_141, %c0_142] : memref<2x4x4x8xf32, #tpu.memory_space<vmem>>, vector<1x1x4x8xf32>
    %234 = vector.shape_cast %233 : vector<1x1x4x8xf32> to vector<4x8xf32>
    %c1_143 = arith.constant 1 : index
    %c0_144 = arith.constant 0 : index
    %c0_145 = arith.constant 0 : index
    %c0_146 = arith.constant 0 : index
    %235 = vector.load %arg15[%c1_143, %c0_144, %c0_145, %c0_146] : memref<2x4x4x8xf32, #tpu.memory_space<vmem>>, vector<1x1x4x8xf32>
    %236 = vector.shape_cast %235 : vector<1x1x4x8xf32> to vector<4x8xf32>
    %cst_147 = arith.constant dense<0.000000e+00> : vector<8x4xf32>
    %237 = tpu.matmul %224, %234, %cst_147 {dimension_numbers = #tpu.dot_dimension_numbers<[1], [1], [0], [0], [0, 0, 1, 0], [], []>} : vector<8x8xf32>, vector<4x8xf32>, vector<8x4xf32> -> vector<8x4xf32>
    %cst_148 = arith.constant 0.353553385 : f32
    %238 = vector.broadcast %cst_148 : f32 to vector<8x4xf32>
    %239 = arith.mulf %237, %238 : vector<8x4xf32>
    %240 = arith.addf %239, %221 : vector<8x4xf32>
    %cst_149 = arith.constant dense<0.000000e+00> : vector<8x8xf32>
    %241 = tpu.matmul %224, %225, %cst_149 {dimension_numbers = #tpu.dot_dimension_numbers<[1], [1], [0], [0], [0, 0, 1, 0], [], []>} : vector<8x8xf32>, vector<8x8xf32>, vector<8x8xf32> -> vector<8x8xf32>
    %cst_150 = arith.constant 0.353553385 : f32
    %242 = vector.broadcast %cst_150 : f32 to vector<8x8xf32>
    %243 = arith.mulf %241, %242 : vector<8x8xf32>
    %244 = arith.addf %243, %222 : vector<8x8xf32>
    %cst_151 = arith.constant dense<0xFF800000> : vector<8xf32>
    %245 = vector.multi_reduction <maximumf>, %240, %cst_151 [1] : vector<8x4xf32> to vector<8xf32>
    %246 = vector.shape_cast %245 : vector<8xf32> to vector<8x1xf32>
    %cst_152 = arith.constant dense<0xFF800000> : vector<8xf32>
    %247 = vector.multi_reduction <maximumf>, %244, %cst_152 [1] : vector<8x8xf32> to vector<8xf32>
    %248 = vector.shape_cast %247 : vector<8xf32> to vector<8x1xf32>
    %249 = arith.maximumf %246, %248 : vector<8x1xf32>
    %250 = vector.broadcast %249 : vector<8x1xf32> to vector<8x4xf32>
    %251 = arith.subf %240, %250 : vector<8x4xf32>
    %252 = math.exp %251 : vector<8x4xf32>
    %253 = vector.broadcast %249 : vector<8x1xf32> to vector<8x8xf32>
    %254 = arith.subf %244, %253 : vector<8x8xf32>
    %255 = math.exp %254 : vector<8x8xf32>
    %cst_153 = arith.constant dense<0.000000e+00> : vector<8xf32>
    %256 = vector.multi_reduction <add>, %252, %cst_153 [1] : vector<8x4xf32> to vector<8xf32>
    %257 = vector.shape_cast %256 : vector<8xf32> to vector<8x1xf32>
    %cst_154 = arith.constant dense<0.000000e+00> : vector<8xf32>
    %258 = vector.multi_reduction <add>, %255, %cst_154 [1] : vector<8x8xf32> to vector<8xf32>
    %259 = vector.shape_cast %258 : vector<8xf32> to vector<8x1xf32>
    %260 = arith.addf %257, %259 : vector<8x1xf32>
    %261 = tpu.reciprocal %260 {approx = true} : vector<8x1xf32> -> vector<8x1xf32>
    %cst_155 = arith.constant dense<0.000000e+00> : vector<8x8xf32>
    %262 = tpu.matmul %252, %236, %cst_155 {dimension_numbers = #tpu.dot_dimension_numbers<[1], [0], [0], [1], [0, 0, 1, 1], [], []>} : vector<8x4xf32>, vector<4x8xf32>, vector<8x8xf32> -> vector<8x8xf32>
    %cst_156 = arith.constant dense<0.000000e+00> : vector<8x8xf32>
    %263 = tpu.matmul %255, %226, %cst_156 {dimension_numbers = #tpu.dot_dimension_numbers<[1], [0], [0], [1], [0, 0, 1, 1], [], []>} : vector<8x8xf32>, vector<8x8xf32>, vector<8x8xf32> -> vector<8x8xf32>
    %264 = arith.addf %262, %263 : vector<8x8xf32>
    %265 = vector.broadcast %261 : vector<8x1xf32> to vector<8x8xf32>
    %266 = arith.mulf %264, %265 : vector<8x8xf32>
    %267 = vector.extract_strided_slice %28 {offsets = [0, 0], sizes = [8, 32], strides = [1, 1]} : vector<32x32xf32> to vector<8x32xf32>
    %cst_157 = arith.constant dense<0.000000e+00> : vector<8x32xf32>
    %268 = tpu.matmul %266, %267, %cst_157 {dimension_numbers = #tpu.dot_dimension_numbers<[1], [0], [0], [1], [0, 0, 1, 1], [], []>} : vector<8x8xf32>, vector<8x32xf32>, vector<8x32xf32> -> vector<8x32xf32>
    %269 = arith.addf %223, %268 : vector<8x32xf32>
    %270 = vector.extract_strided_slice %27 {offsets = [8, 8], sizes = [8, 8], strides = [1, 1]} : vector<16x96xf32> to vector<8x8xf32>
    %271 = vector.extract_strided_slice %27 {offsets = [8, 40], sizes = [8, 8], strides = [1, 1]} : vector<16x96xf32> to vector<8x8xf32>
    %272 = vector.extract_strided_slice %27 {offsets = [8, 72], sizes = [8, 8], strides = [1, 1]} : vector<16x96xf32> to vector<8x8xf32>
    %c1_158 = arith.constant 1 : index
    %c1_159 = arith.constant 1 : index
    %c0_160 = arith.constant 0 : index
    %c0_161 = arith.constant 0 : index
    %273 = vector.load %arg18[%c1_158, %c1_159, %c0_160, %c0_161] : memref<2x4x8x8xf32, #tpu.memory_space<vmem>>, vector<1x1x8x8xf32>
    %274 = vector.shape_cast %273 : vector<1x1x8x8xf32> to vector<8x8xf32>
    %275 = vector.shape_cast %271 : vector<8x8xf32> to vector<1x1x8x8xf32>
    tpu.vector_store %arg18[%c1_158, %c1_159, %c0_160, %c0_161], %275 {strides = array<i32>} : memref<2x4x8x8xf32, #tpu.memory_space<vmem>>, vector<1x1x8x8xf32>,
    %c1_162 = arith.constant 1 : index
    %c1_163 = arith.constant 1 : index
    %c0_164 = arith.constant 0 : index
    %c0_165 = arith.constant 0 : index
    %276 = vector.load %arg19[%c1_162, %c1_163, %c0_164, %c0_165] : memref<2x4x8x8xf32, #tpu.memory_space<vmem>>, vector<1x1x8x8xf32>
    %277 = vector.shape_cast %276 : vector<1x1x8x8xf32> to vector<8x8xf32>
    %278 = vector.shape_cast %272 : vector<8x8xf32> to vector<1x1x8x8xf32>
    tpu.vector_store %arg19[%c1_162, %c1_163, %c0_164, %c0_165], %278 {strides = array<i32>} : memref<2x4x8x8xf32, #tpu.memory_space<vmem>>, vector<1x1x8x8xf32>,
    %c1_166 = arith.constant 1 : index
    %c1_167 = arith.constant 1 : index
    %c0_168 = arith.constant 0 : index
    %c0_169 = arith.constant 0 : index
    %279 = vector.load %arg14[%c1_166, %c1_167, %c0_168, %c0_169] : memref<2x4x4x8xf32, #tpu.memory_space<vmem>>, vector<1x1x4x8xf32>
    %280 = vector.shape_cast %279 : vector<1x1x4x8xf32> to vector<4x8xf32>
    %c1_170 = arith.constant 1 : index
    %c1_171 = arith.constant 1 : index
    %c0_172 = arith.constant 0 : index
    %c0_173 = arith.constant 0 : index
    %281 = vector.load %arg15[%c1_170, %c1_171, %c0_172, %c0_173] : memref<2x4x4x8xf32, #tpu.memory_space<vmem>>, vector<1x1x4x8xf32>
    %282 = vector.shape_cast %281 : vector<1x1x4x8xf32> to vector<4x8xf32>
    %cst_174 = arith.constant dense<0.000000e+00> : vector<8x4xf32>
    %283 = tpu.matmul %270, %280, %cst_174 {dimension_numbers = #tpu.dot_dimension_numbers<[1], [1], [0], [0], [0, 0, 1, 0], [], []>} : vector<8x8xf32>, vector<4x8xf32>, vector<8x4xf32> -> vector<8x4xf32>
    %cst_175 = arith.constant 0.353553385 : f32
    %284 = vector.broadcast %cst_175 : f32 to vector<8x4xf32>
    %285 = arith.mulf %283, %284 : vector<8x4xf32>
    %286 = arith.addf %285, %221 : vector<8x4xf32>
    %cst_176 = arith.constant dense<0.000000e+00> : vector<8x8xf32>
    %287 = tpu.matmul %270, %271, %cst_176 {dimension_numbers = #tpu.dot_dimension_numbers<[1], [1], [0], [0], [0, 0, 1, 0], [], []>} : vector<8x8xf32>, vector<8x8xf32>, vector<8x8xf32> -> vector<8x8xf32>
    %cst_177 = arith.constant 0.353553385 : f32
    %288 = vector.broadcast %cst_177 : f32 to vector<8x8xf32>
    %289 = arith.mulf %287, %288 : vector<8x8xf32>
    %290 = arith.addf %289, %222 : vector<8x8xf32>
    %cst_178 = arith.constant dense<0xFF800000> : vector<8xf32>
    %291 = vector.multi_reduction <maximumf>, %286, %cst_178 [1] : vector<8x4xf32> to vector<8xf32>
    %292 = vector.shape_cast %291 : vector<8xf32> to vector<8x1xf32>
    %cst_179 = arith.constant dense<0xFF800000> : vector<8xf32>
    %293 = vector.multi_reduction <maximumf>, %290, %cst_179 [1] : vector<8x8xf32> to vector<8xf32>
    %294 = vector.shape_cast %293 : vector<8xf32> to vector<8x1xf32>
    %295 = arith.maximumf %292, %294 : vector<8x1xf32>
    %296 = vector.broadcast %295 : vector<8x1xf32> to vector<8x4xf32>
    %297 = arith.subf %286, %296 : vector<8x4xf32>
    %298 = math.exp %297 : vector<8x4xf32>
    %299 = vector.broadcast %295 : vector<8x1xf32> to vector<8x8xf32>
    %300 = arith.subf %290, %299 : vector<8x8xf32>
    %301 = math.exp %300 : vector<8x8xf32>
    %cst_180 = arith.constant dense<0.000000e+00> : vector<8xf32>
    %302 = vector.multi_reduction <add>, %298, %cst_180 [1] : vector<8x4xf32> to vector<8xf32>
    %303 = vector.shape_cast %302 : vector<8xf32> to vector<8x1xf32>
    %cst_181 = arith.constant dense<0.000000e+00> : vector<8xf32>
    %304 = vector.multi_reduction <add>, %301, %cst_181 [1] : vector<8x8xf32> to vector<8xf32>
    %305 = vector.shape_cast %304 : vector<8xf32> to vector<8x1xf32>
    %306 = arith.addf %303, %305 : vector<8x1xf32>
    %307 = tpu.reciprocal %306 {approx = true} : vector<8x1xf32> -> vector<8x1xf32>
    %cst_182 = arith.constant dense<0.000000e+00> : vector<8x8xf32>
    %308 = tpu.matmul %298, %282, %cst_182 {dimension_numbers = #tpu.dot_dimension_numbers<[1], [0], [0], [1], [0, 0, 1, 1], [], []>} : vector<8x4xf32>, vector<4x8xf32>, vector<8x8xf32> -> vector<8x8xf32>
    %cst_183 = arith.constant dense<0.000000e+00> : vector<8x8xf32>
    %309 = tpu.matmul %301, %272, %cst_183 {dimension_numbers = #tpu.dot_dimension_numbers<[1], [0], [0], [1], [0, 0, 1, 1], [], []>} : vector<8x8xf32>, vector<8x8xf32>, vector<8x8xf32> -> vector<8x8xf32>
    %310 = arith.addf %308, %309 : vector<8x8xf32>
    %311 = vector.broadcast %307 : vector<8x1xf32> to vector<8x8xf32>
    %312 = arith.mulf %310, %311 : vector<8x8xf32>
    %313 = vector.extract_strided_slice %28 {offsets = [8, 0], sizes = [8, 32], strides = [1, 1]} : vector<32x32xf32> to vector<8x32xf32>
    %cst_184 = arith.constant dense<0.000000e+00> : vector<8x32xf32>
    %314 = tpu.matmul %312, %313, %cst_184 {dimension_numbers = #tpu.dot_dimension_numbers<[1], [0], [0], [1], [0, 0, 1, 1], [], []>} : vector<8x8xf32>, vector<8x32xf32>, vector<8x32xf32> -> vector<8x32xf32>
    %315 = arith.addf %269, %314 : vector<8x32xf32>
    %316 = vector.extract_strided_slice %27 {offsets = [8, 16], sizes = [8, 8], strides = [1, 1]} : vector<16x96xf32> to vector<8x8xf32>
    %317 = vector.extract_strided_slice %27 {offsets = [8, 48], sizes = [8, 8], strides = [1, 1]} : vector<16x96xf32> to vector<8x8xf32>
    %318 = vector.extract_strided_slice %27 {offsets = [8, 80], sizes = [8, 8], strides = [1, 1]} : vector<16x96xf32> to vector<8x8xf32>
    %c1_185 = arith.constant 1 : index
    %c2_186 = arith.constant 2 : index
    %c0_187 = arith.constant 0 : index
    %c0_188 = arith.constant 0 : index
    %319 = vector.load %arg18[%c1_185, %c2_186, %c0_187, %c0_188] : memref<2x4x8x8xf32, #tpu.memory_space<vmem>>, vector<1x1x8x8xf32>
    %320 = vector.shape_cast %319 : vector<1x1x8x8xf32> to vector<8x8xf32>
    %321 = vector.shape_cast %317 : vector<8x8xf32> to vector<1x1x8x8xf32>
    tpu.vector_store %arg18[%c1_185, %c2_186, %c0_187, %c0_188], %321 {strides = array<i32>} : memref<2x4x8x8xf32, #tpu.memory_space<vmem>>, vector<1x1x8x8xf32>,
    %c1_189 = arith.constant 1 : index
    %c2_190 = arith.constant 2 : index
    %c0_191 = arith.constant 0 : index
    %c0_192 = arith.constant 0 : index
    %322 = vector.load %arg19[%c1_189, %c2_190, %c0_191, %c0_192] : memref<2x4x8x8xf32, #tpu.memory_space<vmem>>, vector<1x1x8x8xf32>
    %323 = vector.shape_cast %322 : vector<1x1x8x8xf32> to vector<8x8xf32>
    %324 = vector.shape_cast %318 : vector<8x8xf32> to vector<1x1x8x8xf32>
    tpu.vector_store %arg19[%c1_189, %c2_190, %c0_191, %c0_192], %324 {strides = array<i32>} : memref<2x4x8x8xf32, #tpu.memory_space<vmem>>, vector<1x1x8x8xf32>,
    %c1_193 = arith.constant 1 : index
    %c2_194 = arith.constant 2 : index
    %c0_195 = arith.constant 0 : index
    %c0_196 = arith.constant 0 : index
    %325 = vector.load %arg14[%c1_193, %c2_194, %c0_195, %c0_196] : memref<2x4x4x8xf32, #tpu.memory_space<vmem>>, vector<1x1x4x8xf32>
    %326 = vector.shape_cast %325 : vector<1x1x4x8xf32> to vector<4x8xf32>
    %c1_197 = arith.constant 1 : index
    %c2_198 = arith.constant 2 : index
    %c0_199 = arith.constant 0 : index
    %c0_200 = arith.constant 0 : index
    %327 = vector.load %arg15[%c1_197, %c2_198, %c0_199, %c0_200] : memref<2x4x4x8xf32, #tpu.memory_space<vmem>>, vector<1x1x4x8xf32>
    %328 = vector.shape_cast %327 : vector<1x1x4x8xf32> to vector<4x8xf32>
    %cst_201 = arith.constant dense<0.000000e+00> : vector<8x4xf32>
    %329 = tpu.matmul %316, %326, %cst_201 {dimension_numbers = #tpu.dot_dimension_numbers<[1], [1], [0], [0], [0, 0, 1, 0], [], []>} : vector<8x8xf32>, vector<4x8xf32>, vector<8x4xf32> -> vector<8x4xf32>
    %cst_202 = arith.constant 0.353553385 : f32
    %330 = vector.broadcast %cst_202 : f32 to vector<8x4xf32>
    %331 = arith.mulf %329, %330 : vector<8x4xf32>
    %332 = arith.addf %331, %221 : vector<8x4xf32>
    %cst_203 = arith.constant dense<0.000000e+00> : vector<8x8xf32>
    %333 = tpu.matmul %316, %317, %cst_203 {dimension_numbers = #tpu.dot_dimension_numbers<[1], [1], [0], [0], [0, 0, 1, 0], [], []>} : vector<8x8xf32>, vector<8x8xf32>, vector<8x8xf32> -> vector<8x8xf32>
    %cst_204 = arith.constant 0.353553385 : f32
    %334 = vector.broadcast %cst_204 : f32 to vector<8x8xf32>
    %335 = arith.mulf %333, %334 : vector<8x8xf32>
    %336 = arith.addf %335, %222 : vector<8x8xf32>
    %cst_205 = arith.constant dense<0xFF800000> : vector<8xf32>
    %337 = vector.multi_reduction <maximumf>, %332, %cst_205 [1] : vector<8x4xf32> to vector<8xf32>
    %338 = vector.shape_cast %337 : vector<8xf32> to vector<8x1xf32>
    %cst_206 = arith.constant dense<0xFF800000> : vector<8xf32>
    %339 = vector.multi_reduction <maximumf>, %336, %cst_206 [1] : vector<8x8xf32> to vector<8xf32>
    %340 = vector.shape_cast %339 : vector<8xf32> to vector<8x1xf32>
    %341 = arith.maximumf %338, %340 : vector<8x1xf32>
    %342 = vector.broadcast %341 : vector<8x1xf32> to vector<8x4xf32>
    %343 = arith.subf %332, %342 : vector<8x4xf32>
    %344 = math.exp %343 : vector<8x4xf32>
    %345 = vector.broadcast %341 : vector<8x1xf32> to vector<8x8xf32>
    %346 = arith.subf %336, %345 : vector<8x8xf32>
    %347 = math.exp %346 : vector<8x8xf32>
    %cst_207 = arith.constant dense<0.000000e+00> : vector<8xf32>
    %348 = vector.multi_reduction <add>, %344, %cst_207 [1] : vector<8x4xf32> to vector<8xf32>
    %349 = vector.shape_cast %348 : vector<8xf32> to vector<8x1xf32>
    %cst_208 = arith.constant dense<0.000000e+00> : vector<8xf32>
    %350 = vector.multi_reduction <add>, %347, %cst_208 [1] : vector<8x8xf32> to vector<8xf32>
    %351 = vector.shape_cast %350 : vector<8xf32> to vector<8x1xf32>
    %352 = arith.addf %349, %351 : vector<8x1xf32>
    %353 = tpu.reciprocal %352 {approx = true} : vector<8x1xf32> -> vector<8x1xf32>
    %cst_209 = arith.constant dense<0.000000e+00> : vector<8x8xf32>
    %354 = tpu.matmul %344, %328, %cst_209 {dimension_numbers = #tpu.dot_dimension_numbers<[1], [0], [0], [1], [0, 0, 1, 1], [], []>} : vector<8x4xf32>, vector<4x8xf32>, vector<8x8xf32> -> vector<8x8xf32>
    %cst_210 = arith.constant dense<0.000000e+00> : vector<8x8xf32>
    %355 = tpu.matmul %347, %318, %cst_210 {dimension_numbers = #tpu.dot_dimension_numbers<[1], [0], [0], [1], [0, 0, 1, 1], [], []>} : vector<8x8xf32>, vector<8x8xf32>, vector<8x8xf32> -> vector<8x8xf32>
    %356 = arith.addf %354, %355 : vector<8x8xf32>
    %357 = vector.broadcast %353 : vector<8x1xf32> to vector<8x8xf32>
    %358 = arith.mulf %356, %357 : vector<8x8xf32>
    %359 = vector.extract_strided_slice %28 {offsets = [16, 0], sizes = [8, 32], strides = [1, 1]} : vector<32x32xf32> to vector<8x32xf32>
    %cst_211 = arith.constant dense<0.000000e+00> : vector<8x32xf32>
    %360 = tpu.matmul %358, %359, %cst_211 {dimension_numbers = #tpu.dot_dimension_numbers<[1], [0], [0], [1], [0, 0, 1, 1], [], []>} : vector<8x8xf32>, vector<8x32xf32>, vector<8x32xf32> -> vector<8x32xf32>
    %361 = arith.addf %315, %360 : vector<8x32xf32>
    %362 = vector.extract_strided_slice %27 {offsets = [8, 24], sizes = [8, 8], strides = [1, 1]} : vector<16x96xf32> to vector<8x8xf32>
    %363 = vector.extract_strided_slice %27 {offsets = [8, 56], sizes = [8, 8], strides = [1, 1]} : vector<16x96xf32> to vector<8x8xf32>
    %364 = vector.extract_strided_slice %27 {offsets = [8, 88], sizes = [8, 8], strides = [1, 1]} : vector<16x96xf32> to vector<8x8xf32>
    %c1_212 = arith.constant 1 : index
    %c3_213 = arith.constant 3 : index
    %c0_214 = arith.constant 0 : index
    %c0_215 = arith.constant 0 : index
    %365 = vector.load %arg18[%c1_212, %c3_213, %c0_214, %c0_215] : memref<2x4x8x8xf32, #tpu.memory_space<vmem>>, vector<1x1x8x8xf32>
    %366 = vector.shape_cast %365 : vector<1x1x8x8xf32> to vector<8x8xf32>
    %367 = vector.shape_cast %363 : vector<8x8xf32> to vector<1x1x8x8xf32>
    tpu.vector_store %arg18[%c1_212, %c3_213, %c0_214, %c0_215], %367 {strides = array<i32>} : memref<2x4x8x8xf32, #tpu.memory_space<vmem>>, vector<1x1x8x8xf32>,
    %c1_216 = arith.constant 1 : index
    %c3_217 = arith.constant 3 : index
    %c0_218 = arith.constant 0 : index
    %c0_219 = arith.constant 0 : index
    %368 = vector.load %arg19[%c1_216, %c3_217, %c0_218, %c0_219] : memref<2x4x8x8xf32, #tpu.memory_space<vmem>>, vector<1x1x8x8xf32>
    %369 = vector.shape_cast %368 : vector<1x1x8x8xf32> to vector<8x8xf32>
    %370 = vector.shape_cast %364 : vector<8x8xf32> to vector<1x1x8x8xf32>
    tpu.vector_store %arg19[%c1_216, %c3_217, %c0_218, %c0_219], %370 {strides = array<i32>} : memref<2x4x8x8xf32, #tpu.memory_space<vmem>>, vector<1x1x8x8xf32>,
    %c1_220 = arith.constant 1 : index
    %c3_221 = arith.constant 3 : index
    %c0_222 = arith.constant 0 : index
    %c0_223 = arith.constant 0 : index
    %371 = vector.load %arg14[%c1_220, %c3_221, %c0_222, %c0_223] : memref<2x4x4x8xf32, #tpu.memory_space<vmem>>, vector<1x1x4x8xf32>
    %372 = vector.shape_cast %371 : vector<1x1x4x8xf32> to vector<4x8xf32>
    %c1_224 = arith.constant 1 : index
    %c3_225 = arith.constant 3 : index
    %c0_226 = arith.constant 0 : index
    %c0_227 = arith.constant 0 : index
    %373 = vector.load %arg15[%c1_224, %c3_225, %c0_226, %c0_227] : memref<2x4x4x8xf32, #tpu.memory_space<vmem>>, vector<1x1x4x8xf32>
    %374 = vector.shape_cast %373 : vector<1x1x4x8xf32> to vector<4x8xf32>
    %cst_228 = arith.constant dense<0.000000e+00> : vector<8x4xf32>
    %375 = tpu.matmul %362, %372, %cst_228 {dimension_numbers = #tpu.dot_dimension_numbers<[1], [1], [0], [0], [0, 0, 1, 0], [], []>} : vector<8x8xf32>, vector<4x8xf32>, vector<8x4xf32> -> vector<8x4xf32>
    %cst_229 = arith.constant 0.353553385 : f32
    %376 = vector.broadcast %cst_229 : f32 to vector<8x4xf32>
    %377 = arith.mulf %375, %376 : vector<8x4xf32>
    %378 = arith.addf %377, %221 : vector<8x4xf32>
    %cst_230 = arith.constant dense<0.000000e+00> : vector<8x8xf32>
    %379 = tpu.matmul %362, %363, %cst_230 {dimension_numbers = #tpu.dot_dimension_numbers<[1], [1], [0], [0], [0, 0, 1, 0], [], []>} : vector<8x8xf32>, vector<8x8xf32>, vector<8x8xf32> -> vector<8x8xf32>
    %cst_231 = arith.constant 0.353553385 : f32
    %380 = vector.broadcast %cst_231 : f32 to vector<8x8xf32>
    %381 = arith.mulf %379, %380 : vector<8x8xf32>
    %382 = arith.addf %381, %222 : vector<8x8xf32>
    %cst_232 = arith.constant dense<0xFF800000> : vector<8xf32>
    %383 = vector.multi_reduction <maximumf>, %378, %cst_232 [1] : vector<8x4xf32> to vector<8xf32>
    %384 = vector.shape_cast %383 : vector<8xf32> to vector<8x1xf32>
    %cst_233 = arith.constant dense<0xFF800000> : vector<8xf32>
    %385 = vector.multi_reduction <maximumf>, %382, %cst_233 [1] : vector<8x8xf32> to vector<8xf32>
    %386 = vector.shape_cast %385 : vector<8xf32> to vector<8x1xf32>
    %387 = arith.maximumf %384, %386 : vector<8x1xf32>
    %388 = vector.broadcast %387 : vector<8x1xf32> to vector<8x4xf32>
    %389 = arith.subf %378, %388 : vector<8x4xf32>
    %390 = math.exp %389 : vector<8x4xf32>
    %391 = vector.broadcast %387 : vector<8x1xf32> to vector<8x8xf32>
    %392 = arith.subf %382, %391 : vector<8x8xf32>
    %393 = math.exp %392 : vector<8x8xf32>
    %cst_234 = arith.constant dense<0.000000e+00> : vector<8xf32>
    %394 = vector.multi_reduction <add>, %390, %cst_234 [1] : vector<8x4xf32> to vector<8xf32>
    %395 = vector.shape_cast %394 : vector<8xf32> to vector<8x1xf32>
    %cst_235 = arith.constant dense<0.000000e+00> : vector<8xf32>
    %396 = vector.multi_reduction <add>, %393, %cst_235 [1] : vector<8x8xf32> to vector<8xf32>
    %397 = vector.shape_cast %396 : vector<8xf32> to vector<8x1xf32>
    %398 = arith.addf %395, %397 : vector<8x1xf32>
    %399 = tpu.reciprocal %398 {approx = true} : vector<8x1xf32> -> vector<8x1xf32>
    %cst_236 = arith.constant dense<0.000000e+00> : vector<8x8xf32>
    %400 = tpu.matmul %390, %374, %cst_236 {dimension_numbers = #tpu.dot_dimension_numbers<[1], [0], [0], [1], [0, 0, 1, 1], [], []>} : vector<8x4xf32>, vector<4x8xf32>, vector<8x8xf32> -> vector<8x8xf32>
    %cst_237 = arith.constant dense<0.000000e+00> : vector<8x8xf32>
    %401 = tpu.matmul %393, %364, %cst_237 {dimension_numbers = #tpu.dot_dimension_numbers<[1], [0], [0], [1], [0, 0, 1, 1], [], []>} : vector<8x8xf32>, vector<8x8xf32>, vector<8x8xf32> -> vector<8x8xf32>
    %402 = arith.addf %400, %401 : vector<8x8xf32>
    %403 = vector.broadcast %399 : vector<8x1xf32> to vector<8x8xf32>
    %404 = arith.mulf %402, %403 : vector<8x8xf32>
    %405 = vector.extract_strided_slice %28 {offsets = [24, 0], sizes = [8, 32], strides = [1, 1]} : vector<32x32xf32> to vector<8x32xf32>
    %cst_238 = arith.constant dense<0.000000e+00> : vector<8x32xf32>
    %406 = tpu.matmul %404, %405, %cst_238 {dimension_numbers = #tpu.dot_dimension_numbers<[1], [0], [0], [1], [0, 0, 1, 1], [], []>} : vector<8x8xf32>, vector<8x32xf32>, vector<8x32xf32> -> vector<8x32xf32>
    %407 = arith.addf %361, %406 : vector<8x32xf32>
    %c8 = arith.constant 8 : index
    %c0_239 = arith.constant 0 : index
    %408 = vector.load %arg20[%c8, %c0_239] : memref<16x32xf32, #tpu.memory_space<vmem>>, vector<8x32xf32>
    tpu.vector_store %arg20[%c8, %c0_239], %407 {strides = array<i32>} : memref<16x32xf32, #tpu.memory_space<vmem>>, vector<8x32xf32>,
    %c0_240 = arith.constant 0 : index
    %c0_241 = arith.constant 0 : index
    %409 = vector.load %arg20[%c0_240, %c0_241] : memref<16x32xf32, #tpu.memory_space<vmem>>, vector<16x32xf32>
    %410 = arith.addf %0, %409 : vector<16x32xf32>
    %c0_242 = arith.constant 0 : index
    %c0_243 = arith.constant 0 : index
    %411 = vector.load %arg7[%c0_242, %c0_243] : memref<1x32xf32, #tpu.memory_space<vmem>>, vector<1x32xf32>
    %412 = vector.broadcast %411 : vector<1x32xf32> to vector<16x32xf32>
    %413 = arith.addf %410, %412 : vector<16x32xf32>
    %c0_244 = arith.constant 0 : index
    %c0_245 = arith.constant 0 : index
    %414 = vector.load %arg8[%c0_244, %c0_245] : memref<1x32xf32, #tpu.memory_space<vmem>>, vector<1x32xf32>
    %c0_246 = arith.constant 0 : index
    %c0_247 = arith.constant 0 : index
    %415 = vector.load %arg9[%c0_246, %c0_247] : memref<1x32xf32, #tpu.memory_space<vmem>>, vector<1x32xf32>
    %cst_248 = arith.constant dense<0.000000e+00> : vector<16xf32>
    %416 = vector.multi_reduction <add>, %413, %cst_248 [1] : vector<16x32xf32> to vector<16xf32>
    %417 = vector.shape_cast %416 : vector<16xf32> to vector<16x1xf32>
    %cst_249 = arith.constant 3.200000e+01 : f32
    %418 = vector.broadcast %cst_249 : f32 to vector<16x1xf32>
    %419 = arith.divf %417, %418 : vector<16x1xf32>
    %420 = vector.broadcast %419 : vector<16x1xf32> to vector<16x32xf32>
    %421 = arith.subf %413, %420 : vector<16x32xf32>
    %422 = arith.mulf %421, %421 : vector<16x32xf32>
    %cst_250 = arith.constant dense<0.000000e+00> : vector<16xf32>
    %423 = vector.multi_reduction <add>, %422, %cst_250 [1] : vector<16x32xf32> to vector<16xf32>
    %424 = vector.shape_cast %423 : vector<16xf32> to vector<16x1xf32>
    %cst_251 = arith.constant 3.200000e+01 : f32
    %425 = vector.broadcast %cst_251 : f32 to vector<16x1xf32>
    %426 = arith.divf %424, %425 : vector<16x1xf32>
    %cst_252 = arith.constant 9.99999974E-6 : f32
    %427 = vector.broadcast %cst_252 : f32 to vector<16x1xf32>
    %428 = arith.addf %426, %427 : vector<16x1xf32>
    %429 = math.rsqrt %428 : vector<16x1xf32>
    %430 = vector.broadcast %429 : vector<16x1xf32> to vector<16x32xf32>
    %431 = arith.mulf %421, %430 : vector<16x32xf32>
    %432 = vector.broadcast %414 : vector<1x32xf32> to vector<16x32xf32>
    %433 = arith.mulf %431, %432 : vector<16x32xf32>
    %434 = vector.broadcast %415 : vector<1x32xf32> to vector<16x32xf32>
    %435 = arith.addf %433, %434 : vector<16x32xf32>
    %c0_253 = arith.constant 0 : index
    %c0_254 = arith.constant 0 : index
    %436 = vector.load %arg10[%c0_253, %c0_254] : memref<32x128xf32, #tpu.memory_space<vmem>>, vector<32x128xf32>
    %cst_255 = arith.constant dense<0.000000e+00> : vector<16x128xf32>
    %437 = tpu.matmul %435, %436, %cst_255 {dimension_numbers = #tpu.dot_dimension_numbers<[1], [0], [0], [1], [0, 0, 1, 1], [], []>} : vector<16x32xf32>, vector<32x128xf32>, vector<16x128xf32> -> vector<16x128xf32>
    %c0_256 = arith.constant 0 : index
    %c0_257 = arith.constant 0 : index
    %438 = vector.load %arg11[%c0_256, %c0_257] : memref<1x128xf32, #tpu.memory_space<vmem>>, vector<1x128xf32>
    %439 = vector.broadcast %438 : vector<1x128xf32> to vector<16x128xf32>
    %440 = arith.addf %437, %439 : vector<16x128xf32>
    %cst_258 = arith.constant 5.000000e-01 : f32
    %441 = vector.broadcast %cst_258 : f32 to vector<16x128xf32>
    %442 = arith.mulf %441, %440 : vector<16x128xf32>
    %cst_259 = arith.constant 4.471500e-02 : f32
    %443 = vector.broadcast %cst_259 : f32 to vector<16x128xf32>
    %444 = arith.mulf %443, %440 : vector<16x128xf32>
    %445 = arith.mulf %444, %440 : vector<16x128xf32>
    %446 = arith.mulf %445, %440 : vector<16x128xf32>
    %447 = arith.addf %440, %446 : vector<16x128xf32>
    %cst_260 = arith.constant 0.797884583 : f32
    %448 = vector.broadcast %cst_260 : f32 to vector<16x128xf32>
    %449 = arith.mulf %448, %447 : vector<16x128xf32>
    %450 = math.tanh %449 : vector<16x128xf32>
    %cst_261 = arith.constant 1.000000e+00 : f32
    %451 = vector.broadcast %cst_261 : f32 to vector<16x128xf32>
    %452 = arith.addf %451, %450 : vector<16x128xf32>
    %453 = arith.mulf %442, %452 : vector<16x128xf32>
    %c0_262 = arith.constant 0 : index
    %c0_263 = arith.constant 0 : index
    %454 = vector.load %arg12[%c0_262, %c0_263] : memref<128x32xf32, #tpu.memory_space<vmem>>, vector<128x32xf32>
    %cst_264 = arith.constant dense<0.000000e+00> : vector<16x32xf32>
    %455 = tpu.matmul %453, %454, %cst_264 {dimension_numbers = #tpu.dot_dimension_numbers<[1], [0], [0], [1], [0, 0, 1, 1], [], []>} : vector<16x128xf32>, vector<128x32xf32>, vector<16x32xf32> -> vector<16x32xf32>
    %c0_265 = arith.constant 0 : index
    %c0_266 = arith.constant 0 : index
    %456 = vector.load %arg13[%c0_265, %c0_266] : memref<1x32xf32, #tpu.memory_space<vmem>>, vector<1x32xf32>
    %457 = vector.broadcast %456 : vector<1x32xf32> to vector<16x32xf32>
    %458 = arith.addf %455, %457 : vector<16x32xf32>
    %459 = arith.addf %413, %458 : vector<16x32xf32>
    %c0_267 = arith.constant 0 : index
    %c0_268 = arith.constant 0 : index
    %460 = vector.load %arg17[%c0_267, %c0_268] : memref<16x32xf32, #tpu.memory_space<vmem>>, vector<16x32xf32>
    tpu.vector_store %arg17[%c0_267, %c0_268], %459 {strides = array<i32>} : memref<16x32xf32, #tpu.memory_space<vmem>>, vector<16x32xf32>,
    return
  }
  func.func @transform_0(%arg0: i32) -> (i32, i32) {
    %c0_i32 = arith.constant 0 : i32
    %c0_i32_0 = arith.constant 0 : i32
    %c0_i32_1 = arith.constant 0 : i32
    return %c0_i32, %c0_i32_0 : i32, i32
  }
  func.func @transform_1(%arg0: i32) -> (i32, i32) {
    %c0_i32 = arith.constant 0 : i32
    %c0_i32_0 = arith.constant 0 : i32
    %c0_i32_1 = arith.constant 0 : i32
    return %c0_i32, %c0_i32_0 : i32, i32
  }
  func.func @transform_2(%arg0: i32) -> (i32, i32) {
    %c0_i32 = arith.constant 0 : i32
    %c0_i32_0 = arith.constant 0 : i32
    %c0_i32_1 = arith.constant 0 : i32
    return %c0_i32, %c0_i32_0 : i32, i32
  }
  func.func @transform_3(%arg0: i32) -> (i32, i32) {
    %c0_i32 = arith.constant 0 : i32
    %c0_i32_0 = arith.constant 0 : i32
    %c0_i32_1 = arith.constant 0 : i32
    return %c0_i32, %c0_i32_0 : i32, i32
  }
  func.func @transform_4(%arg0: i32) -> (i32, i32) {
    %c0_i32 = arith.constant 0 : i32
    %c0_i32_0 = arith.constant 0 : i32
    %c0_i32_1 = arith.constant 0 : i32
    return %c0_i32, %c0_i32_0 : i32, i32
  }
  func.func @transform_5(%arg0: i32) -> (i32, i32) {
    %c0_i32 = arith.constant 0 : i32
    %c0_i32_0 = arith.constant 0 : i32
    %c0_i32_1 = arith.constant 0 : i32
    return %c0_i32, %c0_i32_0 : i32, i32
  }
  func.func @transform_6(%arg0: i32) -> (i32, i32) {
    %c0_i32 = arith.constant 0 : i32
    %c0_i32_0 = arith.constant 0 : i32
    %c0_i32_1 = arith.constant 0 : i32
    return %c0_i32, %c0_i32_0 : i32, i32
  }
  func.func @transform_7(%arg0: i32) -> (i32, i32) {
    %c0_i32 = arith.constant 0 : i32
    %c0_i32_0 = arith.constant 0 : i32
    %c0_i32_1 = arith.constant 0 : i32
    return %c0_i32, %c0_i32_0 : i32, i32
  }
  func.func @transform_8(%arg0: i32) -> (i32, i32) {
    %c0_i32 = arith.constant 0 : i32
    %c0_i32_0 = arith.constant 0 : i32
    %c0_i32_1 = arith.constant 0 : i32
    return %c0_i32, %c0_i32_0 : i32, i32
  }
  func.func @transform_9(%arg0: i32) -> (i32, i32) {
    %c0_i32 = arith.constant 0 : i32
    %c0_i32_0 = arith.constant 0 : i32
    %c0_i32_1 = arith.constant 0 : i32
    return %c0_i32, %c0_i32_0 : i32, i32
  }
  func.func @transform_10(%arg0: i32) -> (i32, i32) {
    %c0_i32 = arith.constant 0 : i32
    %c0_i32_0 = arith.constant 0 : i32
    %c0_i32_1 = arith.constant 0 : i32
    return %c0_i32, %c0_i32_0 : i32, i32
  }
  func.func @transform_11(%arg0: i32) -> (i32, i32) {
    %c0_i32 = arith.constant 0 : i32
    %c0_i32_0 = arith.constant 0 : i32
    %c0_i32_1 = arith.constant 0 : i32
    return %c0_i32, %c0_i32_0 : i32, i32
  }
  func.func @transform_12(%arg0: i32) -> (i32, i32) {
    %c0_i32 = arith.constant 0 : i32
    %c0_i32_0 = arith.constant 0 : i32
    %c0_i32_1 = arith.constant 0 : i32
    return %c0_i32, %c0_i32_0 : i32, i32
  }
  func.func @transform_13(%arg0: i32) -> (i32, i32, i32, i32) {
    %c0_i32 = arith.constant 0 : i32
    %c0_i32_0 = arith.constant 0 : i32
    %c0_i32_1 = arith.constant 0 : i32
    %c0_i32_2 = arith.constant 0 : i32
    %c0_i32_3 = arith.constant 0 : i32
    return %c0_i32, %c0_i32_0, %c0_i32_1, %c0_i32_2 : i32, i32, i32, i32
  }
  func.func @transform_14(%arg0: i32) -> (i32, i32, i32, i32) {
    %c0_i32 = arith.constant 0 : i32
    %c0_i32_0 = arith.constant 0 : i32
    %c0_i32_1 = arith.constant 0 : i32
    %c0_i32_2 = arith.constant 0 : i32
    %c0_i32_3 = arith.constant 0 : i32
    return %c0_i32, %c0_i32_0, %c0_i32_1, %c0_i32_2 : i32, i32, i32, i32
  }
  func.func @transform_15(%arg0: i32) -> (i32, i32, i32) {
    %c0_i32 = arith.constant 0 : i32
    %c0_i32_0 = arith.constant 0 : i32
    %c0_i32_1 = arith.constant 0 : i32
    %c0_i32_2 = arith.constant 0 : i32
    return %c0_i32, %c0_i32_0, %c0_i32_1 : i32, i32, i32
  }
  func.func @transform_16(%arg0: i32) -> (i32, i32) {
    %c0_i32 = arith.constant 0 : i32
    %c0_i32_0 = arith.constant 0 : i32
    %c0_i32_1 = arith.constant 0 : i32
    return %c0_i32, %c0_i32_0 : i32, i32
  }
  func.func @transform_17(%arg0: i32) -> (i32, i32, i32, i32) {
    %c0_i32 = arith.constant 0 : i32
    %c0_i32_0 = arith.constant 0 : i32
    %c0_i32_1 = arith.constant 0 : i32
    %c0_i32_2 = arith.constant 0 : i32
    %c0_i32_3 = arith.constant 0 : i32
    return %c0_i32, %c0_i32_0, %c0_i32_1, %c0_i32_2 : i32, i32, i32, i32
  }
  func.func @transform_18(%arg0: i32) -> (i32, i32, i32, i32) {
    %c0_i32 = arith.constant 0 : i32
    %c0_i32_0 = arith.constant 0 : i32
    %c0_i32_1 = arith.constant 0 : i32
    %c0_i32_2 = arith.constant 0 : i32
    %c0_i32_3 = arith.constant 0 : i32
    return %c0_i32, %c0_i32_0, %c0_i32_1, %c0_i32_2 : i32, i32, i32, i32
  }
}

</mosaic_0001>

<llo_original>
// kernel: gpt2_forward.5
$region0: #{gpt2_forward.5}
  #allocation0 [shape = 'u32[]', space=smem, size = 0x4, offset = 0x4, fixed_abs, tag = 'smem constant byte address 0x4 - core index']
  #allocation1 [shape = 'u32[144,128]{1,0:T(1,128)}', space=vmem, size = 0x12000, scoped, tag = 'internal scratch']
  %s0 = inlined_call_operand.vmem [shape: f32[16,32], index: 0, kind: input, shape index: {}]
  %s1 = inlined_call_operand.vmem [shape: f32[1,32], index: 1, kind: input, shape index: {}]
  %s2 = inlined_call_operand.vmem [shape: f32[1,32], index: 2, kind: input, shape index: {}]
  %s3 = inlined_call_operand.vmem [shape: f32[64,32], index: 3, kind: input, shape index: {}]
  %s4 = inlined_call_operand.hbm [shape: f32[16,64], index: 4, kind: output, shape index: {0}]
  %s5 = inlined_call_operand.hbm [shape: f32[16,32], index: 5, kind: output, shape index: {1}]
  %6 = xla_tuple %s4, %s5
  %s7 = sld [smem:[#allocation0]]
  $region34: #{gpt2_forward.5} parent=0
    _
  %s9 = ssub.s32 1, %s7
  %s10 = scalar_select 0, %s9, %s7
  $region1: #{gpt2_forward.5} parent=0
    #allocation2 [shape = 'u8[8192]{0}', space=vmem, size = 0x2000, scoped, tag = 'output window, operand 0, single buffered']
    #allocation3 [shape = 's32[1]{0}', space=sflag, size = 0x4, scoped, tag = 'scoped memory for gpt2_forward.5']
    #allocation4 [shape = 'u8[8192]{0}', space=vmem, size = 0x2000, scoped, tag = 'output window, operand 1, single buffered']
    #allocation5 [shape = 's32[1]{0}', space=sflag, size = 0x4, scoped, tag = 'scoped memory for gpt2_forward.5']
    %11 = vsyncpa [#allocation3], 0
    %12 = vsyncpa [#allocation5], 0
    // Predicated region
    $region2: #{gpt2_forward.5} parent=1 // pred_check
      _
    $region3: #{gpt2_forward.5} parent=1 // pred_check_branch
      %14 = sbr.rel (0) target = $region5
    $region4: #{gpt2_forward.5} parent=1 // pred_region
      _
    $region5: #{gpt2_forward.5} parent=1 // pred_fallthru
      _
    // Predicated region
    $region6: #{gpt2_forward.5} parent=1 // pred_check
      _
    $region7: #{gpt2_forward.5} parent=1 // pred_check_branch
      %16 = sbr.rel (0) target = $region9
    $region8: #{gpt2_forward.5} parent=1 // pred_region
      _
    $region9: #{gpt2_forward.5} parent=1 // pred_fallthru
      _
    // Predicated region
    $region10: #{gpt2_forward.5} parent=1 // pred_check
      _
    $region11: #{gpt2_forward.5} parent=1 // pred_check_branch
      %18 = sbr.rel (0) target = $region13
    $region12: #{gpt2_forward.5} parent=1 // pred_region
      _
    $region13: #{gpt2_forward.5} parent=1 // pred_fallthru
      _
    // Predicated region
    $region14: #{gpt2_forward.5} parent=1 // pred_check
      _
    $region15: #{gpt2_forward.5} parent=1 // pred_check_branch
      %20 = sbr.rel (0) target = $region17
    $region16: #{gpt2_forward.5} parent=1 // pred_region
      _
    $region17: #{gpt2_forward.5} parent=1 // pred_fallthru
      _
    %v21 = vld [vmem:[%s0] sm:$0xff]
    %v22 = vld [vmem:[%s0 + $0x8] sm:$0xff]
    %v23 = vld [vmem:[%s1] sm:$0x1]
    %v24 = vld [vmem:[%s2] sm:$0x1]
    %vm25 = vcmask 261120
    %v26 = vsel %vm25, %v21, 0.0
    %27 = vadd.xlane.f32.xlu0 %v26
    %v28 = vpop.xlane.xlu0 %27
    %v29 = vsel %vm25, %v22, 0.0
    %30 = vadd.xlane.f32.xlu0 %v29
    %v31 = vpop.xlane.xlu0 %30
    %v32 = vrcp.pop 32.0
    %v33 = vmul.f32 %v28, %v32
    %v34 = vmul.f32 %v31, %v32
    %v35 = vsub.f32 %v21, %v33
    %v36 = vsub.f32 %v22, %v34
    %v37 = vmul.f32 %v35, %v35
    %v38 = vmul.f32 %v36, %v36
    %v39 = vsel %vm25, %v37, 0.0
    %40 = vadd.xlane.f32.xlu0 %v39
    %v41 = vpop.xlane.xlu0 %40
    %v42 = vsel %vm25, %v38, 0.0
    %43 = vadd.xlane.f32.xlu0 %v42
    %v44 = vpop.xlane.xlu0 %43
    %v45 = vmul.f32 %v41, %v32
    %v46 = vmul.f32 %v44, %v32
    %v47 = vadd.f32 %v45, 1e-05
    %v48 = vadd.f32 %v46, 1e-05
    %v49 = vrsqrt.pop %v47
    %v50 = vrsqrt.pop %v48
    %v51 = vmul.f32 %v35, %v49
    %v52 = vmul.f32 %v36, %v50
    %v54 = vlaneseq
    %v55 = vshrl.u32 %v54, 7
    %v56 = vsub.s32 0, %v55
    %v57 = vrot.slane %v23, %v56
    %v59 = vmul.f32 %v51, %v57
    %v60 = vmul.f32 %v52, %v57
    %v62 = vlaneseq
    %v63 = vshrl.u32 %v62, 7
    %v64 = vsub.s32 0, %v63
    %v65 = vrot.slane %v24, %v64
    %v67 = vadd.f32 %v59, %v65
    %v68 = vadd.f32 %v60, %v65
    %69 = vst.msk [vmem:[#allocation4] sm:$0xff] %vm25, %v67
    %70 = vst.msk [vmem:[#allocation4 + $0x8] sm:$0xff] %vm25, %v68
    %v71 = vld [vmem:[%s3] sm:$0xff]
    %v72 = vld [vmem:[%s3 + $0x8] sm:$0xff]
    %v73 = vld [vmem:[%s3 + $0x10] sm:$0xff]
    %v74 = vld [vmem:[%s3 + $0x18] sm:$0xff]
    %v75 = vld [vmem:[%s3 + $0x20] sm:$0xff]
    %v76 = vld [vmem:[%s3 + $0x28] sm:$0xff]
    %v77 = vld [vmem:[%s3 + $0x30] sm:$0xff]
    %v78 = vld [vmem:[%s3 + $0x38] sm:$0xff]
    %v80 = vsel %vm25, %v67, 0
    %v83 = vsel %vm25, %v68, 0
    %v86 = vsel %vm25, %v71, 0
    %v89 = vsel %vm25, %v72, 0
    %v92 = vsel %vm25, %v73, 0
    %v95 = vsel %vm25, %v74, 0
    %v98 = vsel %vm25, %v75, 0
    %v101 = vsel %vm25, %v76, 0
    %v104 = vsel %vm25, %v77, 0
    %v107 = vsel %vm25, %v78, 0
    %109 = vmatprep.subr.mxu0 0.0
    %110 = vmatpush1.xpose.msra.mxu0 %v86
    %111 = vmatprep.subr.mxu0 0.0
    %112 = vmatpush1.xpose.msra.mxu0 %v89
    %113 = vmatprep.subr.mxu0 0.0
    %114 = vmatpush1.xpose.msra.mxu0 %v92
    %115 = vmatprep.subr.mxu0 0.0
    %116 = vmatpush1.xpose.msra.mxu0 %v95
    %117 = vmatprep.subr.mxu0 0.0
    %118 = vmatpush1.xpose.msra.mxu0 %v98
    %119 = vmatprep.subr.mxu0 0.0
    %120 = vmatpush1.xpose.msra.mxu0 %v101
    %121 = vmatprep.subr.mxu0 0.0
    %122 = vmatpush1.xpose.msra.mxu0 %v104
    %123 = vmatprep.subr.mxu0 0.0
    %124 = vmatpush1.xpose.msra.mxu0 %v107
    %125 = vmatprep.subr.mxu0 0.0
    %126 = vmatpush1.xpose.msra.mxu0 0.0
    %127 = vmatprep.subr.mxu0 0.0
    %128 = vmatpush1.xpose.msra.mxu0 0.0
    %129 = vmatprep.subr.mxu0 0.0
    %130 = vmatpush1.xpose.msra.mxu0 0.0
    %131 = vmatprep.subr.mxu0 0.0
    %132 = vmatpush1.xpose.msra.mxu0 0.0
    %133 = vmatprep.subr.mxu0 0.0
    %134 = vmatpush1.xpose.msra.mxu0 0.0
    %135 = vmatprep.subr.mxu0 0.0
    %136 = vmatpush1.xpose.msra.mxu0 0.0
    %137 = vmatprep.subr.mxu0 0.0
    %138 = vmatpush1.xpose.msra.mxu0 0.0
    %139 = vmatprep.subr.mxu0 0.0
    %140 = vmatpush1.xpose.msra.mxu0 0.0
    %141 = vmatprep.subr.mxu0 0.0
    %142 = vmatpush1.xpose.msra.mxu0 0.0
    %143 = vmatprep.subr.mxu0 0.0
    %144 = vmatpush1.xpose.msra.mxu0 0.0
    %145 = vmatprep.subr.mxu0 0.0
    %146 = vmatpush1.xpose.msra.mxu0 0.0
    %147 = vmatprep.subr.mxu0 0.0
    %148 = vmatpush1.xpose.msra.mxu0 0.0
    %149 = vmatprep.subr.mxu0 0.0
    %150 = vmatpush1.xpose.msra.mxu0 0.0
    %151 = vmatprep.subr.mxu0 0.0
    %152 = vmatpush1.xpose.msra.mxu0 0.0
    %153 = vmatprep.subr.mxu0 0.0
    %154 = vmatpush1.xpose.msra.mxu0 0.0
    %155 = vmatprep.subr.mxu0 0.0
    %156 = vmatpush1.xpose.msra.mxu0 0.0
    %157 = vmatprep.subr.mxu0 0.0
    %158 = vmatpush1.xpose.msra.mxu0 0.0
    %159 = vmatprep.subr.mxu0 0.0
    %160 = vmatpush1.xpose.msra.mxu0 0.0
    %161 = vmatprep.subr.mxu0 0.0
    %162 = vmatpush1.xpose.msra.mxu0 0.0
    %163 = vmatprep.subr.mxu0 0.0
    %164 = vmatpush1.xpose.msra.mxu0 0.0
    %165 = vmatprep.subr.mxu0 0.0
    %166 = vmatpush1.xpose.msra.mxu0 0.0
    %167 = vmatprep.subr.mxu0 0.0
    %168 = vmatpush1.xpose.msra.mxu0 0.0
    %169 = vmatprep.subr.mxu0 0.0
    %170 = vmatpush1.xpose.msra.mxu0 0.0
    %171 = vmatprep.subr.mxu0 0.0
    %172 = vmatpush1.xpose.msra.mxu0 0.0
    %173 = vmatprep.mubr.f32.mxu0 0.0
    %174 = vmatmul.mubr.f32.gmra.mrb[0].mxu0 %v80
    %v175 = vpop.f32.mrb[0].mxu0
    %v176 = vadd.f32 0.0, %v175
    %v177 = vpop.f32.mrb[0].mxu0
    %178 = vmatprep.mubr.f32.mxu0 0.0
    %179 = vmatmul.mubr.f32.gmra.mrb[0].mxu0 %v83
    %v180 = vpop.f32.mrb[0].mxu0
    %v181 = vadd.f32 0.0, %v180
    %v182 = vpop.f32.mrb[0].mxu0
    %183 = vdwg.mxu0
    %vm184 = vcmask 523264
    %185 = vst.msk [vmem:[#allocation2] sm:$0xff] %vm184, %v176
    %186 = vst.msk [vmem:[#allocation2 + $0x8] sm:$0xff] %vm184, %v181
    // Predicated region
    $region18: #{gpt2_forward.5} parent=1 // pred_check
      _
    $region19: #{gpt2_forward.5} parent=1 // pred_check_branch
      %188 = sbr.rel (0) target = $region21
    $region20: #{gpt2_forward.5} parent=1 // pred_region
      %s190 = ssub.s32 256, 256
      %191 = vsyncadd [#allocation3], %s190
      %s192 = sshll.u32 [#allocation2], 4
      %s193 = int_to_ptr.vmem [resolvable:$true] %s192
      %198 = dma.vmem_to_hbm [thread:$0]  %s193, 256, %s4, [#allocation3], 128, 128, 8
    $region21: #{gpt2_forward.5} parent=1 // pred_fallthru
      _
    // Predicated region
    $region22: #{gpt2_forward.5} parent=1 // pred_check
      _
    $region23: #{gpt2_forward.5} parent=1 // pred_check_branch
      %200 = sbr.rel (0) target = $region25
    $region24: #{gpt2_forward.5} parent=1 // pred_region
      %s202 = ssub.s32 256, 256
      %203 = vsyncadd [#allocation5], %s202
      %s204 = sshll.u32 [#allocation4], 4
      %s205 = int_to_ptr.vmem [resolvable:$true] %s204
      %210 = dma.vmem_to_hbm [thread:$0]  %s205, 256, %s5, [#allocation5], 128, 128, 8
    $region25: #{gpt2_forward.5} parent=1 // pred_fallthru
      _
    // Predicated region
    $region26: #{gpt2_forward.5} parent=1 // pred_check
      _
    $region27: #{gpt2_forward.5} parent=1 // pred_check_branch
      %212 = sbr.rel (0) target = $region29
    $region28: #{gpt2_forward.5} parent=1 // pred_region
      %213 = dma.done [#allocation3], 256
    $region29: #{gpt2_forward.5} parent=1 // pred_fallthru
      _
    // Predicated region
    $region30: #{gpt2_forward.5} parent=1 // pred_check
      _
    $region31: #{gpt2_forward.5} parent=1 // pred_check_branch
      %215 = sbr.rel (0) target = $region33
    $region32: #{gpt2_forward.5} parent=1 // pred_region
      %216 = dma.done [#allocation5], 256
    $region33: #{gpt2_forward.5} parent=1 // pred_fallthru
      _
    %217 = vsyncpa [#allocation3], 1
    %218 = vsyncpa [#allocation5], 1

// kernel: gpt2_forward.3
$region0: #{gpt2_forward.3}
  #allocation0 [shape = 'u32[]', space=smem, size = 0x4, offset = 0x4, fixed_abs, tag = 'smem constant byte address 0x4 - core index']
  #allocation1 [shape = 'u32[144,128]{1,0:T(1,128)}', space=vmem, size = 0x12000, scoped, tag = 'internal scratch']
  #allocation2 [shape = 'f32[16,32]{1,0:T(8,128)}', space=vmem, size = 0x2000, scoped, tag = 'scratch operand']
  %s0 = inlined_call_operand.vmem [shape: f32[16,32], index: 0, kind: input, shape index: {}]
  %s1 = inlined_call_operand.vmem [shape: f32[1,32], index: 1, kind: input, shape index: {}]
  %s2 = inlined_call_operand.vmem [shape: f32[1,32], index: 2, kind: input, shape index: {}]
  %s3 = inlined_call_operand.vmem [shape: f32[32,96], index: 3, kind: input, shape index: {}]
  %s4 = inlined_call_operand.vmem [shape: f32[1,96], index: 4, kind: input, shape index: {}]
  %s5 = inlined_call_operand.vmem [shape: f32[32,32], index: 5, kind: input, shape index: {}]
  %s6 = inlined_call_operand.vmem [shape: f32[1,32], index: 6, kind: input, shape index: {}]
  %s7 = inlined_call_operand.vmem [shape: f32[1,32], index: 7, kind: input, shape index: {}]
  %s8 = inlined_call_operand.vmem [shape: f32[1,32], index: 8, kind: input, shape index: {}]
  %s9 = inlined_call_operand.vmem [shape: f32[32,128], index: 9, kind: input, shape index: {}]
  %s10 = inlined_call_operand.vmem [shape: f32[1,128], index: 10, kind: input, shape index: {}]
  %s11 = inlined_call_operand.vmem [shape: f32[128,32], index: 11, kind: input, shape index: {}]
  %s12 = inlined_call_operand.vmem [shape: f32[1,32], index: 12, kind: input, shape index: {}]
  %s13 = inlined_call_operand.vmem [shape: f32[2,4,4,8], index: 13, kind: input, shape index: {}]
  %s14 = inlined_call_operand.vmem [shape: f32[2,4,4,8], index: 14, kind: input, shape index: {}]
  %s15 = inlined_call_operand.vmem [shape: f32[2,8,12], index: 15, kind: input, shape index: {}]
  %s16 = inlined_call_operand.vmem [shape: f32[16,32], index: 16, kind: output, shape index: {0}]
  %s17 = inlined_call_operand.vmem [shape: f32[2,4,8,8], index: 17, kind: output, shape index: {1}]
  %s18 = inlined_call_operand.vmem [shape: f32[2,4,8,8], index: 18, kind: output, shape index: {2}]
  %19 = xla_tuple %s16, %s17, %s18
  %s20 = sld [smem:[#allocation0]]
  $region90: #{gpt2_forward.3} parent=0
    _
  %s22 = ssub.s32 1, %s20
  %s23 = scalar_select 0, %s22, %s20
  // Predicated region
  $region2: #{gpt2_forward.3} parent=0 // pred_check
    _
  $region3: #{gpt2_forward.3} parent=0 // pred_check_branch
    %25 = sbr.rel (0) target = $region5
  $region4: #{gpt2_forward.3} parent=0 // pred_region
    _
  $region5: #{gpt2_forward.3} parent=0 // pred_fallthru
    _
  // Predicated region
  $region6: #{gpt2_forward.3} parent=0 // pred_check
    _
  $region7: #{gpt2_forward.3} parent=0 // pred_check_branch
    %27 = sbr.rel (0) target = $region9
  $region8: #{gpt2_forward.3} parent=0 // pred_region
    _
  $region9: #{gpt2_forward.3} parent=0 // pred_fallthru
    _
  // Predicated region
  $region10: #{gpt2_forward.3} parent=0 // pred_check
    _
  $region11: #{gpt2_forward.3} parent=0 // pred_check_branch
    %29 = sbr.rel (0) target = $region13
  $region12: #{gpt2_forward.3} parent=0 // pred_region
    _
  $region13: #{gpt2_forward.3} parent=0 // pred_fallthru
    _
  // Predicated region
  $region14: #{gpt2_forward.3} parent=0 // pred_check
    _
  $region15: #{gpt2_forward.3} parent=0 // pred_check_branch
    %31 = sbr.rel (0) target = $region17
  $region16: #{gpt2_forward.3} parent=0 // pred_region
    _
  $region17: #{gpt2_forward.3} parent=0 // pred_fallthru
    _
  // Predicated region
  $region18: #{gpt2_forward.3} parent=0 // pred_check
    _
  $region19: #{gpt2_forward.3} parent=0 // pred_check_branch
    %33 = sbr.rel (0) target = $region21
  $region20: #{gpt2_forward.3} parent=0 // pred_region
    _
  $region21: #{gpt2_forward.3} parent=0 // pred_fallthru
    _
  // Predicated region
  $region22: #{gpt2_forward.3} parent=0 // pred_check
    _
  $region23: #{gpt2_forward.3} parent=0 // pred_check_branch
    %35 = sbr.rel (0) target = $region25
  $region24: #{gpt2_forward.3} parent=0 // pred_region
    _
  $region25: #{gpt2_forward.3} parent=0 // pred_fallthru
    _
  // Predicated region
  $region26: #{gpt2_forward.3} parent=0 // pred_check
    _
  $region27: #{gpt2_forward.3} parent=0 // pred_check_branch
    %37 = sbr.rel (0) target = $region29
  $region28: #{gpt2_forward.3} parent=0 // pred_region
    _
  $region29: #{gpt2_forward.3} parent=0 // pred_fallthru
    _
  // Predicated region
  $region30: #{gpt2_forward.3} parent=0 // pred_check
    _
  $region31: #{gpt2_forward.3} parent=0 // pred_check_branch
    %39 = sbr.rel (0) target = $region33
  $region32: #{gpt2_forward.3} parent=0 // pred_region
    _
  $region33: #{gpt2_forward.3} parent=0 // pred_fallthru
    _
  // Predicated region
  $region34: #{gpt2_forward.3} parent=0 // pred_check
    _
  $region35: #{gpt2_forward.3} parent=0 // pred_check_branch
    %41 = sbr.rel (0) target = $region37
  $region36: #{gpt2_forward.3} parent=0 // pred_region
    _
  $region37: #{gpt2_forward.3} parent=0 // pred_fallthru
    _
  // Predicated region
  $region38: #{gpt2_forward.3} parent=0 // pred_check
    _
  $region39: #{gpt2_forward.3} parent=0 // pred_check_branch
    %43 = sbr.rel (0) target = $region41
  $region40: #{gpt2_forward.3} parent=0 // pred_region
    _
  $region41: #{gpt2_forward.3} parent=0 // pred_fallthru
    _
  // Predicated region
  $region42: #{gpt2_forward.3} parent=0 // pred_check
    _
  $region43: #{gpt2_forward.3} parent=0 // pred_check_branch
    %45 = sbr.rel (0) target = $region45
  $region44: #{gpt2_forward.3} parent=0 // pred_region
    _
  $region45: #{gpt2_forward.3} parent=0 // pred_fallthru
    _
  // Predicated region
  $region46: #{gpt2_forward.3} parent=0 // pred_check
    _
  $region47: #{gpt2_forward.3} parent=0 // pred_check_branch
    %47 = sbr.rel (0) target = $region49
  $region48: #{gpt2_forward.3} parent=0 // pred_region
    _
  $region49: #{gpt2_forward.3} parent=0 // pred_fallthru
    _
  // Predicated region
  $region50: #{gpt2_forward.3} parent=0 // pred_check
    _
  $region51: #{gpt2_forward.3} parent=0 // pred_check_branch
    %49 = sbr.rel (0) target = $region53
  $region52: #{gpt2_forward.3} parent=0 // pred_region
    _
  $region53: #{gpt2_forward.3} parent=0 // pred_fallthru
    _
  // Predicated region
  $region54: #{gpt2_forward.3} parent=0 // pred_check
    _
  $region55: #{gpt2_forward.3} parent=0 // pred_check_branch
    %51 = sbr.rel (0) target = $region57
  $region56: #{gpt2_forward.3} parent=0 // pred_region
    _
  $region57: #{gpt2_forward.3} parent=0 // pred_fallthru
    _
  // Predicated region
  $region58: #{gpt2_forward.3} parent=0 // pred_check
    _
  $region59: #{gpt2_forward.3} parent=0 // pred_check_branch
    %53 = sbr.rel (0) target = $region61
  $region60: #{gpt2_forward.3} parent=0 // pred_region
    _
  $region61: #{gpt2_forward.3} parent=0 // pred_fallthru
    _
  // Predicated region
  $region62: #{gpt2_forward.3} parent=0 // pred_check
    _
  $region63: #{gpt2_forward.3} parent=0 // pred_check_branch
    %55 = sbr.rel (0) target = $region65
  $region64: #{gpt2_forward.3} parent=0 // pred_region
    _
  $region65: #{gpt2_forward.3} parent=0 // pred_fallthru
    _
  %v56 = vld [vmem:[%s0] sm:$0xff]
  %v57 = vld [vmem:[%s0 + $0x8] sm:$0xff]
  %v58 = vld [vmem:[%s1] sm:$0x1]
  %v59 = vld [vmem:[%s2] sm:$0x1]
  %vm60 = vcmask 261120
  %v61 = vsel %vm60, %v56, 0.0
  %62 = vadd.xlane.f32.xlu0 %v61
  %v63 = vpop.xlane.xlu0 %62
  %v64 = vsel %vm60, %v57, 0.0
  %65 = vadd.xlane.f32.xlu0 %v64
  %v66 = vpop.xlane.xlu0 %65
  %v67 = vrcp.pop 32.0
  %v68 = vmul.f32 %v63, %v67
  %v69 = vmul.f32 %v66, %v67
  %v70 = vsub.f32 %v56, %v68
  %v71 = vsub.f32 %v57, %v69
  %v72 = vmul.f32 %v70, %v70
  %v73 = vmul.f32 %v71, %v71
  %v74 = vsel %vm60, %v72, 0.0
  %75 = vadd.xlane.f32.xlu0 %v74
  %v76 = vpop.xlane.xlu0 %75
  %v77 = vsel %vm60, %v73, 0.0
  %78 = vadd.xlane.f32.xlu0 %v77
  %v79 = vpop.xlane.xlu0 %78
  %v80 = vmul.f32 %v76, %v67
  %v81 = vmul.f32 %v79, %v67
  %v82 = vadd.f32 %v80, 1e-05
  %v83 = vadd.f32 %v81, 1e-05
  %v84 = vrsqrt.pop %v82
  %v85 = vrsqrt.pop %v83
  %v86 = vmul.f32 %v70, %v84
  %v87 = vmul.f32 %v71, %v85
  %v89 = vlaneseq
  %v90 = vshrl.u32 %v89, 7
  %v91 = vsub.s32 0, %v90
  %v92 = vrot.slane %v58, %v91
  %v94 = vmul.f32 %v86, %v92
  %v95 = vmul.f32 %v87, %v92
  %v97 = vlaneseq
  %v98 = vshrl.u32 %v97, 7
  %v99 = vsub.s32 0, %v98
  %v100 = vrot.slane %v59, %v99
  %v102 = vadd.f32 %v94, %v100
  %v103 = vadd.f32 %v95, %v100
  %v104 = vld [vmem:[%s3] sm:$0xff]
  %v105 = vld [vmem:[%s3 + $0x8] sm:$0xff]
  %v106 = vld [vmem:[%s3 + $0x10] sm:$0xff]
  %v107 = vld [vmem:[%s3 + $0x18] sm:$0xff]
  %v108 = vld [vmem:[%s4] sm:$0x1]
  %v110 = vlaneseq
  %v111 = vshrl.u32 %v110, 7
  %v112 = vsub.s32 0, %v111
  %v113 = vrot.slane %v108, %v112
  %v116 = vsel %vm60, %v102, 0
  %v119 = vsel %vm60, %v103, 0
  %121 = vmatprep.subr.mxu0 0.0
  %122 = vmatpush1.msra.mxu0 %v104
  %123 = vmatprep.subr.mxu0 0.0
  %124 = vmatpush1.msra.mxu0 %v105
  %125 = vmatprep.subr.mxu0 0.0
  %126 = vmatpush1.msra.mxu0 %v106
  %127 = vmatprep.subr.mxu0 0.0
  %128 = vmatpush1.msra.mxu0 %v107
  %129 = vmatprep.subr.mxu0 0.0
  %130 = vmatpush1.msra.mxu0 0.0
  %131 = vmatprep.subr.mxu0 0.0
  %132 = vmatpush1.msra.mxu0 0.0
  %133 = vmatprep.subr.mxu0 0.0
  %134 = vmatpush1.msra.mxu0 0.0
  %135 = vmatprep.subr.mxu0 0.0
  %136 = vmatpush1.msra.mxu0 0.0
  %137 = vmatprep.subr.mxu0 0.0
  %138 = vmatpush1.msra.mxu0 0.0
  %139 = vmatprep.subr.mxu0 0.0
  %140 = vmatpush1.msra.mxu0 0.0
  %141 = vmatprep.subr.mxu0 0.0
  %142 = vmatpush1.msra.mxu0 0.0
  %143 = vmatprep.subr.mxu0 0.0
  %144 = vmatpush1.msra.mxu0 0.0
  %145 = vmatprep.subr.mxu0 0.0
  %146 = vmatpush1.msra.mxu0 0.0
  %147 = vmatprep.subr.mxu0 0.0
  %148 = vmatpush1.msra.mxu0 0.0
  %149 = vmatprep.subr.mxu0 0.0
  %150 = vmatpush1.msra.mxu0 0.0
  %151 = vmatprep.subr.mxu0 0.0
  %152 = vmatpush1.msra.mxu0 0.0
  %153 = vmatprep.subr.mxu0 0.0
  %154 = vmatpush1.msra.mxu0 0.0
  %155 = vmatprep.subr.mxu0 0.0
  %156 = vmatpush1.msra.mxu0 0.0
  %157 = vmatprep.subr.mxu0 0.0
  %158 = vmatpush1.msra.mxu0 0.0
  %159 = vmatprep.subr.mxu0 0.0
  %160 = vmatpush1.msra.mxu0 0.0
  %161 = vmatprep.subr.mxu0 0.0
  %162 = vmatpush1.msra.mxu0 0.0
  %163 = vmatprep.subr.mxu0 0.0
  %164 = vmatpush1.msra.mxu0 0.0
  %165 = vmatprep.subr.mxu0 0.0
  %166 = vmatpush1.msra.mxu0 0.0
  %167 = vmatprep.subr.mxu0 0.0
  %168 = vmatpush1.msra.mxu0 0.0
  %169 = vmatprep.subr.mxu0 0.0
  %170 = vmatpush1.msra.mxu0 0.0
  %171 = vmatprep.subr.mxu0 0.0
  %172 = vmatpush1.msra.mxu0 0.0
  %173 = vmatprep.subr.mxu0 0.0
  %174 = vmatpush1.msra.mxu0 0.0
  %175 = vmatprep.subr.mxu0 0.0
  %176 = vmatpush1.msra.mxu0 0.0
  %177 = vmatprep.subr.mxu0 0.0
  %178 = vmatpush1.msra.mxu0 0.0
  %179 = vmatprep.subr.mxu0 0.0
  %180 = vmatpush1.msra.mxu0 0.0
  %181 = vmatprep.subr.mxu0 0.0
  %182 = vmatpush1.msra.mxu0 0.0
  %183 = vmatprep.subr.mxu0 0.0
  %184 = vmatpush1.msra.mxu0 0.0
  %185 = vmatprep.mubr.f32.mxu0 0.0
  %186 = vmatmul.mubr.f32.gmra.mrb[0].mxu0 %v116
  %v187 = vpop.f32.mrb[0].mxu0
  %v188 = vadd.f32 %v113, %v187
  %v189 = vpop.f32.mrb[0].mxu0
  %190 = vmatprep.mubr.f32.mxu0 0.0
  %191 = vmatmul.mubr.f32.gmra.mrb[0].mxu0 %v119
  %v192 = vpop.f32.mrb[0].mxu0
  %v193 = vadd.f32 %v113, %v192
  %v194 = vpop.f32.mrb[0].mxu0
  %195 = vdwg.mxu0
  %v196 = vld [vmem:[%s5] sm:$0xff]
  %v197 = vld [vmem:[%s5 + $0x8] sm:$0xff]
  %v198 = vld [vmem:[%s5 + $0x10] sm:$0xff]
  %v199 = vld [vmem:[%s5 + $0x18] sm:$0xff]
  %v200 = vld [vmem:[%s15] sm:$0xff]
  %202 = vrot.lane.b32.xlu0 %v188, 96
  %v203 = vpop.permute.xlu0 %202
  %vm205 = vcmask 64512
  %206 = vst.msk [vmem:[%s17] sm:$0xff] %vm205, %v203
  %207 = vrot.lane.b32.xlu0 %v188, 64
  %v208 = vpop.permute.xlu0 %207
  %210 = vst.msk [vmem:[%s18] sm:$0xff] %vm205, %v208
  %v211 = vld [vmem:[%s13] sm:$0xf]
  %v212 = vld [vmem:[%s14] sm:$0xf]
  %v213 = vsel %vm205, %v188, 0
  %v216 = vsel %vm205, %v211, 0
  %218 = vmatprep.subr.mxu0 0.0
  %219 = vmatpush1.xpose.msra.mxu0 %v216
  %220 = vmatprep.subr.mxu0 0.0
  %221 = vmatpush1.xpose.msra.mxu0 0.0
  %222 = vmatprep.subr.mxu0 0.0
  %223 = vmatpush1.xpose.msra.mxu0 0.0
  %224 = vmatprep.subr.mxu0 0.0
  %225 = vmatpush1.xpose.msra.mxu0 0.0
  %226 = vmatprep.subr.mxu0 0.0
  %227 = vmatpush1.xpose.msra.mxu0 0.0
  %228 = vmatprep.subr.mxu0 0.0
  %229 = vmatpush1.xpose.msra.mxu0 0.0
  %230 = vmatprep.subr.mxu0 0.0
  %231 = vmatpush1.xpose.msra.mxu0 0.0
  %232 = vmatprep.subr.mxu0 0.0
  %233 = vmatpush1.xpose.msra.mxu0 0.0
  %234 = vmatprep.subr.mxu0 0.0
  %235 = vmatpush1.xpose.msra.mxu0 0.0
  %236 = vmatprep.subr.mxu0 0.0
  %237 = vmatpush1.xpose.msra.mxu0 0.0
  %238 = vmatprep.subr.mxu0 0.0
  %239 = vmatpush1.xpose.msra.mxu0 0.0
  %240 = vmatprep.subr.mxu0 0.0
  %241 = vmatpush1.xpose.msra.mxu0 0.0
  %242 = vmatprep.subr.mxu0 0.0
  %243 = vmatpush1.xpose.msra.mxu0 0.0
  %244 = vmatprep.subr.mxu0 0.0
  %245 = vmatpush1.xpose.msra.mxu0 0.0
  %246 = vmatprep.subr.mxu0 0.0
  %247 = vmatpush1.xpose.msra.mxu0 0.0
  %248 = vmatprep.subr.mxu0 0.0
  %249 = vmatpush1.xpose.msra.mxu0 0.0
  %250 = vmatprep.subr.mxu0 0.0
  %251 = vmatpush1.xpose.msra.mxu0 0.0
  %252 = vmatprep.subr.mxu0 0.0
  %253 = vmatpush1.xpose.msra.mxu0 0.0
  %254 = vmatprep.subr.mxu0 0.0
  %255 = vmatpush1.xpose.msra.mxu0 0.0
  %256 = vmatprep.subr.mxu0 0.0
  %257 = vmatpush1.xpose.msra.mxu0 0.0
  %258 = vmatprep.subr.mxu0 0.0
  %259 = vmatpush1.xpose.msra.mxu0 0.0
  %260 = vmatprep.subr.mxu0 0.0
  %261 = vmatpush1.xpose.msra.mxu0 0.0
  %262 = vmatprep.subr.mxu0 0.0
  %263 = vmatpush1.xpose.msra.mxu0 0.0
  %264 = vmatprep.subr.mxu0 0.0
  %265 = vmatpush1.xpose.msra.mxu0 0.0
  %266 = vmatprep.subr.mxu0 0.0
  %267 = vmatpush1.xpose.msra.mxu0 0.0
  %268 = vmatprep.subr.mxu0 0.0
  %269 = vmatpush1.xpose.msra.mxu0 0.0
  %270 = vmatprep.subr.mxu0 0.0
  %271 = vmatpush1.xpose.msra.mxu0 0.0
  %272 = vmatprep.subr.mxu0 0.0
  %273 = vmatpush1.xpose.msra.mxu0 0.0
  %274 = vmatprep.subr.mxu0 0.0
  %275 = vmatpush1.xpose.msra.mxu0 0.0
  %276 = vmatprep.subr.mxu0 0.0
  %277 = vmatpush1.xpose.msra.mxu0 0.0
  %278 = vmatprep.subr.mxu0 0.0
  %279 = vmatpush1.xpose.msra.mxu0 0.0
  %280 = vmatprep.subr.mxu0 0.0
  %281 = vmatpush1.xpose.msra.mxu0 0.0
  %282 = vmatprep.mubr.f32.mxu0 0.0
  %283 = vmatmul.mubr.f32.gmra.mrb[0].mxu0 %v213
  %v284 = vpop.f32.mrb[0].mxu0
  %v285 = vadd.f32 0.0, %v284
  %v286 = vpop.f32.mrb[0].mxu0
  %287 = vdwg.mxu0
  %v288 = vmul.f32 %v285, 0.35355338
  %v289 = vadd.f32 %v288, %v200
  %v290 = vsel %vm205, %v203, 0
  %292 = vmatprep.subr.mxu0 0.0
  %293 = vmatpush1.xpose.msra.mxu0 %v290
  %294 = vmatprep.subr.mxu0 0.0
  %295 = vmatpush1.xpose.msra.mxu0 0.0
  %296 = vmatprep.subr.mxu0 0.0
  %297 = vmatpush1.xpose.msra.mxu0 0.0
  %298 = vmatprep.subr.mxu0 0.0
  %299 = vmatpush1.xpose.msra.mxu0 0.0
  %300 = vmatprep.subr.mxu0 0.0
  %301 = vmatpush1.xpose.msra.mxu0 0.0
  %302 = vmatprep.subr.mxu0 0.0
  %303 = vmatpush1.xpose.msra.mxu0 0.0
  %304 = vmatprep.subr.mxu0 0.0
  %305 = vmatpush1.xpose.msra.mxu0 0.0
  %306 = vmatprep.subr.mxu0 0.0
  %307 = vmatpush1.xpose.msra.mxu0 0.0
  %308 = vmatprep.subr.mxu0 0.0
  %309 = vmatpush1.xpose.msra.mxu0 0.0
  %310 = vmatprep.subr.mxu0 0.0
  %311 = vmatpush1.xpose.msra.mxu0 0.0
  %312 = vmatprep.subr.mxu0 0.0
  %313 = vmatpush1.xpose.msra.mxu0 0.0
  %314 = vmatprep.subr.mxu0 0.0
  %315 = vmatpush1.xpose.msra.mxu0 0.0
  %316 = vmatprep.subr.mxu0 0.0
  %317 = vmatpush1.xpose.msra.mxu0 0.0
  %318 = vmatprep.subr.mxu0 0.0
  %319 = vmatpush1.xpose.msra.mxu0 0.0
  %320 = vmatprep.subr.mxu0 0.0
  %321 = vmatpush1.xpose.msra.mxu0 0.0
  %322 = vmatprep.subr.mxu0 0.0
  %323 = vmatpush1.xpose.msra.mxu0 0.0
  %324 = vmatprep.subr.mxu0 0.0
  %325 = vmatpush1.xpose.msra.mxu0 0.0
  %326 = vmatprep.subr.mxu0 0.0
  %327 = vmatpush1.xpose.msra.mxu0 0.0
  %328 = vmatprep.subr.mxu0 0.0
  %329 = vmatpush1.xpose.msra.mxu0 0.0
  %330 = vmatprep.subr.mxu0 0.0
  %331 = vmatpush1.xpose.msra.mxu0 0.0
  %332 = vmatprep.subr.mxu0 0.0
  %333 = vmatpush1.xpose.msra.mxu0 0.0
  %334 = vmatprep.subr.mxu0 0.0
  %335 = vmatpush1.xpose.msra.mxu0 0.0
  %336 = vmatprep.subr.mxu0 0.0
  %337 = vmatpush1.xpose.msra.mxu0 0.0
  %338 = vmatprep.subr.mxu0 0.0
  %339 = vmatpush1.xpose.msra.mxu0 0.0
  %340 = vmatprep.subr.mxu0 0.0
  %341 = vmatpush1.xpose.msra.mxu0 0.0
  %342 = vmatprep.subr.mxu0 0.0
  %343 = vmatpush1.xpose.msra.mxu0 0.0
  %344 = vmatprep.subr.mxu0 0.0
  %345 = vmatpush1.xpose.msra.mxu0 0.0
  %346 = vmatprep.subr.mxu0 0.0
  %347 = vmatpush1.xpose.msra.mxu0 0.0
  %348 = vmatprep.subr.mxu0 0.0
  %349 = vmatpush1.xpose.msra.mxu0 0.0
  %350 = vmatprep.subr.mxu0 0.0
  %351 = vmatpush1.xpose.msra.mxu0 0.0
  %352 = vmatprep.subr.mxu0 0.0
  %353 = vmatpush1.xpose.msra.mxu0 0.0
  %354 = vmatprep.subr.mxu0 0.0
  %355 = vmatpush1.xpose.msra.mxu0 0.0
  %356 = vmatprep.mubr.f32.mxu0 0.0
  %357 = vmatmul.mubr.f32.gmra.mrb[0].mxu0 %v213
  %v358 = vpop.f32.mrb[0].mxu0
  %v359 = vadd.f32 0.0, %v358
  %v360 = vpop.f32.mrb[0].mxu0
  %361 = vdwg.mxu0
  %v362 = vmul.f32 %v359, 0.35355338
  %364 = vrot.lane.b32.xlu0 %v200, 124
  %v365 = vpop.permute.xlu0 %364
  %v367 = vadd.f32 %v362, %v365
  %vm368 = vcmask 31744
  %v369 = vsel %vm368, %v289, -inf
  %370 = vmax.xlane.f32.xlu0 %v369
  %v371 = vpop.xlane.xlu0 %370
  %v372 = vsel %vm205, %v367, -inf
  %373 = vmax.xlane.f32.xlu0 %v372
  %v374 = vpop.xlane.xlu0 %373
  %v375 = vmax.f32 %v371, %v374
  %v376 = vsub.f32 %v289, %v375
  %v377 = vmul.f32 %v376, 1.442695
  %v378 = vpow.pop %v377
  %v379 = vsub.f32 %v367, %v375
  %v380 = vmul.f32 %v379, 1.442695
  %v381 = vpow.pop %v380
  %v382 = vsel %vm368, %v378, 0.0
  %383 = vadd.xlane.f32.xlu0 %v382
  %v384 = vpop.xlane.xlu0 %383
  %v385 = vsel %vm205, %v381, 0.0
  %386 = vadd.xlane.f32.xlu0 %v385
  %v387 = vpop.xlane.xlu0 %386
  %v388 = vadd.f32 %v384, %v387
  %v389 = vrcp.pop %v388
  %v391 = vsel %vm205, %v381, 0
  %393 = vmatprep.subr.mxu0 0.0
  %394 = vmatpush1.msra.mxu0 %v208
  %395 = vmatprep.subr.mxu0 0.0
  %396 = vmatpush1.msra.mxu0 0.0
  %397 = vmatprep.subr.mxu0 0.0
  %398 = vmatpush1.msra.mxu0 0.0
  %399 = vmatprep.subr.mxu0 0.0
  %400 = vmatpush1.msra.mxu0 0.0
  %401 = vmatprep.subr.mxu0 0.0
  %402 = vmatpush1.msra.mxu0 0.0
  %403 = vmatprep.subr.mxu0 0.0
  %404 = vmatpush1.msra.mxu0 0.0
  %405 = vmatprep.subr.mxu0 0.0
  %406 = vmatpush1.msra.mxu0 0.0
  %407 = vmatprep.subr.mxu0 0.0
  %408 = vmatpush1.msra.mxu0 0.0
  %409 = vmatprep.subr.mxu0 0.0
  %410 = vmatpush1.msra.mxu0 0.0
  %411 = vmatprep.subr.mxu0 0.0
  %412 = vmatpush1.msra.mxu0 0.0
  %413 = vmatprep.subr.mxu0 0.0
  %414 = vmatpush1.msra.mxu0 0.0
  %415 = vmatprep.subr.mxu0 0.0
  %416 = vmatpush1.msra.mxu0 0.0
  %417 = vmatprep.subr.mxu0 0.0
  %418 = vmatpush1.msra.mxu0 0.0
  %419 = vmatprep.subr.mxu0 0.0
  %420 = vmatpush1.msra.mxu0 0.0
  %421 = vmatprep.subr.mxu0 0.0
  %422 = vmatpush1.msra.mxu0 0.0
  %423 = vmatprep.subr.mxu0 0.0
  %424 = vmatpush1.msra.mxu0 0.0
  %425 = vmatprep.subr.mxu0 0.0
  %426 = vmatpush1.msra.mxu0 0.0
  %427 = vmatprep.subr.mxu0 0.0
  %428 = vmatpush1.msra.mxu0 0.0
  %429 = vmatprep.subr.mxu0 0.0
  %430 = vmatpush1.msra.mxu0 0.0
  %431 = vmatprep.subr.mxu0 0.0
  %432 = vmatpush1.msra.mxu0 0.0
  %433 = vmatprep.subr.mxu0 0.0
  %434 = vmatpush1.msra.mxu0 0.0
  %435 = vmatprep.subr.mxu0 0.0
  %436 = vmatpush1.msra.mxu0 0.0
  %437 = vmatprep.subr.mxu0 0.0
  %438 = vmatpush1.msra.mxu0 0.0
  %439 = vmatprep.subr.mxu0 0.0
  %440 = vmatpush1.msra.mxu0 0.0
  %441 = vmatprep.subr.mxu0 0.0
  %442 = vmatpush1.msra.mxu0 0.0
  %443 = vmatprep.subr.mxu0 0.0
  %444 = vmatpush1.msra.mxu0 0.0
  %445 = vmatprep.subr.mxu0 0.0
  %446 = vmatpush1.msra.mxu0 0.0
  %447 = vmatprep.subr.mxu0 0.0
  %448 = vmatpush1.msra.mxu0 0.0
  %449 = vmatprep.subr.mxu0 0.0
  %450 = vmatpush1.msra.mxu0 0.0
  %451 = vmatprep.subr.mxu0 0.0
  %452 = vmatpush1.msra.mxu0 0.0
  %453 = vmatprep.subr.mxu0 0.0
  %454 = vmatpush1.msra.mxu0 0.0
  %455 = vmatprep.subr.mxu0 0.0
  %456 = vmatpush1.msra.mxu0 0.0
  %457 = vmatprep.mubr.f32.mxu0 0.0
  %458 = vmatmul.mubr.f32.gmra.mrb[0].mxu0 %v391
  %v459 = vpop.f32.mrb[0].mxu0
  %v460 = vadd.f32 0.0, %v459
  %v461 = vpop.f32.mrb[0].mxu0
  %462 = vdwg.mxu0
  %v464 = vsel %vm368, %v378, 0
  %vm466 = vcmask 1043456
  %v468 = vsel %vm466, %v212, 0
  %470 = vmatprep.subr.mxu0 0.0
  %471 = vmatpush1.msra.mxu0 %v468
  %472 = vmatprep.subr.mxu0 0.0
  %473 = vmatpush1.msra.mxu0 0.0
  %474 = vmatprep.subr.mxu0 0.0
  %475 = vmatpush1.msra.mxu0 0.0
  %476 = vmatprep.subr.mxu0 0.0
  %477 = vmatpush1.msra.mxu0 0.0
  %478 = vmatprep.subr.mxu0 0.0
  %479 = vmatpush1.msra.mxu0 0.0
  %480 = vmatprep.subr.mxu0 0.0
  %481 = vmatpush1.msra.mxu0 0.0
  %482 = vmatprep.subr.mxu0 0.0
  %483 = vmatpush1.msra.mxu0 0.0
  %484 = vmatprep.subr.mxu0 0.0
  %485 = vmatpush1.msra.mxu0 0.0
  %486 = vmatprep.subr.mxu0 0.0
  %487 = vmatpush1.msra.mxu0 0.0
  %488 = vmatprep.subr.mxu0 0.0
  %489 = vmatpush1.msra.mxu0 0.0
  %490 = vmatprep.subr.mxu0 0.0
  %491 = vmatpush1.msra.mxu0 0.0
  %492 = vmatprep.subr.mxu0 0.0
  %493 = vmatpush1.msra.mxu0 0.0
  %494 = vmatprep.subr.mxu0 0.0
  %495 = vmatpush1.msra.mxu0 0.0
  %496 = vmatprep.subr.mxu0 0.0
  %497 = vmatpush1.msra.mxu0 0.0
  %498 = vmatprep.subr.mxu0 0.0
  %499 = vmatpush1.msra.mxu0 0.0
  %500 = vmatprep.subr.mxu0 0.0
  %501 = vmatpush1.msra.mxu0 0.0
  %502 = vmatprep.subr.mxu0 0.0
  %503 = vmatpush1.msra.mxu0 0.0
  %504 = vmatprep.subr.mxu0 0.0
  %505 = vmatpush1.msra.mxu0 0.0
  %506 = vmatprep.subr.mxu0 0.0
  %507 = vmatpush1.msra.mxu0 0.0
  %508 = vmatprep.subr.mxu0 0.0
  %509 = vmatpush1.msra.mxu0 0.0
  %510 = vmatprep.subr.mxu0 0.0
  %511 = vmatpush1.msra.mxu0 0.0
  %512 = vmatprep.subr.mxu0 0.0
  %513 = vmatpush1.msra.mxu0 0.0
  %514 = vmatprep.subr.mxu0 0.0
  %515 = vmatpush1.msra.mxu0 0.0
  %516 = vmatprep.subr.mxu0 0.0
  %517 = vmatpush1.msra.mxu0 0.0
  %518 = vmatprep.subr.mxu0 0.0
  %519 = vmatpush1.msra.mxu0 0.0
  %520 = vmatprep.subr.mxu0 0.0
  %521 = vmatpush1.msra.mxu0 0.0
  %522 = vmatprep.subr.mxu0 0.0
  %523 = vmatpush1.msra.mxu0 0.0
  %524 = vmatprep.subr.mxu0 0.0
  %525 = vmatpush1.msra.mxu0 0.0
  %526 = vmatprep.subr.mxu0 0.0
  %527 = vmatpush1.msra.mxu0 0.0
  %528 = vmatprep.subr.mxu0 0.0
  %529 = vmatpush1.msra.mxu0 0.0
  %530 = vmatprep.subr.mxu0 0.0
  %531 = vmatpush1.msra.mxu0 0.0
  %532 = vmatprep.subr.mxu0 0.0
  %533 = vmatpush1.msra.mxu0 0.0
  %534 = vmatprep.mubr.f32.mxu0 0.0
  %535 = vmatmul.mubr.f32.gmra.mrb[0].mxu0 %v464
  %v536 = vpop.f32.mrb[0].mxu0
  %v537 = vadd.f32 %v460, %v536
  %v538 = vpop.f32.mrb[0].mxu0
  %539 = vdwg.mxu0
  %v540 = vmul.f32 %v537, %v389
  %541 = vrot.lane.b32.xlu0 %v188, 88
  %v542 = vpop.permute.xlu0 %541
  %s544 = scalar_lea.vmem %s17, 8
  %545 = vst.msk [vmem:[%s544] sm:$0xff] %vm205, %v542
  %546 = vrot.lane.b32.xlu0 %v188, 56
  %v547 = vpop.permute.xlu0 %546
  %s549 = scalar_lea.vmem %s18, 8
  %550 = vst.msk [vmem:[%s549] sm:$0xff] %vm205, %v547
  %s551 = scalar_lea.vmem %s13, 4
  %v552 = vld [vmem:[%s551] sm:$0xf]
  %s553 = scalar_lea.vmem %s14, 4
  %v554 = vld [vmem:[%s553] sm:$0xf]
  %555 = vrot.lane.b32.xlu0 %v188, 120
  %v556 = vpop.permute.xlu0 %555
  %v557 = vsel %vm205, %v556, 0
  %v560 = vsel %vm205, %v552, 0
  %562 = vmatprep.subr.mxu0 0.0
  %563 = vmatpush1.xpose.msra.mxu0 %v560
  %564 = vmatprep.subr.mxu0 0.0
  %565 = vmatpush1.xpose.msra.mxu0 0.0
  %566 = vmatprep.subr.mxu0 0.0
  %567 = vmatpush1.xpose.msra.mxu0 0.0
  %568 = vmatprep.subr.mxu0 0.0
  %569 = vmatpush1.xpose.msra.mxu0 0.0
  %570 = vmatprep.subr.mxu0 0.0
  %571 = vmatpush1.xpose.msra.mxu0 0.0
  %572 = vmatprep.subr.mxu0 0.0
  %573 = vmatpush1.xpose.msra.mxu0 0.0
  %574 = vmatprep.subr.mxu0 0.0
  %575 = vmatpush1.xpose.msra.mxu0 0.0
  %576 = vmatprep.subr.mxu0 0.0
  %577 = vmatpush1.xpose.msra.mxu0 0.0
  %578 = vmatprep.subr.mxu0 0.0
  %579 = vmatpush1.xpose.msra.mxu0 0.0
  %580 = vmatprep.subr.mxu0 0.0
  %581 = vmatpush1.xpose.msra.mxu0 0.0
  %582 = vmatprep.subr.mxu0 0.0
  %583 = vmatpush1.xpose.msra.mxu0 0.0
  %584 = vmatprep.subr.mxu0 0.0
  %585 = vmatpush1.xpose.msra.mxu0 0.0
  %586 = vmatprep.subr.mxu0 0.0
  %587 = vmatpush1.xpose.msra.mxu0 0.0
  %588 = vmatprep.subr.mxu0 0.0
  %589 = vmatpush1.xpose.msra.mxu0 0.0
  %590 = vmatprep.subr.mxu0 0.0
  %591 = vmatpush1.xpose.msra.mxu0 0.0
  %592 = vmatprep.subr.mxu0 0.0
  %593 = vmatpush1.xpose.msra.mxu0 0.0
  %594 = vmatprep.subr.mxu0 0.0
  %595 = vmatpush1.xpose.msra.mxu0 0.0
  %596 = vmatprep.subr.mxu0 0.0
  %597 = vmatpush1.xpose.msra.mxu0 0.0
  %598 = vmatprep.subr.mxu0 0.0
  %599 = vmatpush1.xpose.msra.mxu0 0.0
  %600 = vmatprep.subr.mxu0 0.0
  %601 = vmatpush1.xpose.msra.mxu0 0.0
  %602 = vmatprep.subr.mxu0 0.0
  %603 = vmatpush1.xpose.msra.mxu0 0.0
  %604 = vmatprep.subr.mxu0 0.0
  %605 = vmatpush1.xpose.msra.mxu0 0.0
  %606 = vmatprep.subr.mxu0 0.0
  %607 = vmatpush1.xpose.msra.mxu0 0.0
  %608 = vmatprep.subr.mxu0 0.0
  %609 = vmatpush1.xpose.msra.mxu0 0.0
  %610 = vmatprep.subr.mxu0 0.0
  %611 = vmatpush1.xpose.msra.mxu0 0.0
  %612 = vmatprep.subr.mxu0 0.0
  %613 = vmatpush1.xpose.msra.mxu0 0.0
  %614 = vmatprep.subr.mxu0 0.0
  %615 = vmatpush1.xpose.msra.mxu0 0.0
  %616 = vmatprep.subr.mxu0 0.0
  %617 = vmatpush1.xpose.msra.mxu0 0.0
  %618 = vmatprep.subr.mxu0 0.0
  %619 = vmatpush1.xpose.msra.mxu0 0.0
  %620 = vmatprep.subr.mxu0 0.0
  %621 = vmatpush1.xpose.msra.mxu0 0.0
  %622 = vmatprep.subr.mxu0 0.0
  %623 = vmatpush1.xpose.msra.mxu0 0.0
  %624 = vmatprep.subr.mxu0 0.0
  %625 = vmatpush1.xpose.msra.mxu0 0.0
  %626 = vmatprep.mubr.f32.mxu0 0.0
  %627 = vmatmul.mubr.f32.gmra.mrb[0].mxu0 %v557
  %v628 = vpop.f32.mrb[0].mxu0
  %v629 = vadd.f32 0.0, %v628
  %v630 = vpop.f32.mrb[0].mxu0
  %631 = vdwg.mxu0
  %v632 = vmul.f32 %v629, 0.35355338
  %v633 = vadd.f32 %v632, %v200
  %v634 = vsel %vm205, %v542, 0
  %636 = vmatprep.subr.mxu0 0.0
  %637 = vmatpush1.xpose.msra.mxu0 %v634
  %638 = vmatprep.subr.mxu0 0.0
  %639 = vmatpush1.xpose.msra.mxu0 0.0
  %640 = vmatprep.subr.mxu0 0.0
  %641 = vmatpush1.xpose.msra.mxu0 0.0
  %642 = vmatprep.subr.mxu0 0.0
  %643 = vmatpush1.xpose.msra.mxu0 0.0
  %644 = vmatprep.subr.mxu0 0.0
  %645 = vmatpush1.xpose.msra.mxu0 0.0
  %646 = vmatprep.subr.mxu0 0.0
  %647 = vmatpush1.xpose.msra.mxu0 0.0
  %648 = vmatprep.subr.mxu0 0.0
  %649 = vmatpush1.xpose.msra.mxu0 0.0
  %650 = vmatprep.subr.mxu0 0.0
  %651 = vmatpush1.xpose.msra.mxu0 0.0
  %652 = vmatprep.subr.mxu0 0.0
  %653 = vmatpush1.xpose.msra.mxu0 0.0
  %654 = vmatprep.subr.mxu0 0.0
  %655 = vmatpush1.xpose.msra.mxu0 0.0
  %656 = vmatprep.subr.mxu0 0.0
  %657 = vmatpush1.xpose.msra.mxu0 0.0
  %658 = vmatprep.subr.mxu0 0.0
  %659 = vmatpush1.xpose.msra.mxu0 0.0
  %660 = vmatprep.subr.mxu0 0.0
  %661 = vmatpush1.xpose.msra.mxu0 0.0
  %662 = vmatprep.subr.mxu0 0.0
  %663 = vmatpush1.xpose.msra.mxu0 0.0
  %664 = vmatprep.subr.mxu0 0.0
  %665 = vmatpush1.xpose.msra.mxu0 0.0
  %666 = vmatprep.subr.mxu0 0.0
  %667 = vmatpush1.xpose.msra.mxu0 0.0
  %668 = vmatprep.subr.mxu0 0.0
  %669 = vmatpush1.xpose.msra.mxu0 0.0
  %670 = vmatprep.subr.mxu0 0.0
  %671 = vmatpush1.xpose.msra.mxu0 0.0
  %672 = vmatprep.subr.mxu0 0.0
  %673 = vmatpush1.xpose.msra.mxu0 0.0
  %674 = vmatprep.subr.mxu0 0.0
  %675 = vmatpush1.xpose.msra.mxu0 0.0
  %676 = vmatprep.subr.mxu0 0.0
  %677 = vmatpush1.xpose.msra.mxu0 0.0
  %678 = vmatprep.subr.mxu0 0.0
  %679 = vmatpush1.xpose.msra.mxu0 0.0
  %680 = vmatprep.subr.mxu0 0.0
  %681 = vmatpush1.xpose.msra.mxu0 0.0
  %682 = vmatprep.subr.mxu0 0.0
  %683 = vmatpush1.xpose.msra.mxu0 0.0
  %684 = vmatprep.subr.mxu0 0.0
  %685 = vmatpush1.xpose.msra.mxu0 0.0
  %686 = vmatprep.subr.mxu0 0.0
  %687 = vmatpush1.xpose.msra.mxu0 0.0
  %688 = vmatprep.subr.mxu0 0.0
  %689 = vmatpush1.xpose.msra.mxu0 0.0
  %690 = vmatprep.subr.mxu0 0.0
  %691 = vmatpush1.xpose.msra.mxu0 0.0
  %692 = vmatprep.subr.mxu0 0.0
  %693 = vmatpush1.xpose.msra.mxu0 0.0
  %694 = vmatprep.subr.mxu0 0.0
  %695 = vmatpush1.xpose.msra.mxu0 0.0
  %696 = vmatprep.subr.mxu0 0.0
  %697 = vmatpush1.xpose.msra.mxu0 0.0
  %698 = vmatprep.subr.mxu0 0.0
  %699 = vmatpush1.xpose.msra.mxu0 0.0
  %700 = vmatprep.mubr.f32.mxu0 0.0
  %701 = vmatmul.mubr.f32.gmra.mrb[0].mxu0 %v557
  %v702 = vpop.f32.mrb[0].mxu0
  %v703 = vadd.f32 0.0, %v702
  %v704 = vpop.f32.mrb[0].mxu0
  %705 = vdwg.mxu0
  %v706 = vmul.f32 %v703, 0.35355338
  %v707 = vadd.f32 %v706, %v365
  %v708 = vsel %vm368, %v633, -inf
  %709 = vmax.xlane.f32.xlu0 %v708
  %v710 = vpop.xlane.xlu0 %709
  %v711 = vsel %vm205, %v707, -inf
  %712 = vmax.xlane.f32.xlu0 %v711
  %v713 = vpop.xlane.xlu0 %712
  %v714 = vmax.f32 %v710, %v713
  %v715 = vsub.f32 %v633, %v714
  %v716 = vmul.f32 %v715, 1.442695
  %v717 = vpow.pop %v716
  %v718 = vsub.f32 %v707, %v714
  %v719 = vmul.f32 %v718, 1.442695
  %v720 = vpow.pop %v719
  %v721 = vsel %vm368, %v717, 0.0
  %722 = vadd.xlane.f32.xlu0 %v721
  %v723 = vpop.xlane.xlu0 %722
  %v724 = vsel %vm205, %v720, 0.0
  %725 = vadd.xlane.f32.xlu0 %v724
  %v726 = vpop.xlane.xlu0 %725
  %v727 = vadd.f32 %v723, %v726
  %v728 = vrcp.pop %v727
  %v730 = vsel %vm205, %v720, 0
  %732 = vmatprep.subr.mxu0 0.0
  %733 = vmatpush1.msra.mxu0 %v547
  %734 = vmatprep.subr.mxu0 0.0
  %735 = vmatpush1.msra.mxu0 0.0
  %736 = vmatprep.subr.mxu0 0.0
  %737 = vmatpush1.msra.mxu0 0.0
  %738 = vmatprep.subr.mxu0 0.0
  %739 = vmatpush1.msra.mxu0 0.0
  %740 = vmatprep.subr.mxu0 0.0
  %741 = vmatpush1.msra.mxu0 0.0
  %742 = vmatprep.subr.mxu0 0.0
  %743 = vmatpush1.msra.mxu0 0.0
  %744 = vmatprep.subr.mxu0 0.0
  %745 = vmatpush1.msra.mxu0 0.0
  %746 = vmatprep.subr.mxu0 0.0
  %747 = vmatpush1.msra.mxu0 0.0
  %748 = vmatprep.subr.mxu0 0.0
  %749 = vmatpush1.msra.mxu0 0.0
  %750 = vmatprep.subr.mxu0 0.0
  %751 = vmatpush1.msra.mxu0 0.0
  %752 = vmatprep.subr.mxu0 0.0
  %753 = vmatpush1.msra.mxu0 0.0
  %754 = vmatprep.subr.mxu0 0.0
  %755 = vmatpush1.msra.mxu0 0.0
  %756 = vmatprep.subr.mxu0 0.0
  %757 = vmatpush1.msra.mxu0 0.0
  %758 = vmatprep.subr.mxu0 0.0
  %759 = vmatpush1.msra.mxu0 0.0
  %760 = vmatprep.subr.mxu0 0.0
  %761 = vmatpush1.msra.mxu0 0.0
  %762 = vmatprep.subr.mxu0 0.0
  %763 = vmatpush1.msra.mxu0 0.0
  %764 = vmatprep.subr.mxu0 0.0
  %765 = vmatpush1.msra.mxu0 0.0
  %766 = vmatprep.subr.mxu0 0.0
  %767 = vmatpush1.msra.mxu0 0.0
  %768 = vmatprep.subr.mxu0 0.0
  %769 = vmatpush1.msra.mxu0 0.0
  %770 = vmatprep.subr.mxu0 0.0
  %771 = vmatpush1.msra.mxu0 0.0
  %772 = vmatprep.subr.mxu0 0.0
  %773 = vmatpush1.msra.mxu0 0.0
  %774 = vmatprep.subr.mxu0 0.0
  %775 = vmatpush1.msra.mxu0 0.0
  %776 = vmatprep.subr.mxu0 0.0
  %777 = vmatpush1.msra.mxu0 0.0
  %778 = vmatprep.subr.mxu0 0.0
  %779 = vmatpush1.msra.mxu0 0.0
  %780 = vmatprep.subr.mxu0 0.0
  %781 = vmatpush1.msra.mxu0 0.0
  %782 = vmatprep.subr.mxu0 0.0
  %783 = vmatpush1.msra.mxu0 0.0
  %784 = vmatprep.subr.mxu0 0.0
  %785 = vmatpush1.msra.mxu0 0.0
  %786 = vmatprep.subr.mxu0 0.0
  %787 = vmatpush1.msra.mxu0 0.0
  %788 = vmatprep.subr.mxu0 0.0
  %789 = vmatpush1.msra.mxu0 0.0
  %790 = vmatprep.subr.mxu0 0.0
  %791 = vmatpush1.msra.mxu0 0.0
  %792 = vmatprep.subr.mxu0 0.0
  %793 = vmatpush1.msra.mxu0 0.0
  %794 = vmatprep.subr.mxu0 0.0
  %795 = vmatpush1.msra.mxu0 0.0
  %796 = vmatprep.mubr.f32.mxu0 0.0
  %797 = vmatmul.mubr.f32.gmra.mrb[0].mxu0 %v730
  %v798 = vpop.f32.mrb[0].mxu0
  %v799 = vadd.f32 0.0, %v798
  %v800 = vpop.f32.mrb[0].mxu0
  %801 = vdwg.mxu0
  %v803 = vsel %vm368, %v717, 0
  %v806 = vsel %vm466, %v554, 0
  %808 = vmatprep.subr.mxu0 0.0
  %809 = vmatpush1.msra.mxu0 %v806
  %810 = vmatprep.subr.mxu0 0.0
  %811 = vmatpush1.msra.mxu0 0.0
  %812 = vmatprep.subr.mxu0 0.0
  %813 = vmatpush1.msra.mxu0 0.0
  %814 = vmatprep.subr.mxu0 0.0
  %815 = vmatpush1.msra.mxu0 0.0
  %816 = vmatprep.subr.mxu0 0.0
  %817 = vmatpush1.msra.mxu0 0.0
  %818 = vmatprep.subr.mxu0 0.0
  %819 = vmatpush1.msra.mxu0 0.0
  %820 = vmatprep.subr.mxu0 0.0
  %821 = vmatpush1.msra.mxu0 0.0
  %822 = vmatprep.subr.mxu0 0.0
  %823 = vmatpush1.msra.mxu0 0.0
  %824 = vmatprep.subr.mxu0 0.0
  %825 = vmatpush1.msra.mxu0 0.0
  %826 = vmatprep.subr.mxu0 0.0
  %827 = vmatpush1.msra.mxu0 0.0
  %828 = vmatprep.subr.mxu0 0.0
  %829 = vmatpush1.msra.mxu0 0.0
  %830 = vmatprep.subr.mxu0 0.0
  %831 = vmatpush1.msra.mxu0 0.0
  %832 = vmatprep.subr.mxu0 0.0
  %833 = vmatpush1.msra.mxu0 0.0
  %834 = vmatprep.subr.mxu0 0.0
  %835 = vmatpush1.msra.mxu0 0.0
  %836 = vmatprep.subr.mxu0 0.0
  %837 = vmatpush1.msra.mxu0 0.0
  %838 = vmatprep.subr.mxu0 0.0
  %839 = vmatpush1.msra.mxu0 0.0
  %840 = vmatprep.subr.mxu0 0.0
  %841 = vmatpush1.msra.mxu0 0.0
  %842 = vmatprep.subr.mxu0 0.0
  %843 = vmatpush1.msra.mxu0 0.0
  %844 = vmatprep.subr.mxu0 0.0
  %845 = vmatpush1.msra.mxu0 0.0
  %846 = vmatprep.subr.mxu0 0.0
  %847 = vmatpush1.msra.mxu0 0.0
  %848 = vmatprep.subr.mxu0 0.0
  %849 = vmatpush1.msra.mxu0 0.0
  %850 = vmatprep.subr.mxu0 0.0
  %851 = vmatpush1.msra.mxu0 0.0
  %852 = vmatprep.subr.mxu0 0.0
  %853 = vmatpush1.msra.mxu0 0.0
  %854 = vmatprep.subr.mxu0 0.0
  %855 = vmatpush1.msra.mxu0 0.0
  %856 = vmatprep.subr.mxu0 0.0
  %857 = vmatpush1.msra.mxu0 0.0
  %858 = vmatprep.subr.mxu0 0.0
  %859 = vmatpush1.msra.mxu0 0.0
  %860 = vmatprep.subr.mxu0 0.0
  %861 = vmatpush1.msra.mxu0 0.0
  %862 = vmatprep.subr.mxu0 0.0
  %863 = vmatpush1.msra.mxu0 0.0
  %864 = vmatprep.subr.mxu0 0.0
  %865 = vmatpush1.msra.mxu0 0.0
  %866 = vmatprep.subr.mxu0 0.0
  %867 = vmatpush1.msra.mxu0 0.0
  %868 = vmatprep.subr.mxu0 0.0
  %869 = vmatpush1.msra.mxu0 0.0
  %870 = vmatprep.subr.mxu0 0.0
  %871 = vmatpush1.msra.mxu0 0.0
  %872 = vmatprep.mubr.f32.mxu0 0.0
  %873 = vmatmul.mubr.f32.gmra.mrb[0].mxu0 %v803
  %v874 = vpop.f32.mrb[0].mxu0
  %v875 = vadd.f32 %v799, %v874
  %v876 = vpop.f32.mrb[0].mxu0
  %877 = vdwg.mxu0
  %v878 = vmul.f32 %v875, %v728
  %v880 = vsel %vm205, %v878, 0
  %882 = vmatprep.subr.mxu0 0.0
  %883 = vmatpush1.msra.mxu0 %v197
  %884 = vmatprep.subr.mxu0 0.0
  %885 = vmatpush1.msra.mxu0 0.0
  %886 = vmatprep.subr.mxu0 0.0
  %887 = vmatpush1.msra.mxu0 0.0
  %888 = vmatprep.subr.mxu0 0.0
  %889 = vmatpush1.msra.mxu0 0.0
  %890 = vmatprep.subr.mxu0 0.0
  %891 = vmatpush1.msra.mxu0 0.0
  %892 = vmatprep.subr.mxu0 0.0
  %893 = vmatpush1.msra.mxu0 0.0
  %894 = vmatprep.subr.mxu0 0.0
  %895 = vmatpush1.msra.mxu0 0.0
  %896 = vmatprep.subr.mxu0 0.0
  %897 = vmatpush1.msra.mxu0 0.0
  %898 = vmatprep.subr.mxu0 0.0
  %899 = vmatpush1.msra.mxu0 0.0
  %900 = vmatprep.subr.mxu0 0.0
  %901 = vmatpush1.msra.mxu0 0.0
  %902 = vmatprep.subr.mxu0 0.0
  %903 = vmatpush1.msra.mxu0 0.0
  %904 = vmatprep.subr.mxu0 0.0
  %905 = vmatpush1.msra.mxu0 0.0
  %906 = vmatprep.subr.mxu0 0.0
  %907 = vmatpush1.msra.mxu0 0.0
  %908 = vmatprep.subr.mxu0 0.0
  %909 = vmatpush1.msra.mxu0 0.0
  %910 = vmatprep.subr.mxu0 0.0
  %911 = vmatpush1.msra.mxu0 0.0
  %912 = vmatprep.subr.mxu0 0.0
  %913 = vmatpush1.msra.mxu0 0.0
  %914 = vmatprep.subr.mxu0 0.0
  %915 = vmatpush1.msra.mxu0 0.0
  %916 = vmatprep.subr.mxu0 0.0
  %917 = vmatpush1.msra.mxu0 0.0
  %918 = vmatprep.subr.mxu0 0.0
  %919 = vmatpush1.msra.mxu0 0.0
  %920 = vmatprep.subr.mxu0 0.0
  %921 = vmatpush1.msra.mxu0 0.0
  %922 = vmatprep.subr.mxu0 0.0
  %923 = vmatpush1.msra.mxu0 0.0
  %924 = vmatprep.subr.mxu0 0.0
  %925 = vmatpush1.msra.mxu0 0.0
  %926 = vmatprep.subr.mxu0 0.0
  %927 = vmatpush1.msra.mxu0 0.0
  %928 = vmatprep.subr.mxu0 0.0
  %929 = vmatpush1.msra.mxu0 0.0
  %930 = vmatprep.subr.mxu0 0.0
  %931 = vmatpush1.msra.mxu0 0.0
  %932 = vmatprep.subr.mxu0 0.0
  %933 = vmatpush1.msra.mxu0 0.0
  %934 = vmatprep.subr.mxu0 0.0
  %935 = vmatpush1.msra.mxu0 0.0
  %936 = vmatprep.subr.mxu0 0.0
  %937 = vmatpush1.msra.mxu0 0.0
  %938 = vmatprep.subr.mxu0 0.0
  %939 = vmatpush1.msra.mxu0 0.0
  %940 = vmatprep.subr.mxu0 0.0
  %941 = vmatpush1.msra.mxu0 0.0
  %942 = vmatprep.subr.mxu0 0.0
  %943 = vmatpush1.msra.mxu0 0.0
  %944 = vmatprep.subr.mxu0 0.0
  %945 = vmatpush1.msra.mxu0 0.0
  %946 = vmatprep.mubr.f32.mxu0 0.0
  %947 = vmatmul.mubr.f32.gmra.mrb[0].mxu0 %v880
  %v948 = vpop.f32.mrb[0].mxu0
  %v949 = vadd.f32 0.0, %v948
  %v950 = vpop.f32.mrb[0].mxu0
  %951 = vdwg.mxu0
  %v953 = vsel %vm205, %v540, 0
  %955 = vmatprep.subr.mxu0 0.0
  %956 = vmatpush1.msra.mxu0 %v196
  %957 = vmatprep.subr.mxu0 0.0
  %958 = vmatpush1.msra.mxu0 0.0
  %959 = vmatprep.subr.mxu0 0.0
  %960 = vmatpush1.msra.mxu0 0.0
  %961 = vmatprep.subr.mxu0 0.0
  %962 = vmatpush1.msra.mxu0 0.0
  %963 = vmatprep.subr.mxu0 0.0
  %964 = vmatpush1.msra.mxu0 0.0
  %965 = vmatprep.subr.mxu0 0.0
  %966 = vmatpush1.msra.mxu0 0.0
  %967 = vmatprep.subr.mxu0 0.0
  %968 = vmatpush1.msra.mxu0 0.0
  %969 = vmatprep.subr.mxu0 0.0
  %970 = vmatpush1.msra.mxu0 0.0
  %971 = vmatprep.subr.mxu0 0.0
  %972 = vmatpush1.msra.mxu0 0.0
  %973 = vmatprep.subr.mxu0 0.0
  %974 = vmatpush1.msra.mxu0 0.0
  %975 = vmatprep.subr.mxu0 0.0
  %976 = vmatpush1.msra.mxu0 0.0
  %977 = vmatprep.subr.mxu0 0.0
  %978 = vmatpush1.msra.mxu0 0.0
  %979 = vmatprep.subr.mxu0 0.0
  %980 = vmatpush1.msra.mxu0 0.0
  %981 = vmatprep.subr.mxu0 0.0
  %982 = vmatpush1.msra.mxu0 0.0
  %983 = vmatprep.subr.mxu0 0.0
  %984 = vmatpush1.msra.mxu0 0.0
  %985 = vmatprep.subr.mxu0 0.0
  %986 = vmatpush1.msra.mxu0 0.0
  %987 = vmatprep.subr.mxu0 0.0
  %988 = vmatpush1.msra.mxu0 0.0
  %989 = vmatprep.subr.mxu0 0.0
  %990 = vmatpush1.msra.mxu0 0.0
  %991 = vmatprep.subr.mxu0 0.0
  %992 = vmatpush1.msra.mxu0 0.0
  %993 = vmatprep.subr.mxu0 0.0
  %994 = vmatpush1.msra.mxu0 0.0
  %995 = vmatprep.subr.mxu0 0.0
  %996 = vmatpush1.msra.mxu0 0.0
  %997 = vmatprep.subr.mxu0 0.0
  %998 = vmatpush1.msra.mxu0 0.0
  %999 = vmatprep.subr.mxu0 0.0
  %1000 = vmatpush1.msra.mxu0 0.0
  %1001 = vmatprep.subr.mxu0 0.0
  %1002 = vmatpush1.msra.mxu0 0.0
  %1003 = vmatprep.subr.mxu0 0.0
  %1004 = vmatpush1.msra.mxu0 0.0
  %1005 = vmatprep.subr.mxu0 0.0
  %1006 = vmatpush1.msra.mxu0 0.0
  %1007 = vmatprep.subr.mxu0 0.0
  %1008 = vmatpush1.msra.mxu0 0.0
  %1009 = vmatprep.subr.mxu0 0.0
  %1010 = vmatpush1.msra.mxu0 0.0
  %1011 = vmatprep.subr.mxu0 0.0
  %1012 = vmatpush1.msra.mxu0 0.0
  %1013 = vmatprep.subr.mxu0 0.0
  %1014 = vmatpush1.msra.mxu0 0.0
  %1015 = vmatprep.subr.mxu0 0.0
  %1016 = vmatpush1.msra.mxu0 0.0
  %1017 = vmatprep.subr.mxu0 0.0
  %1018 = vmatpush1.msra.mxu0 0.0
  %1019 = vmatprep.mubr.f32.mxu0 0.0
  %1020 = vmatmul.mubr.f32.gmra.mrb[0].mxu0 %v953
  %v1021 = vpop.f32.mrb[0].mxu0
  %v1022 = vadd.f32 %v949, %v1021
  %v1023 = vpop.f32.mrb[0].mxu0
  %1024 = vdwg.mxu0
  %1025 = vrot.lane.b32.xlu0 %v188, 80
  %v1026 = vpop.permute.xlu0 %1025
  %s1028 = scalar_lea.vmem %s17, 16
  %1029 = vst.msk [vmem:[%s1028] sm:$0xff] %vm205, %v1026
  %1030 = vrot.lane.b32.xlu0 %v188, 48
  %v1031 = vpop.permute.xlu0 %1030
  %s1033 = scalar_lea.vmem %s18, 16
  %1034 = vst.msk [vmem:[%s1033] sm:$0xff] %vm205, %v1031
  %s1035 = scalar_lea.vmem %s13, 8
  %v1036 = vld [vmem:[%s1035] sm:$0xf]
  %s1037 = scalar_lea.vmem %s14, 8
  %v1038 = vld [vmem:[%s1037] sm:$0xf]
  %1039 = vrot.lane.b32.xlu0 %v188, 112
  %v1040 = vpop.permute.xlu0 %1039
  %v1041 = vsel %vm205, %v1040, 0
  %v1044 = vsel %vm205, %v1036, 0
  %1046 = vmatprep.subr.mxu0 0.0
  %1047 = vmatpush1.xpose.msra.mxu0 %v1044
  %1048 = vmatprep.subr.mxu0 0.0
  %1049 = vmatpush1.xpose.msra.mxu0 0.0
  %1050 = vmatprep.subr.mxu0 0.0
  %1051 = vmatpush1.xpose.msra.mxu0 0.0
  %1052 = vmatprep.subr.mxu0 0.0
  %1053 = vmatpush1.xpose.msra.mxu0 0.0
  %1054 = vmatprep.subr.mxu0 0.0
  %1055 = vmatpush1.xpose.msra.mxu0 0.0
  %1056 = vmatprep.subr.mxu0 0.0
  %1057 = vmatpush1.xpose.msra.mxu0 0.0
  %1058 = vmatprep.subr.mxu0 0.0
  %1059 = vmatpush1.xpose.msra.mxu0 0.0
  %1060 = vmatprep.subr.mxu0 0.0
  %1061 = vmatpush1.xpose.msra.mxu0 0.0
  %1062 = vmatprep.subr.mxu0 0.0
  %1063 = vmatpush1.xpose.msra.mxu0 0.0
  %1064 = vmatprep.subr.mxu0 0.0
  %1065 = vmatpush1.xpose.msra.mxu0 0.0
  %1066 = vmatprep.subr.mxu0 0.0
  %1067 = vmatpush1.xpose.msra.mxu0 0.0
  %1068 = vmatprep.subr.mxu0 0.0
  %1069 = vmatpush1.xpose.msra.mxu0 0.0
  %1070 = vmatprep.subr.mxu0 0.0
  %1071 = vmatpush1.xpose.msra.mxu0 0.0
  %1072 = vmatprep.subr.mxu0 0.0
  %1073 = vmatpush1.xpose.msra.mxu0 0.0
  %1074 = vmatprep.subr.mxu0 0.0
  %1075 = vmatpush1.xpose.msra.mxu0 0.0
  %1076 = vmatprep.subr.mxu0 0.0
  %1077 = vmatpush1.xpose.msra.mxu0 0.0
  %1078 = vmatprep.subr.mxu0 0.0
  %1079 = vmatpush1.xpose.msra.mxu0 0.0
  %1080 = vmatprep.subr.mxu0 0.0
  %1081 = vmatpush1.xpose.msra.mxu0 0.0
  %1082 = vmatprep.subr.mxu0 0.0
  %1083 = vmatpush1.xpose.msra.mxu0 0.0
  %1084 = vmatprep.subr.mxu0 0.0
  %1085 = vmatpush1.xpose.msra.mxu0 0.0
  %1086 = vmatprep.subr.mxu0 0.0
  %1087 = vmatpush1.xpose.msra.mxu0 0.0
  %1088 = vmatprep.subr.mxu0 0.0
  %1089 = vmatpush1.xpose.msra.mxu0 0.0
  %1090 = vmatprep.subr.mxu0 0.0
  %1091 = vmatpush1.xpose.msra.mxu0 0.0
  %1092 = vmatprep.subr.mxu0 0.0
  %1093 = vmatpush1.xpose.msra.mxu0 0.0
  %1094 = vmatprep.subr.mxu0 0.0
  %1095 = vmatpush1.xpose.msra.mxu0 0.0
  %1096 = vmatprep.subr.mxu0 0.0
  %1097 = vmatpush1.xpose.msra.mxu0 0.0
  %1098 = vmatprep.subr.mxu0 0.0
  %1099 = vmatpush1.xpose.msra.mxu0 0.0
  %1100 = vmatprep.subr.mxu0 0.0
  %1101 = vmatpush1.xpose.msra.mxu0 0.0
  %1102 = vmatprep.subr.mxu0 0.0
  %1103 = vmatpush1.xpose.msra.mxu0 0.0
  %1104 = vmatprep.subr.mxu0 0.0
  %1105 = vmatpush1.xpose.msra.mxu0 0.0
  %1106 = vmatprep.subr.mxu0 0.0
  %1107 = vmatpush1.xpose.msra.mxu0 0.0
  %1108 = vmatprep.subr.mxu0 0.0
  %1109 = vmatpush1.xpose.msra.mxu0 0.0
  %1110 = vmatprep.mubr.f32.mxu0 0.0
  %1111 = vmatmul.mubr.f32.gmra.mrb[0].mxu0 %v1041
  %v1112 = vpop.f32.mrb[0].mxu0
  %v1113 = vadd.f32 0.0, %v1112
  %v1114 = vpop.f32.mrb[0].mxu0
  %1115 = vdwg.mxu0
  %v1116 = vmul.f32 %v1113, 0.35355338
  %v1117 = vadd.f32 %v1116, %v200
  %v1118 = vsel %vm205, %v1026, 0
  %1120 = vmatprep.subr.mxu0 0.0
  %1121 = vmatpush1.xpose.msra.mxu0 %v1118
  %1122 = vmatprep.subr.mxu0 0.0
  %1123 = vmatpush1.xpose.msra.mxu0 0.0
  %1124 = vmatprep.subr.mxu0 0.0
  %1125 = vmatpush1.xpose.msra.mxu0 0.0
  %1126 = vmatprep.subr.mxu0 0.0
  %1127 = vmatpush1.xpose.msra.mxu0 0.0
  %1128 = vmatprep.subr.mxu0 0.0
  %1129 = vmatpush1.xpose.msra.mxu0 0.0
  %1130 = vmatprep.subr.mxu0 0.0
  %1131 = vmatpush1.xpose.msra.mxu0 0.0
  %1132 = vmatprep.subr.mxu0 0.0
  %1133 = vmatpush1.xpose.msra.mxu0 0.0
  %1134 = vmatprep.subr.mxu0 0.0
  %1135 = vmatpush1.xpose.msra.mxu0 0.0
  %1136 = vmatprep.subr.mxu0 0.0
  %1137 = vmatpush1.xpose.msra.mxu0 0.0
  %1138 = vmatprep.subr.mxu0 0.0
  %1139 = vmatpush1.xpose.msra.mxu0 0.0
  %1140 = vmatprep.subr.mxu0 0.0
  %1141 = vmatpush1.xpose.msra.mxu0 0.0
  %1142 = vmatprep.subr.mxu0 0.0
  %1143 = vmatpush1.xpose.msra.mxu0 0.0
  %1144 = vmatprep.subr.mxu0 0.0
  %1145 = vmatpush1.xpose.msra.mxu0 0.0
  %1146 = vmatprep.subr.mxu0 0.0
  %1147 = vmatpush1.xpose.msra.mxu0 0.0
  %1148 = vmatprep.subr.mxu0 0.0
  %1149 = vmatpush1.xpose.msra.mxu0 0.0
  %1150 = vmatprep.subr.mxu0 0.0
  %1151 = vmatpush1.xpose.msra.mxu0 0.0
  %1152 = vmatprep.subr.mxu0 0.0
  %1153 = vmatpush1.xpose.msra.mxu0 0.0
  %1154 = vmatprep.subr.mxu0 0.0
  %1155 = vmatpush1.xpose.msra.mxu0 0.0
  %1156 = vmatprep.subr.mxu0 0.0
  %1157 = vmatpush1.xpose.msra.mxu0 0.0
  %1158 = vmatprep.subr.mxu0 0.0
  %1159 = vmatpush1.xpose.msra.mxu0 0.0
  %1160 = vmatprep.subr.mxu0 0.0
  %1161 = vmatpush1.xpose.msra.mxu0 0.0
  %1162 = vmatprep.subr.mxu0 0.0
  %1163 = vmatpush1.xpose.msra.mxu0 0.0
  %1164 = vmatprep.subr.mxu0 0.0
  %1165 = vmatpush1.xpose.msra.mxu0 0.0
  %1166 = vmatprep.subr.mxu0 0.0
  %1167 = vmatpush1.xpose.msra.mxu0 0.0
  %1168 = vmatprep.subr.mxu0 0.0
  %1169 = vmatpush1.xpose.msra.mxu0 0.0
  %1170 = vmatprep.subr.mxu0 0.0
  %1171 = vmatpush1.xpose.msra.mxu0 0.0
  %1172 = vmatprep.subr.mxu0 0.0
  %1173 = vmatpush1.xpose.msra.mxu0 0.0
  %1174 = vmatprep.subr.mxu0 0.0
  %1175 = vmatpush1.xpose.msra.mxu0 0.0
  %1176 = vmatprep.subr.mxu0 0.0
  %1177 = vmatpush1.xpose.msra.mxu0 0.0
  %1178 = vmatprep.subr.mxu0 0.0
  %1179 = vmatpush1.xpose.msra.mxu0 0.0
  %1180 = vmatprep.subr.mxu0 0.0
  %1181 = vmatpush1.xpose.msra.mxu0 0.0
  %1182 = vmatprep.subr.mxu0 0.0
  %1183 = vmatpush1.xpose.msra.mxu0 0.0
  %1184 = vmatprep.mubr.f32.mxu0 0.0
  %1185 = vmatmul.mubr.f32.gmra.mrb[0].mxu0 %v1041
  %v1186 = vpop.f32.mrb[0].mxu0
  %v1187 = vadd.f32 0.0, %v1186
  %v1188 = vpop.f32.mrb[0].mxu0
  %1189 = vdwg.mxu0
  %v1190 = vmul.f32 %v1187, 0.35355338
  %v1191 = vadd.f32 %v1190, %v365
  %v1192 = vsel %vm368, %v1117, -inf
  %1193 = vmax.xlane.f32.xlu0 %v1192
  %v1194 = vpop.xlane.xlu0 %1193
  %v1195 = vsel %vm205, %v1191, -inf
  %1196 = vmax.xlane.f32.xlu0 %v1195
  %v1197 = vpop.xlane.xlu0 %1196
  %v1198 = vmax.f32 %v1194, %v1197
  %v1199 = vsub.f32 %v1117, %v1198
  %v1200 = vmul.f32 %v1199, 1.442695
  %v1201 = vpow.pop %v1200
  %v1202 = vsub.f32 %v1191, %v1198
  %v1203 = vmul.f32 %v1202, 1.442695
  %v1204 = vpow.pop %v1203
  %v1205 = vsel %vm368, %v1201, 0.0
  %1206 = vadd.xlane.f32.xlu0 %v1205
  %v1207 = vpop.xlane.xlu0 %1206
  %v1208 = vsel %vm205, %v1204, 0.0
  %1209 = vadd.xlane.f32.xlu0 %v1208
  %v1210 = vpop.xlane.xlu0 %1209
  %v1211 = vadd.f32 %v1207, %v1210
  %v1212 = vrcp.pop %v1211
  %v1214 = vsel %vm205, %v1204, 0
  %1216 = vmatprep.subr.mxu0 0.0
  %1217 = vmatpush1.msra.mxu0 %v1031
  %1218 = vmatprep.subr.mxu0 0.0
  %1219 = vmatpush1.msra.mxu0 0.0
  %1220 = vmatprep.subr.mxu0 0.0
  %1221 = vmatpush1.msra.mxu0 0.0
  %1222 = vmatprep.subr.mxu0 0.0
  %1223 = vmatpush1.msra.mxu0 0.0
  %1224 = vmatprep.subr.mxu0 0.0
  %1225 = vmatpush1.msra.mxu0 0.0
  %1226 = vmatprep.subr.mxu0 0.0
  %1227 = vmatpush1.msra.mxu0 0.0
  %1228 = vmatprep.subr.mxu0 0.0
  %1229 = vmatpush1.msra.mxu0 0.0
  %1230 = vmatprep.subr.mxu0 0.0
  %1231 = vmatpush1.msra.mxu0 0.0
  %1232 = vmatprep.subr.mxu0 0.0
  %1233 = vmatpush1.msra.mxu0 0.0
  %1234 = vmatprep.subr.mxu0 0.0
  %1235 = vmatpush1.msra.mxu0 0.0
  %1236 = vmatprep.subr.mxu0 0.0
  %1237 = vmatpush1.msra.mxu0 0.0
  %1238 = vmatprep.subr.mxu0 0.0
  %1239 = vmatpush1.msra.mxu0 0.0
  %1240 = vmatprep.subr.mxu0 0.0
  %1241 = vmatpush1.msra.mxu0 0.0
  %1242 = vmatprep.subr.mxu0 0.0
  %1243 = vmatpush1.msra.mxu0 0.0
  %1244 = vmatprep.subr.mxu0 0.0
  %1245 = vmatpush1.msra.mxu0 0.0
  %1246 = vmatprep.subr.mxu0 0.0
  %1247 = vmatpush1.msra.mxu0 0.0
  %1248 = vmatprep.subr.mxu0 0.0
  %1249 = vmatpush1.msra.mxu0 0.0
  %1250 = vmatprep.subr.mxu0 0.0
  %1251 = vmatpush1.msra.mxu0 0.0
  %1252 = vmatprep.subr.mxu0 0.0
  %1253 = vmatpush1.msra.mxu0 0.0
  %1254 = vmatprep.subr.mxu0 0.0
  %1255 = vmatpush1.msra.mxu0 0.0
  %1256 = vmatprep.subr.mxu0 0.0
  %1257 = vmatpush1.msra.mxu0 0.0
  %1258 = vmatprep.subr.mxu0 0.0
  %1259 = vmatpush1.msra.mxu0 0.0
  %1260 = vmatprep.subr.mxu0 0.0
  %1261 = vmatpush1.msra.mxu0 0.0
  %1262 = vmatprep.subr.mxu0 0.0
  %1263 = vmatpush1.msra.mxu0 0.0
  %1264 = vmatprep.subr.mxu0 0.0
  %1265 = vmatpush1.msra.mxu0 0.0
  %1266 = vmatprep.subr.mxu0 0.0
  %1267 = vmatpush1.msra.mxu0 0.0
  %1268 = vmatprep.subr.mxu0 0.0
  %1269 = vmatpush1.msra.mxu0 0.0
  %1270 = vmatprep.subr.mxu0 0.0
  %1271 = vmatpush1.msra.mxu0 0.0
  %1272 = vmatprep.subr.mxu0 0.0
  %1273 = vmatpush1.msra.mxu0 0.0
  %1274 = vmatprep.subr.mxu0 0.0
  %1275 = vmatpush1.msra.mxu0 0.0
  %1276 = vmatprep.subr.mxu0 0.0
  %1277 = vmatpush1.msra.mxu0 0.0
  %1278 = vmatprep.subr.mxu0 0.0
  %1279 = vmatpush1.msra.mxu0 0.0
  %1280 = vmatprep.mubr.f32.mxu0 0.0
  %1281 = vmatmul.mubr.f32.gmra.mrb[0].mxu0 %v1214
  %v1282 = vpop.f32.mrb[0].mxu0
  %v1283 = vadd.f32 0.0, %v1282
  %v1284 = vpop.f32.mrb[0].mxu0
  %1285 = vdwg.mxu0
  %v1287 = vsel %vm368, %v1201, 0
  %v1290 = vsel %vm466, %v1038, 0
  %1292 = vmatprep.subr.mxu0 0.0
  %1293 = vmatpush1.msra.mxu0 %v1290
  %1294 = vmatprep.subr.mxu0 0.0
  %1295 = vmatpush1.msra.mxu0 0.0
  %1296 = vmatprep.subr.mxu0 0.0
  %1297 = vmatpush1.msra.mxu0 0.0
  %1298 = vmatprep.subr.mxu0 0.0
  %1299 = vmatpush1.msra.mxu0 0.0
  %1300 = vmatprep.subr.mxu0 0.0
  %1301 = vmatpush1.msra.mxu0 0.0
  %1302 = vmatprep.subr.mxu0 0.0
  %1303 = vmatpush1.msra.mxu0 0.0
  %1304 = vmatprep.subr.mxu0 0.0
  %1305 = vmatpush1.msra.mxu0 0.0
  %1306 = vmatprep.subr.mxu0 0.0
  %1307 = vmatpush1.msra.mxu0 0.0
  %1308 = vmatprep.subr.mxu0 0.0
  %1309 = vmatpush1.msra.mxu0 0.0
  %1310 = vmatprep.subr.mxu0 0.0
  %1311 = vmatpush1.msra.mxu0 0.0
  %1312 = vmatprep.subr.mxu0 0.0
  %1313 = vmatpush1.msra.mxu0 0.0
  %1314 = vmatprep.subr.mxu0 0.0
  %1315 = vmatpush1.msra.mxu0 0.0
  %1316 = vmatprep.subr.mxu0 0.0
  %1317 = vmatpush1.msra.mxu0 0.0
  %1318 = vmatprep.subr.mxu0 0.0
  %1319 = vmatpush1.msra.mxu0 0.0
  %1320 = vmatprep.subr.mxu0 0.0
  %1321 = vmatpush1.msra.mxu0 0.0
  %1322 = vmatprep.subr.mxu0 0.0
  %1323 = vmatpush1.msra.mxu0 0.0
  %1324 = vmatprep.subr.mxu0 0.0
  %1325 = vmatpush1.msra.mxu0 0.0
  %1326 = vmatprep.subr.mxu0 0.0
  %1327 = vmatpush1.msra.mxu0 0.0
  %1328 = vmatprep.subr.mxu0 0.0
  %1329 = vmatpush1.msra.mxu0 0.0
  %1330 = vmatprep.subr.mxu0 0.0
  %1331 = vmatpush1.msra.mxu0 0.0
  %1332 = vmatprep.subr.mxu0 0.0
  %1333 = vmatpush1.msra.mxu0 0.0
  %1334 = vmatprep.subr.mxu0 0.0
  %1335 = vmatpush1.msra.mxu0 0.0
  %1336 = vmatprep.subr.mxu0 0.0
  %1337 = vmatpush1.msra.mxu0 0.0
  %1338 = vmatprep.subr.mxu0 0.0
  %1339 = vmatpush1.msra.mxu0 0.0
  %1340 = vmatprep.subr.mxu0 0.0
  %1341 = vmatpush1.msra.mxu0 0.0
  %1342 = vmatprep.subr.mxu0 0.0
  %1343 = vmatpush1.msra.mxu0 0.0
  %1344 = vmatprep.subr.mxu0 0.0
  %1345 = vmatpush1.msra.mxu0 0.0
  %1346 = vmatprep.subr.mxu0 0.0
  %1347 = vmatpush1.msra.mxu0 0.0
  %1348 = vmatprep.subr.mxu0 0.0
  %1349 = vmatpush1.msra.mxu0 0.0
  %1350 = vmatprep.subr.mxu0 0.0
  %1351 = vmatpush1.msra.mxu0 0.0
  %1352 = vmatprep.subr.mxu0 0.0
  %1353 = vmatpush1.msra.mxu0 0.0
  %1354 = vmatprep.subr.mxu0 0.0
  %1355 = vmatpush1.msra.mxu0 0.0
  %1356 = vmatprep.mubr.f32.mxu0 0.0
  %1357 = vmatmul.mubr.f32.gmra.mrb[0].mxu0 %v1287
  %v1358 = vpop.f32.mrb[0].mxu0
  %v1359 = vadd.f32 %v1283, %v1358
  %v1360 = vpop.f32.mrb[0].mxu0
  %1361 = vdwg.mxu0
  %v1362 = vmul.f32 %v1359, %v1212
  %v1364 = vsel %vm205, %v1362, 0
  %1366 = vmatprep.subr.mxu0 0.0
  %1367 = vmatpush1.msra.mxu0 %v198
  %1368 = vmatprep.subr.mxu0 0.0
  %1369 = vmatpush1.msra.mxu0 0.0
  %1370 = vmatprep.subr.mxu0 0.0
  %1371 = vmatpush1.msra.mxu0 0.0
  %1372 = vmatprep.subr.mxu0 0.0
  %1373 = vmatpush1.msra.mxu0 0.0
  %1374 = vmatprep.subr.mxu0 0.0
  %1375 = vmatpush1.msra.mxu0 0.0
  %1376 = vmatprep.subr.mxu0 0.0
  %1377 = vmatpush1.msra.mxu0 0.0
  %1378 = vmatprep.subr.mxu0 0.0
  %1379 = vmatpush1.msra.mxu0 0.0
  %1380 = vmatprep.subr.mxu0 0.0
  %1381 = vmatpush1.msra.mxu0 0.0
  %1382 = vmatprep.subr.mxu0 0.0
  %1383 = vmatpush1.msra.mxu0 0.0
  %1384 = vmatprep.subr.mxu0 0.0
  %1385 = vmatpush1.msra.mxu0 0.0
  %1386 = vmatprep.subr.mxu0 0.0
  %1387 = vmatpush1.msra.mxu0 0.0
  %1388 = vmatprep.subr.mxu0 0.0
  %1389 = vmatpush1.msra.mxu0 0.0
  %1390 = vmatprep.subr.mxu0 0.0
  %1391 = vmatpush1.msra.mxu0 0.0
  %1392 = vmatprep.subr.mxu0 0.0
  %1393 = vmatpush1.msra.mxu0 0.0
  %1394 = vmatprep.subr.mxu0 0.0
  %1395 = vmatpush1.msra.mxu0 0.0
  %1396 = vmatprep.subr.mxu0 0.0
  %1397 = vmatpush1.msra.mxu0 0.0
  %1398 = vmatprep.subr.mxu0 0.0
  %1399 = vmatpush1.msra.mxu0 0.0
  %1400 = vmatprep.subr.mxu0 0.0
  %1401 = vmatpush1.msra.mxu0 0.0
  %1402 = vmatprep.subr.mxu0 0.0
  %1403 = vmatpush1.msra.mxu0 0.0
  %1404 = vmatprep.subr.mxu0 0.0
  %1405 = vmatpush1.msra.mxu0 0.0
  %1406 = vmatprep.subr.mxu0 0.0
  %1407 = vmatpush1.msra.mxu0 0.0
  %1408 = vmatprep.subr.mxu0 0.0
  %1409 = vmatpush1.msra.mxu0 0.0
  %1410 = vmatprep.subr.mxu0 0.0
  %1411 = vmatpush1.msra.mxu0 0.0
  %1412 = vmatprep.subr.mxu0 0.0
  %1413 = vmatpush1.msra.mxu0 0.0
  %1414 = vmatprep.subr.mxu0 0.0
  %1415 = vmatpush1.msra.mxu0 0.0
  %1416 = vmatprep.subr.mxu0 0.0
  %1417 = vmatpush1.msra.mxu0 0.0
  %1418 = vmatprep.subr.mxu0 0.0
  %1419 = vmatpush1.msra.mxu0 0.0
  %1420 = vmatprep.subr.mxu0 0.0
  %1421 = vmatpush1.msra.mxu0 0.0
  %1422 = vmatprep.subr.mxu0 0.0
  %1423 = vmatpush1.msra.mxu0 0.0
  %1424 = vmatprep.subr.mxu0 0.0
  %1425 = vmatpush1.msra.mxu0 0.0
  %1426 = vmatprep.subr.mxu0 0.0
  %1427 = vmatpush1.msra.mxu0 0.0
  %1428 = vmatprep.subr.mxu0 0.0
  %1429 = vmatpush1.msra.mxu0 0.0
  %1430 = vmatprep.mubr.f32.mxu0 0.0
  %1431 = vmatmul.mubr.f32.gmra.mrb[0].mxu0 %v1364
  %v1432 = vpop.f32.mrb[0].mxu0
  %v1433 = vadd.f32 0.0, %v1432
  %v1434 = vpop.f32.mrb[0].mxu0
  %1435 = vdwg.mxu0
  %v1436 = vadd.f32 %v1022, %v1433
  %1437 = vrot.lane.b32.xlu0 %v188, 72
  %v1438 = vpop.permute.xlu0 %1437
  %s1440 = scalar_lea.vmem %s17, 24
  %1441 = vst.msk [vmem:[%s1440] sm:$0xff] %vm205, %v1438
  %1442 = vrot.lane.b32.xlu0 %v188, 40
  %v1443 = vpop.permute.xlu0 %1442
  %s1445 = scalar_lea.vmem %s18, 24
  %1446 = vst.msk [vmem:[%s1445] sm:$0xff] %vm205, %v1443
  %s1447 = scalar_lea.vmem %s13, 12
  %v1448 = vld [vmem:[%s1447] sm:$0xf]
  %s1449 = scalar_lea.vmem %s14, 12
  %v1450 = vld [vmem:[%s1449] sm:$0xf]
  %1451 = vrot.lane.b32.xlu0 %v188, 104
  %v1452 = vpop.permute.xlu0 %1451
  %v1453 = vsel %vm205, %v1452, 0
  %v1456 = vsel %vm205, %v1448, 0
  %1458 = vmatprep.subr.mxu0 0.0
  %1459 = vmatpush1.xpose.msra.mxu0 %v1456
  %1460 = vmatprep.subr.mxu0 0.0
  %1461 = vmatpush1.xpose.msra.mxu0 0.0
  %1462 = vmatprep.subr.mxu0 0.0
  %1463 = vmatpush1.xpose.msra.mxu0 0.0
  %1464 = vmatprep.subr.mxu0 0.0
  %1465 = vmatpush1.xpose.msra.mxu0 0.0
  %1466 = vmatprep.subr.mxu0 0.0
  %1467 = vmatpush1.xpose.msra.mxu0 0.0
  %1468 = vmatprep.subr.mxu0 0.0
  %1469 = vmatpush1.xpose.msra.mxu0 0.0
  %1470 = vmatprep.subr.mxu0 0.0
  %1471 = vmatpush1.xpose.msra.mxu0 0.0
  %1472 = vmatprep.subr.mxu0 0.0
  %1473 = vmatpush1.xpose.msra.mxu0 0.0
  %1474 = vmatprep.subr.mxu0 0.0
  %1475 = vmatpush1.xpose.msra.mxu0 0.0
  %1476 = vmatprep.subr.mxu0 0.0
  %1477 = vmatpush1.xpose.msra.mxu0 0.0
  %1478 = vmatprep.subr.mxu0 0.0
  %1479 = vmatpush1.xpose.msra.mxu0 0.0
  %1480 = vmatprep.subr.mxu0 0.0
  %1481 = vmatpush1.xpose.msra.mxu0 0.0
  %1482 = vmatprep.subr.mxu0 0.0
  %1483 = vmatpush1.xpose.msra.mxu0 0.0
  %1484 = vmatprep.subr.mxu0 0.0
  %1485 = vmatpush1.xpose.msra.mxu0 0.0
  %1486 = vmatprep.subr.mxu0 0.0
  %1487 = vmatpush1.xpose.msra.mxu0 0.0
  %1488 = vmatprep.subr.mxu0 0.0
  %1489 = vmatpush1.xpose.msra.mxu0 0.0
  %1490 = vmatprep.subr.mxu0 0.0
  %1491 = vmatpush1.xpose.msra.mxu0 0.0
  %1492 = vmatprep.subr.mxu0 0.0
  %1493 = vmatpush1.xpose.msra.mxu0 0.0
  %1494 = vmatprep.subr.mxu0 0.0
  %1495 = vmatpush1.xpose.msra.mxu0 0.0
  %1496 = vmatprep.subr.mxu0 0.0
  %1497 = vmatpush1.xpose.msra.mxu0 0.0
  %1498 = vmatprep.subr.mxu0 0.0
  %1499 = vmatpush1.xpose.msra.mxu0 0.0
  %1500 = vmatprep.subr.mxu0 0.0
  %1501 = vmatpush1.xpose.msra.mxu0 0.0
  %1502 = vmatprep.subr.mxu0 0.0
  %1503 = vmatpush1.xpose.msra.mxu0 0.0
  %1504 = vmatprep.subr.mxu0 0.0
  %1505 = vmatpush1.xpose.msra.mxu0 0.0
  %1506 = vmatprep.subr.mxu0 0.0
  %1507 = vmatpush1.xpose.msra.mxu0 0.0
  %1508 = vmatprep.subr.mxu0 0.0
  %1509 = vmatpush1.xpose.msra.mxu0 0.0
  %1510 = vmatprep.subr.mxu0 0.0
  %1511 = vmatpush1.xpose.msra.mxu0 0.0
  %1512 = vmatprep.subr.mxu0 0.0
  %1513 = vmatpush1.xpose.msra.mxu0 0.0
  %1514 = vmatprep.subr.mxu0 0.0
  %1515 = vmatpush1.xpose.msra.mxu0 0.0
  %1516 = vmatprep.subr.mxu0 0.0
  %1517 = vmatpush1.xpose.msra.mxu0 0.0
  %1518 = vmatprep.subr.mxu0 0.0
  %1519 = vmatpush1.xpose.msra.mxu0 0.0
  %1520 = vmatprep.subr.mxu0 0.0
  %1521 = vmatpush1.xpose.msra.mxu0 0.0
  %1522 = vmatprep.mubr.f32.mxu0 0.0
  %1523 = vmatmul.mubr.f32.gmra.mrb[0].mxu0 %v1453
  %v1524 = vpop.f32.mrb[0].mxu0
  %v1525 = vadd.f32 0.0, %v1524
  %v1526 = vpop.f32.mrb[0].mxu0
  %1527 = vdwg.mxu0
  %v1528 = vmul.f32 %v1525, 0.35355338
  %v1529 = vadd.f32 %v1528, %v200
  %v1530 = vsel %vm205, %v1438, 0
  %1532 = vmatprep.subr.mxu0 0.0
  %1533 = vmatpush1.xpose.msra.mxu0 %v1530
  %1534 = vmatprep.subr.mxu0 0.0
  %1535 = vmatpush1.xpose.msra.mxu0 0.0
  %1536 = vmatprep.subr.mxu0 0.0
  %1537 = vmatpush1.xpose.msra.mxu0 0.0
  %1538 = vmatprep.subr.mxu0 0.0
  %1539 = vmatpush1.xpose.msra.mxu0 0.0
  %1540 = vmatprep.subr.mxu0 0.0
  %1541 = vmatpush1.xpose.msra.mxu0 0.0
  %1542 = vmatprep.subr.mxu0 0.0
  %1543 = vmatpush1.xpose.msra.mxu0 0.0
  %1544 = vmatprep.subr.mxu0 0.0
  %1545 = vmatpush1.xpose.msra.mxu0 0.0
  %1546 = vmatprep.subr.mxu0 0.0
  %1547 = vmatpush1.xpose.msra.mxu0 0.0
  %1548 = vmatprep.subr.mxu0 0.0
  %1549 = vmatpush1.xpose.msra.mxu0 0.0
  %1550 = vmatprep.subr.mxu0 0.0
  %1551 = vmatpush1.xpose.msra.mxu0 0.0
  %1552 = vmatprep.subr.mxu0 0.0
  %1553 = vmatpush1.xpose.msra.mxu0 0.0
  %1554 = vmatprep.subr.mxu0 0.0
  %1555 = vmatpush1.xpose.msra.mxu0 0.0
  %1556 = vmatprep.subr.mxu0 0.0
  %1557 = vmatpush1.xpose.msra.mxu0 0.0
  %1558 = vmatprep.subr.mxu0 0.0
  %1559 = vmatpush1.xpose.msra.mxu0 0.0
  %1560 = vmatprep.subr.mxu0 0.0
  %1561 = vmatpush1.xpose.msra.mxu0 0.0
  %1562 = vmatprep.subr.mxu0 0.0
  %1563 = vmatpush1.xpose.msra.mxu0 0.0
  %1564 = vmatprep.subr.mxu0 0.0
  %1565 = vmatpush1.xpose.msra.mxu0 0.0
  %1566 = vmatprep.subr.mxu0 0.0
  %1567 = vmatpush1.xpose.msra.mxu0 0.0
  %1568 = vmatprep.subr.mxu0 0.0
  %1569 = vmatpush1.xpose.msra.mxu0 0.0
  %1570 = vmatprep.subr.mxu0 0.0
  %1571 = vmatpush1.xpose.msra.mxu0 0.0
  %1572 = vmatprep.subr.mxu0 0.0
  %1573 = vmatpush1.xpose.msra.mxu0 0.0
  %1574 = vmatprep.subr.mxu0 0.0
  %1575 = vmatpush1.xpose.msra.mxu0 0.0
  %1576 = vmatprep.subr.mxu0 0.0
  %1577 = vmatpush1.xpose.msra.mxu0 0.0
  %1578 = vmatprep.subr.mxu0 0.0
  %1579 = vmatpush1.xpose.msra.mxu0 0.0
  %1580 = vmatprep.subr.mxu0 0.0
  %1581 = vmatpush1.xpose.msra.mxu0 0.0
  %1582 = vmatprep.subr.mxu0 0.0
  %1583 = vmatpush1.xpose.msra.mxu0 0.0
  %1584 = vmatprep.subr.mxu0 0.0
  %1585 = vmatpush1.xpose.msra.mxu0 0.0
  %1586 = vmatprep.subr.mxu0 0.0
  %1587 = vmatpush1.xpose.msra.mxu0 0.0
  %1588 = vmatprep.subr.mxu0 0.0
  %1589 = vmatpush1.xpose.msra.mxu0 0.0
  %1590 = vmatprep.subr.mxu0 0.0
  %1591 = vmatpush1.xpose.msra.mxu0 0.0
  %1592 = vmatprep.subr.mxu0 0.0
  %1593 = vmatpush1.xpose.msra.mxu0 0.0
  %1594 = vmatprep.subr.mxu0 0.0
  %1595 = vmatpush1.xpose.msra.mxu0 0.0
  %1596 = vmatprep.mubr.f32.mxu0 0.0
  %1597 = vmatmul.mubr.f32.gmra.mrb[0].mxu0 %v1453
  %v1598 = vpop.f32.mrb[0].mxu0
  %v1599 = vadd.f32 0.0, %v1598
  %v1600 = vpop.f32.mrb[0].mxu0
  %1601 = vdwg.mxu0
  %v1602 = vmul.f32 %v1599, 0.35355338
  %v1603 = vadd.f32 %v1602, %v365
  %v1604 = vsel %vm368, %v1529, -inf
  %1605 = vmax.xlane.f32.xlu0 %v1604
  %v1606 = vpop.xlane.xlu0 %1605
  %v1607 = vsel %vm205, %v1603, -inf
  %1608 = vmax.xlane.f32.xlu0 %v1607
  %v1609 = vpop.xlane.xlu0 %1608
  %v1610 = vmax.f32 %v1606, %v1609
  %v1611 = vsub.f32 %v1529, %v1610
  %v1612 = vmul.f32 %v1611, 1.442695
  %v1613 = vpow.pop %v1612
  %v1614 = vsub.f32 %v1603, %v1610
  %v1615 = vmul.f32 %v1614, 1.442695
  %v1616 = vpow.pop %v1615
  %v1617 = vsel %vm368, %v1613, 0.0
  %1618 = vadd.xlane.f32.xlu0 %v1617
  %v1619 = vpop.xlane.xlu0 %1618
  %v1620 = vsel %vm205, %v1616, 0.0
  %1621 = vadd.xlane.f32.xlu0 %v1620
  %v1622 = vpop.xlane.xlu0 %1621
  %v1623 = vadd.f32 %v1619, %v1622
  %v1624 = vrcp.pop %v1623
  %v1626 = vsel %vm205, %v1616, 0
  %1628 = vmatprep.subr.mxu0 0.0
  %1629 = vmatpush1.msra.mxu0 %v1443
  %1630 = vmatprep.subr.mxu0 0.0
  %1631 = vmatpush1.msra.mxu0 0.0
  %1632 = vmatprep.subr.mxu0 0.0
  %1633 = vmatpush1.msra.mxu0 0.0
  %1634 = vmatprep.subr.mxu0 0.0
  %1635 = vmatpush1.msra.mxu0 0.0
  %1636 = vmatprep.subr.mxu0 0.0
  %1637 = vmatpush1.msra.mxu0 0.0
  %1638 = vmatprep.subr.mxu0 0.0
  %1639 = vmatpush1.msra.mxu0 0.0
  %1640 = vmatprep.subr.mxu0 0.0
  %1641 = vmatpush1.msra.mxu0 0.0
  %1642 = vmatprep.subr.mxu0 0.0
  %1643 = vmatpush1.msra.mxu0 0.0
  %1644 = vmatprep.subr.mxu0 0.0
  %1645 = vmatpush1.msra.mxu0 0.0
  %1646 = vmatprep.subr.mxu0 0.0
  %1647 = vmatpush1.msra.mxu0 0.0
  %1648 = vmatprep.subr.mxu0 0.0
  %1649 = vmatpush1.msra.mxu0 0.0
  %1650 = vmatprep.subr.mxu0 0.0
  %1651 = vmatpush1.msra.mxu0 0.0
  %1652 = vmatprep.subr.mxu0 0.0
  %1653 = vmatpush1.msra.mxu0 0.0
  %1654 = vmatprep.subr.mxu0 0.0
  %1655 = vmatpush1.msra.mxu0 0.0
  %1656 = vmatprep.subr.mxu0 0.0
  %1657 = vmatpush1.msra.mxu0 0.0
  %1658 = vmatprep.subr.mxu0 0.0
  %1659 = vmatpush1.msra.mxu0 0.0
  %1660 = vmatprep.subr.mxu0 0.0
  %1661 = vmatpush1.msra.mxu0 0.0
  %1662 = vmatprep.subr.mxu0 0.0
  %1663 = vmatpush1.msra.mxu0 0.0
  %1664 = vmatprep.subr.mxu0 0.0
  %1665 = vmatpush1.msra.mxu0 0.0
  %1666 = vmatprep.subr.mxu0 0.0
  %1667 = vmatpush1.msra.mxu0 0.0
  %1668 = vmatprep.subr.mxu0 0.0
  %1669 = vmatpush1.msra.mxu0 0.0
  %1670 = vmatprep.subr.mxu0 0.0
  %1671 = vmatpush1.msra.mxu0 0.0
  %1672 = vmatprep.subr.mxu0 0.0
  %1673 = vmatpush1.msra.mxu0 0.0
  %1674 = vmatprep.subr.mxu0 0.0
  %1675 = vmatpush1.msra.mxu0 0.0
  %1676 = vmatprep.subr.mxu0 0.0
  %1677 = vmatpush1.msra.mxu0 0.0
  %1678 = vmatprep.subr.mxu0 0.0
  %1679 = vmatpush1.msra.mxu0 0.0
  %1680 = vmatprep.subr.mxu0 0.0
  %1681 = vmatpush1.msra.mxu0 0.0
  %1682 = vmatprep.subr.mxu0 0.0
  %1683 = vmatpush1.msra.mxu0 0.0
  %1684 = vmatprep.subr.mxu0 0.0
  %1685 = vmatpush1.msra.mxu0 0.0
  %1686 = vmatprep.subr.mxu0 0.0
  %1687 = vmatpush1.msra.mxu0 0.0
  %1688 = vmatprep.subr.mxu0 0.0
  %1689 = vmatpush1.msra.mxu0 0.0
  %1690 = vmatprep.subr.mxu0 0.0
  %1691 = vmatpush1.msra.mxu0 0.0
  %1692 = vmatprep.mubr.f32.mxu0 0.0
  %1693 = vmatmul.mubr.f32.gmra.mrb[0].mxu0 %v1626
  %v1694 = vpop.f32.mrb[0].mxu0
  %v1695 = vadd.f32 0.0, %v1694
  %v1696 = vpop.f32.mrb[0].mxu0
  %1697 = vdwg.mxu0
  %v1699 = vsel %vm368, %v1613, 0
  %v1702 = vsel %vm466, %v1450, 0
  %1704 = vmatprep.subr.mxu0 0.0
  %1705 = vmatpush1.msra.mxu0 %v1702
  %1706 = vmatprep.subr.mxu0 0.0
  %1707 = vmatpush1.msra.mxu0 0.0
  %1708 = vmatprep.subr.mxu0 0.0
  %1709 = vmatpush1.msra.mxu0 0.0
  %1710 = vmatprep.subr.mxu0 0.0
  %1711 = vmatpush1.msra.mxu0 0.0
  %1712 = vmatprep.subr.mxu0 0.0
  %1713 = vmatpush1.msra.mxu0 0.0
  %1714 = vmatprep.subr.mxu0 0.0
  %1715 = vmatpush1.msra.mxu0 0.0
  %1716 = vmatprep.subr.mxu0 0.0
  %1717 = vmatpush1.msra.mxu0 0.0
  %1718 = vmatprep.subr.mxu0 0.0
  %1719 = vmatpush1.msra.mxu0 0.0
  %1720 = vmatprep.subr.mxu0 0.0
  %1721 = vmatpush1.msra.mxu0 0.0
  %1722 = vmatprep.subr.mxu0 0.0
  %1723 = vmatpush1.msra.mxu0 0.0
  %1724 = vmatprep.subr.mxu0 0.0
  %1725 = vmatpush1.msra.mxu0 0.0
  %1726 = vmatprep.subr.mxu0 0.0
  %1727 = vmatpush1.msra.mxu0 0.0
  %1728 = vmatprep.subr.mxu0 0.0
  %1729 = vmatpush1.msra.mxu0 0.0
  %1730 = vmatprep.subr.mxu0 0.0
  %1731 = vmatpush1.msra.mxu0 0.0
  %1732 = vmatprep.subr.mxu0 0.0
  %1733 = vmatpush1.msra.mxu0 0.0
  %1734 = vmatprep.subr.mxu0 0.0
  %1735 = vmatpush1.msra.mxu0 0.0
  %1736 = vmatprep.subr.mxu0 0.0
  %1737 = vmatpush1.msra.mxu0 0.0
  %1738 = vmatprep.subr.mxu0 0.0
  %1739 = vmatpush1.msra.mxu0 0.0
  %1740 = vmatprep.subr.mxu0 0.0
  %1741 = vmatpush1.msra.mxu0 0.0
  %1742 = vmatprep.subr.mxu0 0.0
  %1743 = vmatpush1.msra.mxu0 0.0
  %1744 = vmatprep.subr.mxu0 0.0
  %1745 = vmatpush1.msra.mxu0 0.0
  %1746 = vmatprep.subr.mxu0 0.0
  %1747 = vmatpush1.msra.mxu0 0.0
  %1748 = vmatprep.subr.mxu0 0.0
  %1749 = vmatpush1.msra.mxu0 0.0
  %1750 = vmatprep.subr.mxu0 0.0
  %1751 = vmatpush1.msra.mxu0 0.0
  %1752 = vmatprep.subr.mxu0 0.0
  %1753 = vmatpush1.msra.mxu0 0.0
  %1754 = vmatprep.subr.mxu0 0.0
  %1755 = vmatpush1.msra.mxu0 0.0
  %1756 = vmatprep.subr.mxu0 0.0
  %1757 = vmatpush1.msra.mxu0 0.0
  %1758 = vmatprep.subr.mxu0 0.0
  %1759 = vmatpush1.msra.mxu0 0.0
  %1760 = vmatprep.subr.mxu0 0.0
  %1761 = vmatpush1.msra.mxu0 0.0
  %1762 = vmatprep.subr.mxu0 0.0
  %1763 = vmatpush1.msra.mxu0 0.0
  %1764 = vmatprep.subr.mxu0 0.0
  %1765 = vmatpush1.msra.mxu0 0.0
  %1766 = vmatprep.subr.mxu0 0.0
  %1767 = vmatpush1.msra.mxu0 0.0
  %1768 = vmatprep.mubr.f32.mxu0 0.0
  %1769 = vmatmul.mubr.f32.gmra.mrb[0].mxu0 %v1699
  %v1770 = vpop.f32.mrb[0].mxu0
  %v1771 = vadd.f32 %v1695, %v1770
  %v1772 = vpop.f32.mrb[0].mxu0
  %1773 = vdwg.mxu0
  %v1774 = vmul.f32 %v1771, %v1624
  %v1776 = vsel %vm205, %v1774, 0
  %1778 = vmatprep.subr.mxu0 0.0
  %1779 = vmatpush1.msra.mxu0 %v199
  %1780 = vmatprep.subr.mxu0 0.0
  %1781 = vmatpush1.msra.mxu0 0.0
  %1782 = vmatprep.subr.mxu0 0.0
  %1783 = vmatpush1.msra.mxu0 0.0
  %1784 = vmatprep.subr.mxu0 0.0
  %1785 = vmatpush1.msra.mxu0 0.0
  %1786 = vmatprep.subr.mxu0 0.0
  %1787 = vmatpush1.msra.mxu0 0.0
  %1788 = vmatprep.subr.mxu0 0.0
  %1789 = vmatpush1.msra.mxu0 0.0
  %1790 = vmatprep.subr.mxu0 0.0
  %1791 = vmatpush1.msra.mxu0 0.0
  %1792 = vmatprep.subr.mxu0 0.0
  %1793 = vmatpush1.msra.mxu0 0.0
  %1794 = vmatprep.subr.mxu0 0.0
  %1795 = vmatpush1.msra.mxu0 0.0
  %1796 = vmatprep.subr.mxu0 0.0
  %1797 = vmatpush1.msra.mxu0 0.0
  %1798 = vmatprep.subr.mxu0 0.0
  %1799 = vmatpush1.msra.mxu0 0.0
  %1800 = vmatprep.subr.mxu0 0.0
  %1801 = vmatpush1.msra.mxu0 0.0
  %1802 = vmatprep.subr.mxu0 0.0
  %1803 = vmatpush1.msra.mxu0 0.0
  %1804 = vmatprep.subr.mxu0 0.0
  %1805 = vmatpush1.msra.mxu0 0.0
  %1806 = vmatprep.subr.mxu0 0.0
  %1807 = vmatpush1.msra.mxu0 0.0
  %1808 = vmatprep.subr.mxu0 0.0
  %1809 = vmatpush1.msra.mxu0 0.0
  %1810 = vmatprep.subr.mxu0 0.0
  %1811 = vmatpush1.msra.mxu0 0.0
  %1812 = vmatprep.subr.mxu0 0.0
  %1813 = vmatpush1.msra.mxu0 0.0
  %1814 = vmatprep.subr.mxu0 0.0
  %1815 = vmatpush1.msra.mxu0 0.0
  %1816 = vmatprep.subr.mxu0 0.0
  %1817 = vmatpush1.msra.mxu0 0.0
  %1818 = vmatprep.subr.mxu0 0.0
  %1819 = vmatpush1.msra.mxu0 0.0
  %1820 = vmatprep.subr.mxu0 0.0
  %1821 = vmatpush1.msra.mxu0 0.0
  %1822 = vmatprep.subr.mxu0 0.0
  %1823 = vmatpush1.msra.mxu0 0.0
  %1824 = vmatprep.subr.mxu0 0.0
  %1825 = vmatpush1.msra.mxu0 0.0
  %1826 = vmatprep.subr.mxu0 0.0
  %1827 = vmatpush1.msra.mxu0 0.0
  %1828 = vmatprep.subr.mxu0 0.0
  %1829 = vmatpush1.msra.mxu0 0.0
  %1830 = vmatprep.subr.mxu0 0.0
  %1831 = vmatpush1.msra.mxu0 0.0
  %1832 = vmatprep.subr.mxu0 0.0
  %1833 = vmatpush1.msra.mxu0 0.0
  %1834 = vmatprep.subr.mxu0 0.0
  %1835 = vmatpush1.msra.mxu0 0.0
  %1836 = vmatprep.subr.mxu0 0.0
  %1837 = vmatpush1.msra.mxu0 0.0
  %1838 = vmatprep.subr.mxu0 0.0
  %1839 = vmatpush1.msra.mxu0 0.0
  %1840 = vmatprep.subr.mxu0 0.0
  %1841 = vmatpush1.msra.mxu0 0.0
  %1842 = vmatprep.mubr.f32.mxu0 0.0
  %1843 = vmatmul.mubr.f32.gmra.mrb[0].mxu0 %v1776
  %v1844 = vpop.f32.mrb[0].mxu0
  %v1845 = vadd.f32 0.0, %v1844
  %v1846 = vpop.f32.mrb[0].mxu0
  %1847 = vdwg.mxu0
  %v1848 = vadd.f32 %v1436, %v1845
  %1849 = vst.msk [vmem:[#allocation2] sm:$0xff] %vm60, %v1848
  %s1850 = scalar_lea.vmem %s15, 8
  %v1851 = vld [vmem:[%s1850] sm:$0xff]
  %1853 = vrot.lane.b32.xlu0 %v193, 96
  %v1854 = vpop.permute.xlu0 %1853
  %s1856 = scalar_lea.vmem %s17, 32
  %1857 = vst.msk [vmem:[%s1856] sm:$0xff] %vm205, %v1854
  %1858 = vrot.lane.b32.xlu0 %v193, 64
  %v1859 = vpop.permute.xlu0 %1858
  %s1861 = scalar_lea.vmem %s18, 32
  %1862 = vst.msk [vmem:[%s1861] sm:$0xff] %vm205, %v1859
  %s1863 = scalar_lea.vmem %s13, 16
  %v1864 = vld [vmem:[%s1863] sm:$0xf]
  %s1865 = scalar_lea.vmem %s14, 16
  %v1866 = vld [vmem:[%s1865] sm:$0xf]
  %v1867 = vsel %vm205, %v193, 0
  %v1870 = vsel %vm205, %v1864, 0
  %1872 = vmatprep.subr.mxu0 0.0
  %1873 = vmatpush1.xpose.msra.mxu0 %v1870
  %1874 = vmatprep.subr.mxu0 0.0
  %1875 = vmatpush1.xpose.msra.mxu0 0.0
  %1876 = vmatprep.subr.mxu0 0.0
  %1877 = vmatpush1.xpose.msra.mxu0 0.0
  %1878 = vmatprep.subr.mxu0 0.0
  %1879 = vmatpush1.xpose.msra.mxu0 0.0
  %1880 = vmatprep.subr.mxu0 0.0
  %1881 = vmatpush1.xpose.msra.mxu0 0.0
  %1882 = vmatprep.subr.mxu0 0.0
  %1883 = vmatpush1.xpose.msra.mxu0 0.0
  %1884 = vmatprep.subr.mxu0 0.0
  %1885 = vmatpush1.xpose.msra.mxu0 0.0
  %1886 = vmatprep.subr.mxu0 0.0
  %1887 = vmatpush1.xpose.msra.mxu0 0.0
  %1888 = vmatprep.subr.mxu0 0.0
  %1889 = vmatpush1.xpose.msra.mxu0 0.0
  %1890 = vmatprep.subr.mxu0 0.0
  %1891 = vmatpush1.xpose.msra.mxu0 0.0
  %1892 = vmatprep.subr.mxu0 0.0
  %1893 = vmatpush1.xpose.msra.mxu0 0.0
  %1894 = vmatprep.subr.mxu0 0.0
  %1895 = vmatpush1.xpose.msra.mxu0 0.0
  %1896 = vmatprep.subr.mxu0 0.0
  %1897 = vmatpush1.xpose.msra.mxu0 0.0
  %1898 = vmatprep.subr.mxu0 0.0
  %1899 = vmatpush1.xpose.msra.mxu0 0.0
  %1900 = vmatprep.subr.mxu0 0.0
  %1901 = vmatpush1.xpose.msra.mxu0 0.0
  %1902 = vmatprep.subr.mxu0 0.0
  %1903 = vmatpush1.xpose.msra.mxu0 0.0
  %1904 = vmatprep.subr.mxu0 0.0
  %1905 = vmatpush1.xpose.msra.mxu0 0.0
  %1906 = vmatprep.subr.mxu0 0.0
  %1907 = vmatpush1.xpose.msra.mxu0 0.0
  %1908 = vmatprep.subr.mxu0 0.0
  %1909 = vmatpush1.xpose.msra.mxu0 0.0
  %1910 = vmatprep.subr.mxu0 0.0
  %1911 = vmatpush1.xpose.msra.mxu0 0.0
  %1912 = vmatprep.subr.mxu0 0.0
  %1913 = vmatpush1.xpose.msra.mxu0 0.0
  %1914 = vmatprep.subr.mxu0 0.0
  %1915 = vmatpush1.xpose.msra.mxu0 0.0
  %1916 = vmatprep.subr.mxu0 0.0
  %1917 = vmatpush1.xpose.msra.mxu0 0.0
  %1918 = vmatprep.subr.mxu0 0.0
  %1919 = vmatpush1.xpose.msra.mxu0 0.0
  %1920 = vmatprep.subr.mxu0 0.0
  %1921 = vmatpush1.xpose.msra.mxu0 0.0
  %1922 = vmatprep.subr.mxu0 0.0
  %1923 = vmatpush1.xpose.msra.mxu0 0.0
  %1924 = vmatprep.subr.mxu0 0.0
  %1925 = vmatpush1.xpose.msra.mxu0 0.0
  %1926 = vmatprep.subr.mxu0 0.0
  %1927 = vmatpush1.xpose.msra.mxu0 0.0
  %1928 = vmatprep.subr.mxu0 0.0
  %1929 = vmatpush1.xpose.msra.mxu0 0.0
  %1930 = vmatprep.subr.mxu0 0.0
  %1931 = vmatpush1.xpose.msra.mxu0 0.0
  %1932 = vmatprep.subr.mxu0 0.0
  %1933 = vmatpush1.xpose.msra.mxu0 0.0
  %1934 = vmatprep.subr.mxu0 0.0
  %1935 = vmatpush1.xpose.msra.mxu0 0.0
  %1936 = vmatprep.mubr.f32.mxu0 0.0
  %1937 = vmatmul.mubr.f32.gmra.mrb[0].mxu0 %v1867
  %v1938 = vpop.f32.mrb[0].mxu0
  %v1939 = vadd.f32 0.0, %v1938
  %v1940 = vpop.f32.mrb[0].mxu0
  %1941 = vdwg.mxu0
  %v1942 = vmul.f32 %v1939, 0.35355338
  %v1943 = vadd.f32 %v1942, %v1851
  %v1944 = vsel %vm205, %v1854, 0
  %1946 = vmatprep.subr.mxu0 0.0
  %1947 = vmatpush1.xpose.msra.mxu0 %v1944
  %1948 = vmatprep.subr.mxu0 0.0
  %1949 = vmatpush1.xpose.msra.mxu0 0.0
  %1950 = vmatprep.subr.mxu0 0.0
  %1951 = vmatpush1.xpose.msra.mxu0 0.0
  %1952 = vmatprep.subr.mxu0 0.0
  %1953 = vmatpush1.xpose.msra.mxu0 0.0
  %1954 = vmatprep.subr.mxu0 0.0
  %1955 = vmatpush1.xpose.msra.mxu0 0.0
  %1956 = vmatprep.subr.mxu0 0.0
  %1957 = vmatpush1.xpose.msra.mxu0 0.0
  %1958 = vmatprep.subr.mxu0 0.0
  %1959 = vmatpush1.xpose.msra.mxu0 0.0
  %1960 = vmatprep.subr.mxu0 0.0
  %1961 = vmatpush1.xpose.msra.mxu0 0.0
  %1962 = vmatprep.subr.mxu0 0.0
  %1963 = vmatpush1.xpose.msra.mxu0 0.0
  %1964 = vmatprep.subr.mxu0 0.0
  %1965 = vmatpush1.xpose.msra.mxu0 0.0
  %1966 = vmatprep.subr.mxu0 0.0
  %1967 = vmatpush1.xpose.msra.mxu0 0.0
  %1968 = vmatprep.subr.mxu0 0.0
  %1969 = vmatpush1.xpose.msra.mxu0 0.0
  %1970 = vmatprep.subr.mxu0 0.0
  %1971 = vmatpush1.xpose.msra.mxu0 0.0
  %1972 = vmatprep.subr.mxu0 0.0
  %1973 = vmatpush1.xpose.msra.mxu0 0.0
  %1974 = vmatprep.subr.mxu0 0.0
  %1975 = vmatpush1.xpose.msra.mxu0 0.0
  %1976 = vmatprep.subr.mxu0 0.0
  %1977 = vmatpush1.xpose.msra.mxu0 0.0
  %1978 = vmatprep.subr.mxu0 0.0
  %1979 = vmatpush1.xpose.msra.mxu0 0.0
  %1980 = vmatprep.subr.mxu0 0.0
  %1981 = vmatpush1.xpose.msra.mxu0 0.0
  %1982 = vmatprep.subr.mxu0 0.0
  %1983 = vmatpush1.xpose.msra.mxu0 0.0
  %1984 = vmatprep.subr.mxu0 0.0
  %1985 = vmatpush1.xpose.msra.mxu0 0.0
  %1986 = vmatprep.subr.mxu0 0.0
  %1987 = vmatpush1.xpose.msra.mxu0 0.0
  %1988 = vmatprep.subr.mxu0 0.0
  %1989 = vmatpush1.xpose.msra.mxu0 0.0
  %1990 = vmatprep.subr.mxu0 0.0
  %1991 = vmatpush1.xpose.msra.mxu0 0.0
  %1992 = vmatprep.subr.mxu0 0.0
  %1993 = vmatpush1.xpose.msra.mxu0 0.0
  %1994 = vmatprep.subr.mxu0 0.0
  %1995 = vmatpush1.xpose.msra.mxu0 0.0
  %1996 = vmatprep.subr.mxu0 0.0
  %1997 = vmatpush1.xpose.msra.mxu0 0.0
  %1998 = vmatprep.subr.mxu0 0.0
  %1999 = vmatpush1.xpose.msra.mxu0 0.0
  %2000 = vmatprep.subr.mxu0 0.0
  %2001 = vmatpush1.xpose.msra.mxu0 0.0
  %2002 = vmatprep.subr.mxu0 0.0
  %2003 = vmatpush1.xpose.msra.mxu0 0.0
  %2004 = vmatprep.subr.mxu0 0.0
  %2005 = vmatpush1.xpose.msra.mxu0 0.0
  %2006 = vmatprep.subr.mxu0 0.0
  %2007 = vmatpush1.xpose.msra.mxu0 0.0
  %2008 = vmatprep.subr.mxu0 0.0
  %2009 = vmatpush1.xpose.msra.mxu0 0.0
  %2010 = vmatprep.mubr.f32.mxu0 0.0
  %2011 = vmatmul.mubr.f32.gmra.mrb[0].mxu0 %v1867
  %v2012 = vpop.f32.mrb[0].mxu0
  %v2013 = vadd.f32 0.0, %v2012
  %v2014 = vpop.f32.mrb[0].mxu0
  %2015 = vdwg.mxu0
  %v2016 = vmul.f32 %v2013, 0.35355338
  %2018 = vrot.lane.b32.xlu0 %v1851, 124
  %v2019 = vpop.permute.xlu0 %2018
  %v2021 = vadd.f32 %v2016, %v2019
  %v2022 = vsel %vm368, %v1943, -inf
  %2023 = vmax.xlane.f32.xlu0 %v2022
  %v2024 = vpop.xlane.xlu0 %2023
  %v2025 = vsel %vm205, %v2021, -inf
  %2026 = vmax.xlane.f32.xlu0 %v2025
  %v2027 = vpop.xlane.xlu0 %2026
  %v2028 = vmax.f32 %v2024, %v2027
  %v2029 = vsub.f32 %v1943, %v2028
  %v2030 = vmul.f32 %v2029, 1.442695
  %v2031 = vpow.pop %v2030
  %v2032 = vsub.f32 %v2021, %v2028
  %v2033 = vmul.f32 %v2032, 1.442695
  %v2034 = vpow.pop %v2033
  %v2035 = vsel %vm368, %v2031, 0.0
  %2036 = vadd.xlane.f32.xlu0 %v2035
  %v2037 = vpop.xlane.xlu0 %2036
  %v2038 = vsel %vm205, %v2034, 0.0
  %2039 = vadd.xlane.f32.xlu0 %v2038
  %v2040 = vpop.xlane.xlu0 %2039
  %v2041 = vadd.f32 %v2037, %v2040
  %v2042 = vrcp.pop %v2041
  %v2044 = vsel %vm205, %v2034, 0
  %2046 = vmatprep.subr.mxu0 0.0
  %2047 = vmatpush1.msra.mxu0 %v1859
  %2048 = vmatprep.subr.mxu0 0.0
  %2049 = vmatpush1.msra.mxu0 0.0
  %2050 = vmatprep.subr.mxu0 0.0
  %2051 = vmatpush1.msra.mxu0 0.0
  %2052 = vmatprep.subr.mxu0 0.0
  %2053 = vmatpush1.msra.mxu0 0.0
  %2054 = vmatprep.subr.mxu0 0.0
  %2055 = vmatpush1.msra.mxu0 0.0
  %2056 = vmatprep.subr.mxu0 0.0
  %2057 = vmatpush1.msra.mxu0 0.0
  %2058 = vmatprep.subr.mxu0 0.0
  %2059 = vmatpush1.msra.mxu0 0.0
  %2060 = vmatprep.subr.mxu0 0.0
  %2061 = vmatpush1.msra.mxu0 0.0
  %2062 = vmatprep.subr.mxu0 0.0
  %2063 = vmatpush1.msra.mxu0 0.0
  %2064 = vmatprep.subr.mxu0 0.0
  %2065 = vmatpush1.msra.mxu0 0.0
  %2066 = vmatprep.subr.mxu0 0.0
  %2067 = vmatpush1.msra.mxu0 0.0
  %2068 = vmatprep.subr.mxu0 0.0
  %2069 = vmatpush1.msra.mxu0 0.0
  %2070 = vmatprep.subr.mxu0 0.0
  %2071 = vmatpush1.msra.mxu0 0.0
  %2072 = vmatprep.subr.mxu0 0.0
  %2073 = vmatpush1.msra.mxu0 0.0
  %2074 = vmatprep.subr.mxu0 0.0
  %2075 = vmatpush1.msra.mxu0 0.0
  %2076 = vmatprep.subr.mxu0 0.0
  %2077 = vmatpush1.msra.mxu0 0.0
  %2078 = vmatprep.subr.mxu0 0.0
  %2079 = vmatpush1.msra.mxu0 0.0
  %2080 = vmatprep.subr.mxu0 0.0
  %2081 = vmatpush1.msra.mxu0 0.0
  %2082 = vmatprep.subr.mxu0 0.0
  %2083 = vmatpush1.msra.mxu0 0.0
  %2084 = vmatprep.subr.mxu0 0.0
  %2085 = vmatpush1.msra.mxu0 0.0
  %2086 = vmatprep.subr.mxu0 0.0
  %2087 = vmatpush1.msra.mxu0 0.0
  %2088 = vmatprep.subr.mxu0 0.0
  %2089 = vmatpush1.msra.mxu0 0.0
  %2090 = vmatprep.subr.mxu0 0.0
  %2091 = vmatpush1.msra.mxu0 0.0
  %2092 = vmatprep.subr.mxu0 0.0
  %2093 = vmatpush1.msra.mxu0 0.0
  %2094 = vmatprep.subr.mxu0 0.0
  %2095 = vmatpush1.msra.mxu0 0.0
  %2096 = vmatprep.subr.mxu0 0.0
  %2097 = vmatpush1.msra.mxu0 0.0
  %2098 = vmatprep.subr.mxu0 0.0
  %2099 = vmatpush1.msra.mxu0 0.0
  %2100 = vmatprep.subr.mxu0 0.0
  %2101 = vmatpush1.msra.mxu0 0.0
  %2102 = vmatprep.subr.mxu0 0.0
  %2103 = vmatpush1.msra.mxu0 0.0
  %2104 = vmatprep.subr.mxu0 0.0
  %2105 = vmatpush1.msra.mxu0 0.0
  %2106 = vmatprep.subr.mxu0 0.0
  %2107 = vmatpush1.msra.mxu0 0.0
  %2108 = vmatprep.subr.mxu0 0.0
  %2109 = vmatpush1.msra.mxu0 0.0
  %2110 = vmatprep.mubr.f32.mxu0 0.0
  %2111 = vmatmul.mubr.f32.gmra.mrb[0].mxu0 %v2044
  %v2112 = vpop.f32.mrb[0].mxu0
  %v2113 = vadd.f32 0.0, %v2112
  %v2114 = vpop.f32.mrb[0].mxu0
  %2115 = vdwg.mxu0
  %v2117 = vsel %vm368, %v2031, 0
  %v2120 = vsel %vm466, %v1866, 0
  %2122 = vmatprep.subr.mxu0 0.0
  %2123 = vmatpush1.msra.mxu0 %v2120
  %2124 = vmatprep.subr.mxu0 0.0
  %2125 = vmatpush1.msra.mxu0 0.0
  %2126 = vmatprep.subr.mxu0 0.0
  %2127 = vmatpush1.msra.mxu0 0.0
  %2128 = vmatprep.subr.mxu0 0.0
  %2129 = vmatpush1.msra.mxu0 0.0
  %2130 = vmatprep.subr.mxu0 0.0
  %2131 = vmatpush1.msra.mxu0 0.0
  %2132 = vmatprep.subr.mxu0 0.0
  %2133 = vmatpush1.msra.mxu0 0.0
  %2134 = vmatprep.subr.mxu0 0.0
  %2135 = vmatpush1.msra.mxu0 0.0
  %2136 = vmatprep.subr.mxu0 0.0
  %2137 = vmatpush1.msra.mxu0 0.0
  %2138 = vmatprep.subr.mxu0 0.0
  %2139 = vmatpush1.msra.mxu0 0.0
  %2140 = vmatprep.subr.mxu0 0.0
  %2141 = vmatpush1.msra.mxu0 0.0
  %2142 = vmatprep.subr.mxu0 0.0
  %2143 = vmatpush1.msra.mxu0 0.0
  %2144 = vmatprep.subr.mxu0 0.0
  %2145 = vmatpush1.msra.mxu0 0.0
  %2146 = vmatprep.subr.mxu0 0.0
  %2147 = vmatpush1.msra.mxu0 0.0
  %2148 = vmatprep.subr.mxu0 0.0
  %2149 = vmatpush1.msra.mxu0 0.0
  %2150 = vmatprep.subr.mxu0 0.0
  %2151 = vmatpush1.msra.mxu0 0.0
  %2152 = vmatprep.subr.mxu0 0.0
  %2153 = vmatpush1.msra.mxu0 0.0
  %2154 = vmatprep.subr.mxu0 0.0
  %2155 = vmatpush1.msra.mxu0 0.0
  %2156 = vmatprep.subr.mxu0 0.0
  %2157 = vmatpush1.msra.mxu0 0.0
  %2158 = vmatprep.subr.mxu0 0.0
  %2159 = vmatpush1.msra.mxu0 0.0
  %2160 = vmatprep.subr.mxu0 0.0
  %2161 = vmatpush1.msra.mxu0 0.0
  %2162 = vmatprep.subr.mxu0 0.0
  %2163 = vmatpush1.msra.mxu0 0.0
  %2164 = vmatprep.subr.mxu0 0.0
  %2165 = vmatpush1.msra.mxu0 0.0
  %2166 = vmatprep.subr.mxu0 0.0
  %2167 = vmatpush1.msra.mxu0 0.0
  %2168 = vmatprep.subr.mxu0 0.0
  %2169 = vmatpush1.msra.mxu0 0.0
  %2170 = vmatprep.subr.mxu0 0.0
  %2171 = vmatpush1.msra.mxu0 0.0
  %2172 = vmatprep.subr.mxu0 0.0
  %2173 = vmatpush1.msra.mxu0 0.0
  %2174 = vmatprep.subr.mxu0 0.0
  %2175 = vmatpush1.msra.mxu0 0.0
  %2176 = vmatprep.subr.mxu0 0.0
  %2177 = vmatpush1.msra.mxu0 0.0
  %2178 = vmatprep.subr.mxu0 0.0
  %2179 = vmatpush1.msra.mxu0 0.0
  %2180 = vmatprep.subr.mxu0 0.0
  %2181 = vmatpush1.msra.mxu0 0.0
  %2182 = vmatprep.subr.mxu0 0.0
  %2183 = vmatpush1.msra.mxu0 0.0
  %2184 = vmatprep.subr.mxu0 0.0
  %2185 = vmatpush1.msra.mxu0 0.0
  %2186 = vmatprep.mubr.f32.mxu0 0.0
  %2187 = vmatmul.mubr.f32.gmra.mrb[0].mxu0 %v2117
  %v2188 = vpop.f32.mrb[0].mxu0
  %v2189 = vadd.f32 %v2113, %v2188
  %v2190 = vpop.f32.mrb[0].mxu0
  %2191 = vdwg.mxu0
  %v2192 = vmul.f32 %v2189, %v2042
  %2193 = vrot.lane.b32.xlu0 %v193, 88
  %v2194 = vpop.permute.xlu0 %2193
  %s2196 = scalar_lea.vmem %s17, 40
  %2197 = vst.msk [vmem:[%s2196] sm:$0xff] %vm205, %v2194
  %2198 = vrot.lane.b32.xlu0 %v193, 56
  %v2199 = vpop.permute.xlu0 %2198
  %s2201 = scalar_lea.vmem %s18, 40
  %2202 = vst.msk [vmem:[%s2201] sm:$0xff] %vm205, %v2199
  %s2203 = scalar_lea.vmem %s13, 20
  %v2204 = vld [vmem:[%s2203] sm:$0xf]
  %s2205 = scalar_lea.vmem %s14, 20
  %v2206 = vld [vmem:[%s2205] sm:$0xf]
  %2207 = vrot.lane.b32.xlu0 %v193, 120
  %v2208 = vpop.permute.xlu0 %2207
  %v2209 = vsel %vm205, %v2208, 0
  %v2212 = vsel %vm205, %v2204, 0
  %2214 = vmatprep.subr.mxu0 0.0
  %2215 = vmatpush1.xpose.msra.mxu0 %v2212
  %2216 = vmatprep.subr.mxu0 0.0
  %2217 = vmatpush1.xpose.msra.mxu0 0.0
  %2218 = vmatprep.subr.mxu0 0.0
  %2219 = vmatpush1.xpose.msra.mxu0 0.0
  %2220 = vmatprep.subr.mxu0 0.0
  %2221 = vmatpush1.xpose.msra.mxu0 0.0
  %2222 = vmatprep.subr.mxu0 0.0
  %2223 = vmatpush1.xpose.msra.mxu0 0.0
  %2224 = vmatprep.subr.mxu0 0.0
  %2225 = vmatpush1.xpose.msra.mxu0 0.0
  %2226 = vmatprep.subr.mxu0 0.0
  %2227 = vmatpush1.xpose.msra.mxu0 0.0
  %2228 = vmatprep.subr.mxu0 0.0
  %2229 = vmatpush1.xpose.msra.mxu0 0.0
  %2230 = vmatprep.subr.mxu0 0.0
  %2231 = vmatpush1.xpose.msra.mxu0 0.0
  %2232 = vmatprep.subr.mxu0 0.0
  %2233 = vmatpush1.xpose.msra.mxu0 0.0
  %2234 = vmatprep.subr.mxu0 0.0
  %2235 = vmatpush1.xpose.msra.mxu0 0.0
  %2236 = vmatprep.subr.mxu0 0.0
  %2237 = vmatpush1.xpose.msra.mxu0 0.0
  %2238 = vmatprep.subr.mxu0 0.0
  %2239 = vmatpush1.xpose.msra.mxu0 0.0
  %2240 = vmatprep.subr.mxu0 0.0
  %2241 = vmatpush1.xpose.msra.mxu0 0.0
  %2242 = vmatprep.subr.mxu0 0.0
  %2243 = vmatpush1.xpose.msra.mxu0 0.0
  %2244 = vmatprep.subr.mxu0 0.0
  %2245 = vmatpush1.xpose.msra.mxu0 0.0
  %2246 = vmatprep.subr.mxu0 0.0
  %2247 = vmatpush1.xpose.msra.mxu0 0.0
  %2248 = vmatprep.subr.mxu0 0.0
  %2249 = vmatpush1.xpose.msra.mxu0 0.0
  %2250 = vmatprep.subr.mxu0 0.0
  %2251 = vmatpush1.xpose.msra.mxu0 0.0
  %2252 = vmatprep.subr.mxu0 0.0
  %2253 = vmatpush1.xpose.msra.mxu0 0.0
  %2254 = vmatprep.subr.mxu0 0.0
  %2255 = vmatpush1.xpose.msra.mxu0 0.0
  %2256 = vmatprep.subr.mxu0 0.0
  %2257 = vmatpush1.xpose.msra.mxu0 0.0
  %2258 = vmatprep.subr.mxu0 0.0
  %2259 = vmatpush1.xpose.msra.mxu0 0.0
  %2260 = vmatprep.subr.mxu0 0.0
  %2261 = vmatpush1.xpose.msra.mxu0 0.0
  %2262 = vmatprep.subr.mxu0 0.0
  %2263 = vmatpush1.xpose.msra.mxu0 0.0
  %2264 = vmatprep.subr.mxu0 0.0
  %2265 = vmatpush1.xpose.msra.mxu0 0.0
  %2266 = vmatprep.subr.mxu0 0.0
  %2267 = vmatpush1.xpose.msra.mxu0 0.0
  %2268 = vmatprep.subr.mxu0 0.0
  %2269 = vmatpush1.xpose.msra.mxu0 0.0
  %2270 = vmatprep.subr.mxu0 0.0
  %2271 = vmatpush1.xpose.msra.mxu0 0.0
  %2272 = vmatprep.subr.mxu0 0.0
  %2273 = vmatpush1.xpose.msra.mxu0 0.0
  %2274 = vmatprep.subr.mxu0 0.0
  %2275 = vmatpush1.xpose.msra.mxu0 0.0
  %2276 = vmatprep.subr.mxu0 0.0
  %2277 = vmatpush1.xpose.msra.mxu0 0.0
  %2278 = vmatprep.mubr.f32.mxu0 0.0
  %2279 = vmatmul.mubr.f32.gmra.mrb[0].mxu0 %v2209
  %v2280 = vpop.f32.mrb[0].mxu0
  %v2281 = vadd.f32 0.0, %v2280
  %v2282 = vpop.f32.mrb[0].mxu0
  %2283 = vdwg.mxu0
  %v2284 = vmul.f32 %v2281, 0.35355338
  %v2285 = vadd.f32 %v2284, %v1851
  %v2286 = vsel %vm205, %v2194, 0
  %2288 = vmatprep.subr.mxu0 0.0
  %2289 = vmatpush1.xpose.msra.mxu0 %v2286
  %2290 = vmatprep.subr.mxu0 0.0
  %2291 = vmatpush1.xpose.msra.mxu0 0.0
  %2292 = vmatprep.subr.mxu0 0.0
  %2293 = vmatpush1.xpose.msra.mxu0 0.0
  %2294 = vmatprep.subr.mxu0 0.0
  %2295 = vmatpush1.xpose.msra.mxu0 0.0
  %2296 = vmatprep.subr.mxu0 0.0
  %2297 = vmatpush1.xpose.msra.mxu0 0.0
  %2298 = vmatprep.subr.mxu0 0.0
  %2299 = vmatpush1.xpose.msra.mxu0 0.0
  %2300 = vmatprep.subr.mxu0 0.0
  %2301 = vmatpush1.xpose.msra.mxu0 0.0
  %2302 = vmatprep.subr.mxu0 0.0
  %2303 = vmatpush1.xpose.msra.mxu0 0.0
  %2304 = vmatprep.subr.mxu0 0.0
  %2305 = vmatpush1.xpose.msra.mxu0 0.0
  %2306 = vmatprep.subr.mxu0 0.0
  %2307 = vmatpush1.xpose.msra.mxu0 0.0
  %2308 = vmatprep.subr.mxu0 0.0
  %2309 = vmatpush1.xpose.msra.mxu0 0.0
  %2310 = vmatprep.subr.mxu0 0.0
  %2311 = vmatpush1.xpose.msra.mxu0 0.0
  %2312 = vmatprep.subr.mxu0 0.0
  %2313 = vmatpush1.xpose.msra.mxu0 0.0
  %2314 = vmatprep.subr.mxu0 0.0
  %2315 = vmatpush1.xpose.msra.mxu0 0.0
  %2316 = vmatprep.subr.mxu0 0.0
  %2317 = vmatpush1.xpose.msra.mxu0 0.0
  %2318 = vmatprep.subr.mxu0 0.0
  %2319 = vmatpush1.xpose.msra.mxu0 0.0
  %2320 = vmatprep.subr.mxu0 0.0
  %2321 = vmatpush1.xpose.msra.mxu0 0.0
  %2322 = vmatprep.subr.mxu0 0.0
  %2323 = vmatpush1.xpose.msra.mxu0 0.0
  %2324 = vmatprep.subr.mxu0 0.0
  %2325 = vmatpush1.xpose.msra.mxu0 0.0
  %2326 = vmatprep.subr.mxu0 0.0
  %2327 = vmatpush1.xpose.msra.mxu0 0.0
  %2328 = vmatprep.subr.mxu0 0.0
  %2329 = vmatpush1.xpose.msra.mxu0 0.0
  %2330 = vmatprep.subr.mxu0 0.0
  %2331 = vmatpush1.xpose.msra.mxu0 0.0
  %2332 = vmatprep.subr.mxu0 0.0
  %2333 = vmatpush1.xpose.msra.mxu0 0.0
  %2334 = vmatprep.subr.mxu0 0.0
  %2335 = vmatpush1.xpose.msra.mxu0 0.0
  %2336 = vmatprep.subr.mxu0 0.0
  %2337 = vmatpush1.xpose.msra.mxu0 0.0
  %2338 = vmatprep.subr.mxu0 0.0
  %2339 = vmatpush1.xpose.msra.mxu0 0.0
  %2340 = vmatprep.subr.mxu0 0.0
  %2341 = vmatpush1.xpose.msra.mxu0 0.0
  %2342 = vmatprep.subr.mxu0 0.0
  %2343 = vmatpush1.xpose.msra.mxu0 0.0
  %2344 = vmatprep.subr.mxu0 0.0
  %2345 = vmatpush1.xpose.msra.mxu0 0.0
  %2346 = vmatprep.subr.mxu0 0.0
  %2347 = vmatpush1.xpose.msra.mxu0 0.0
  %2348 = vmatprep.subr.mxu0 0.0
  %2349 = vmatpush1.xpose.msra.mxu0 0.0
  %2350 = vmatprep.subr.mxu0 0.0
  %2351 = vmatpush1.xpose.msra.mxu0 0.0
  %2352 = vmatprep.mubr.f32.mxu0 0.0
  %2353 = vmatmul.mubr.f32.gmra.mrb[0].mxu0 %v2209
  %v2354 = vpop.f32.mrb[0].mxu0
  %v2355 = vadd.f32 0.0, %v2354
  %v2356 = vpop.f32.mrb[0].mxu0
  %2357 = vdwg.mxu0
  %v2358 = vmul.f32 %v2355, 0.35355338
  %v2359 = vadd.f32 %v2358, %v2019
  %v2360 = vsel %vm368, %v2285, -inf
  %2361 = vmax.xlane.f32.xlu0 %v2360
  %v2362 = vpop.xlane.xlu0 %2361
  %v2363 = vsel %vm205, %v2359, -inf
  %2364 = vmax.xlane.f32.xlu0 %v2363
  %v2365 = vpop.xlane.xlu0 %2364
  %v2366 = vmax.f32 %v2362, %v2365
  %v2367 = vsub.f32 %v2285, %v2366
  %v2368 = vmul.f32 %v2367, 1.442695
  %v2369 = vpow.pop %v2368
  %v2370 = vsub.f32 %v2359, %v2366
  %v2371 = vmul.f32 %v2370, 1.442695
  %v2372 = vpow.pop %v2371
  %v2373 = vsel %vm368, %v2369, 0.0
  %2374 = vadd.xlane.f32.xlu0 %v2373
  %v2375 = vpop.xlane.xlu0 %2374
  %v2376 = vsel %vm205, %v2372, 0.0
  %2377 = vadd.xlane.f32.xlu0 %v2376
  %v2378 = vpop.xlane.xlu0 %2377
  %v2379 = vadd.f32 %v2375, %v2378
  %v2380 = vrcp.pop %v2379
  %v2382 = vsel %vm205, %v2372, 0
  %2384 = vmatprep.subr.mxu0 0.0
  %2385 = vmatpush1.msra.mxu0 %v2199
  %2386 = vmatprep.subr.mxu0 0.0
  %2387 = vmatpush1.msra.mxu0 0.0
  %2388 = vmatprep.subr.mxu0 0.0
  %2389 = vmatpush1.msra.mxu0 0.0
  %2390 = vmatprep.subr.mxu0 0.0
  %2391 = vmatpush1.msra.mxu0 0.0
  %2392 = vmatprep.subr.mxu0 0.0
  %2393 = vmatpush1.msra.mxu0 0.0
  %2394 = vmatprep.subr.mxu0 0.0
  %2395 = vmatpush1.msra.mxu0 0.0
  %2396 = vmatprep.subr.mxu0 0.0
  %2397 = vmatpush1.msra.mxu0 0.0
  %2398 = vmatprep.subr.mxu0 0.0
  %2399 = vmatpush1.msra.mxu0 0.0
  %2400 = vmatprep.subr.mxu0 0.0
  %2401 = vmatpush1.msra.mxu0 0.0
  %2402 = vmatprep.subr.mxu0 0.0
  %2403 = vmatpush1.msra.mxu0 0.0
  %2404 = vmatprep.subr.mxu0 0.0
  %2405 = vmatpush1.msra.mxu0 0.0
  %2406 = vmatprep.subr.mxu0 0.0
  %2407 = vmatpush1.msra.mxu0 0.0
  %2408 = vmatprep.subr.mxu0 0.0
  %2409 = vmatpush1.msra.mxu0 0.0
  %2410 = vmatprep.subr.mxu0 0.0
  %2411 = vmatpush1.msra.mxu0 0.0
  %2412 = vmatprep.subr.mxu0 0.0
  %2413 = vmatpush1.msra.mxu0 0.0
  %2414 = vmatprep.subr.mxu0 0.0
  %2415 = vmatpush1.msra.mxu0 0.0
  %2416 = vmatprep.subr.mxu0 0.0
  %2417 = vmatpush1.msra.mxu0 0.0
  %2418 = vmatprep.subr.mxu0 0.0
  %2419 = vmatpush1.msra.mxu0 0.0
  %2420 = vmatprep.subr.mxu0 0.0
  %2421 = vmatpush1.msra.mxu0 0.0
  %2422 = vmatprep.subr.mxu0 0.0
  %2423 = vmatpush1.msra.mxu0 0.0
  %2424 = vmatprep.subr.mxu0 0.0
  %2425 = vmatpush1.msra.mxu0 0.0
  %2426 = vmatprep.subr.mxu0 0.0
  %2427 = vmatpush1.msra.mxu0 0.0
  %2428 = vmatprep.subr.mxu0 0.0
  %2429 = vmatpush1.msra.mxu0 0.0
  %2430 = vmatprep.subr.mxu0 0.0
  %2431 = vmatpush1.msra.mxu0 0.0
  %2432 = vmatprep.subr.mxu0 0.0
  %2433 = vmatpush1.msra.mxu0 0.0
  %2434 = vmatprep.subr.mxu0 0.0
  %2435 = vmatpush1.msra.mxu0 0.0
  %2436 = vmatprep.subr.mxu0 0.0
  %2437 = vmatpush1.msra.mxu0 0.0
  %2438 = vmatprep.subr.mxu0 0.0
  %2439 = vmatpush1.msra.mxu0 0.0
  %2440 = vmatprep.subr.mxu0 0.0
  %2441 = vmatpush1.msra.mxu0 0.0
  %2442 = vmatprep.subr.mxu0 0.0
  %2443 = vmatpush1.msra.mxu0 0.0
  %2444 = vmatprep.subr.mxu0 0.0
  %2445 = vmatpush1.msra.mxu0 0.0
  %2446 = vmatprep.subr.mxu0 0.0
  %2447 = vmatpush1.msra.mxu0 0.0
  %2448 = vmatprep.mubr.f32.mxu0 0.0
  %2449 = vmatmul.mubr.f32.gmra.mrb[0].mxu0 %v2382
  %v2450 = vpop.f32.mrb[0].mxu0
  %v2451 = vadd.f32 0.0, %v2450
  %v2452 = vpop.f32.mrb[0].mxu0
  %2453 = vdwg.mxu0
  %v2455 = vsel %vm368, %v2369, 0
  %v2458 = vsel %vm466, %v2206, 0
  %2460 = vmatprep.subr.mxu0 0.0
  %2461 = vmatpush1.msra.mxu0 %v2458
  %2462 = vmatprep.subr.mxu0 0.0
  %2463 = vmatpush1.msra.mxu0 0.0
  %2464 = vmatprep.subr.mxu0 0.0
  %2465 = vmatpush1.msra.mxu0 0.0
  %2466 = vmatprep.subr.mxu0 0.0
  %2467 = vmatpush1.msra.mxu0 0.0
  %2468 = vmatprep.subr.mxu0 0.0
  %2469 = vmatpush1.msra.mxu0 0.0
  %2470 = vmatprep.subr.mxu0 0.0
  %2471 = vmatpush1.msra.mxu0 0.0
  %2472 = vmatprep.subr.mxu0 0.0
  %2473 = vmatpush1.msra.mxu0 0.0
  %2474 = vmatprep.subr.mxu0 0.0
  %2475 = vmatpush1.msra.mxu0 0.0
  %2476 = vmatprep.subr.mxu0 0.0
  %2477 = vmatpush1.msra.mxu0 0.0
  %2478 = vmatprep.subr.mxu0 0.0
  %2479 = vmatpush1.msra.mxu0 0.0
  %2480 = vmatprep.subr.mxu0 0.0
  %2481 = vmatpush1.msra.mxu0 0.0
  %2482 = vmatprep.subr.mxu0 0.0
  %2483 = vmatpush1.msra.mxu0 0.0
  %2484 = vmatprep.subr.mxu0 0.0
  %2485 = vmatpush1.msra.mxu0 0.0
  %2486 = vmatprep.subr.mxu0 0.0
  %2487 = vmatpush1.msra.mxu0 0.0
  %2488 = vmatprep.subr.mxu0 0.0
  %2489 = vmatpush1.msra.mxu0 0.0
  %2490 = vmatprep.subr.mxu0 0.0
  %2491 = vmatpush1.msra.mxu0 0.0
  %2492 = vmatprep.subr.mxu0 0.0
  %2493 = vmatpush1.msra.mxu0 0.0
  %2494 = vmatprep.subr.mxu0 0.0
  %2495 = vmatpush1.msra.mxu0 0.0
  %2496 = vmatprep.subr.mxu0 0.0
  %2497 = vmatpush1.msra.mxu0 0.0
  %2498 = vmatprep.subr.mxu0 0.0
  %2499 = vmatpush1.msra.mxu0 0.0
  %2500 = vmatprep.subr.mxu0 0.0
  %2501 = vmatpush1.msra.mxu0 0.0
  %2502 = vmatprep.subr.mxu0 0.0
  %2503 = vmatpush1.msra.mxu0 0.0
  %2504 = vmatprep.subr.mxu0 0.0
  %2505 = vmatpush1.msra.mxu0 0.0
  %2506 = vmatprep.subr.mxu0 0.0
  %2507 = vmatpush1.msra.mxu0 0.0
  %2508 = vmatprep.subr.mxu0 0.0
  %2509 = vmatpush1.msra.mxu0 0.0
  %2510 = vmatprep.subr.mxu0 0.0
  %2511 = vmatpush1.msra.mxu0 0.0
  %2512 = vmatprep.subr.mxu0 0.0
  %2513 = vmatpush1.msra.mxu0 0.0
  %2514 = vmatprep.subr.mxu0 0.0
  %2515 = vmatpush1.msra.mxu0 0.0
  %2516 = vmatprep.subr.mxu0 0.0
  %2517 = vmatpush1.msra.mxu0 0.0
  %2518 = vmatprep.subr.mxu0 0.0
  %2519 = vmatpush1.msra.mxu0 0.0
  %2520 = vmatprep.subr.mxu0 0.0
  %2521 = vmatpush1.msra.mxu0 0.0
  %2522 = vmatprep.subr.mxu0 0.0
  %2523 = vmatpush1.msra.mxu0 0.0
  %2524 = vmatprep.mubr.f32.mxu0 0.0
  %2525 = vmatmul.mubr.f32.gmra.mrb[0].mxu0 %v2455
  %v2526 = vpop.f32.mrb[0].mxu0
  %v2527 = vadd.f32 %v2451, %v2526
  %v2528 = vpop.f32.mrb[0].mxu0
  %2529 = vdwg.mxu0
  %v2530 = vmul.f32 %v2527, %v2380
  %v2532 = vsel %vm205, %v2530, 0
  %2534 = vmatprep.subr.mxu0 0.0
  %2535 = vmatpush1.msra.mxu0 %v197
  %2536 = vmatprep.subr.mxu0 0.0
  %2537 = vmatpush1.msra.mxu0 0.0
  %2538 = vmatprep.subr.mxu0 0.0
  %2539 = vmatpush1.msra.mxu0 0.0
  %2540 = vmatprep.subr.mxu0 0.0
  %2541 = vmatpush1.msra.mxu0 0.0
  %2542 = vmatprep.subr.mxu0 0.0
  %2543 = vmatpush1.msra.mxu0 0.0
  %2544 = vmatprep.subr.mxu0 0.0
  %2545 = vmatpush1.msra.mxu0 0.0
  %2546 = vmatprep.subr.mxu0 0.0
  %2547 = vmatpush1.msra.mxu0 0.0
  %2548 = vmatprep.subr.mxu0 0.0
  %2549 = vmatpush1.msra.mxu0 0.0
  %2550 = vmatprep.subr.mxu0 0.0
  %2551 = vmatpush1.msra.mxu0 0.0
  %2552 = vmatprep.subr.mxu0 0.0
  %2553 = vmatpush1.msra.mxu0 0.0
  %2554 = vmatprep.subr.mxu0 0.0
  %2555 = vmatpush1.msra.mxu0 0.0
  %2556 = vmatprep.subr.mxu0 0.0
  %2557 = vmatpush1.msra.mxu0 0.0
  %2558 = vmatprep.subr.mxu0 0.0
  %2559 = vmatpush1.msra.mxu0 0.0
  %2560 = vmatprep.subr.mxu0 0.0
  %2561 = vmatpush1.msra.mxu0 0.0
  %2562 = vmatprep.subr.mxu0 0.0
  %2563 = vmatpush1.msra.mxu0 0.0
  %2564 = vmatprep.subr.mxu0 0.0
  %2565 = vmatpush1.msra.mxu0 0.0
  %2566 = vmatprep.subr.mxu0 0.0
  %2567 = vmatpush1.msra.mxu0 0.0
  %2568 = vmatprep.subr.mxu0 0.0
  %2569 = vmatpush1.msra.mxu0 0.0
  %2570 = vmatprep.subr.mxu0 0.0
  %2571 = vmatpush1.msra.mxu0 0.0
  %2572 = vmatprep.subr.mxu0 0.0
  %2573 = vmatpush1.msra.mxu0 0.0
  %2574 = vmatprep.subr.mxu0 0.0
  %2575 = vmatpush1.msra.mxu0 0.0
  %2576 = vmatprep.subr.mxu0 0.0
  %2577 = vmatpush1.msra.mxu0 0.0
  %2578 = vmatprep.subr.mxu0 0.0
  %2579 = vmatpush1.msra.mxu0 0.0
  %2580 = vmatprep.subr.mxu0 0.0
  %2581 = vmatpush1.msra.mxu0 0.0
  %2582 = vmatprep.subr.mxu0 0.0
  %2583 = vmatpush1.msra.mxu0 0.0
  %2584 = vmatprep.subr.mxu0 0.0
  %2585 = vmatpush1.msra.mxu0 0.0
  %2586 = vmatprep.subr.mxu0 0.0
  %2587 = vmatpush1.msra.mxu0 0.0
  %2588 = vmatprep.subr.mxu0 0.0
  %2589 = vmatpush1.msra.mxu0 0.0
  %2590 = vmatprep.subr.mxu0 0.0
  %2591 = vmatpush1.msra.mxu0 0.0
  %2592 = vmatprep.subr.mxu0 0.0
  %2593 = vmatpush1.msra.mxu0 0.0
  %2594 = vmatprep.subr.mxu0 0.0
  %2595 = vmatpush1.msra.mxu0 0.0
  %2596 = vmatprep.subr.mxu0 0.0
  %2597 = vmatpush1.msra.mxu0 0.0
  %2598 = vmatprep.mubr.f32.mxu0 0.0
  %2599 = vmatmul.mubr.f32.gmra.mrb[0].mxu0 %v2532
  %v2600 = vpop.f32.mrb[0].mxu0
  %v2601 = vadd.f32 0.0, %v2600
  %v2602 = vpop.f32.mrb[0].mxu0
  %2603 = vdwg.mxu0
  %v2605 = vsel %vm205, %v2192, 0
  %2607 = vmatprep.subr.mxu0 0.0
  %2608 = vmatpush1.msra.mxu0 %v196
  %2609 = vmatprep.subr.mxu0 0.0
  %2610 = vmatpush1.msra.mxu0 0.0
  %2611 = vmatprep.subr.mxu0 0.0
  %2612 = vmatpush1.msra.mxu0 0.0
  %2613 = vmatprep.subr.mxu0 0.0
  %2614 = vmatpush1.msra.mxu0 0.0
  %2615 = vmatprep.subr.mxu0 0.0
  %2616 = vmatpush1.msra.mxu0 0.0
  %2617 = vmatprep.subr.mxu0 0.0
  %2618 = vmatpush1.msra.mxu0 0.0
  %2619 = vmatprep.subr.mxu0 0.0
  %2620 = vmatpush1.msra.mxu0 0.0
  %2621 = vmatprep.subr.mxu0 0.0
  %2622 = vmatpush1.msra.mxu0 0.0
  %2623 = vmatprep.subr.mxu0 0.0
  %2624 = vmatpush1.msra.mxu0 0.0
  %2625 = vmatprep.subr.mxu0 0.0
  %2626 = vmatpush1.msra.mxu0 0.0
  %2627 = vmatprep.subr.mxu0 0.0
  %2628 = vmatpush1.msra.mxu0 0.0
  %2629 = vmatprep.subr.mxu0 0.0
  %2630 = vmatpush1.msra.mxu0 0.0
  %2631 = vmatprep.subr.mxu0 0.0
  %2632 = vmatpush1.msra.mxu0 0.0
  %2633 = vmatprep.subr.mxu0 0.0
  %2634 = vmatpush1.msra.mxu0 0.0
  %2635 = vmatprep.subr.mxu0 0.0
  %2636 = vmatpush1.msra.mxu0 0.0
  %2637 = vmatprep.subr.mxu0 0.0
  %2638 = vmatpush1.msra.mxu0 0.0
  %2639 = vmatprep.subr.mxu0 0.0
  %2640 = vmatpush1.msra.mxu0 0.0
  %2641 = vmatprep.subr.mxu0 0.0
  %2642 = vmatpush1.msra.mxu0 0.0
  %2643 = vmatprep.subr.mxu0 0.0
  %2644 = vmatpush1.msra.mxu0 0.0
  %2645 = vmatprep.subr.mxu0 0.0
  %2646 = vmatpush1.msra.mxu0 0.0
  %2647 = vmatprep.subr.mxu0 0.0
  %2648 = vmatpush1.msra.mxu0 0.0
  %2649 = vmatprep.subr.mxu0 0.0
  %2650 = vmatpush1.msra.mxu0 0.0
  %2651 = vmatprep.subr.mxu0 0.0
  %2652 = vmatpush1.msra.mxu0 0.0
  %2653 = vmatprep.subr.mxu0 0.0
  %2654 = vmatpush1.msra.mxu0 0.0
  %2655 = vmatprep.subr.mxu0 0.0
  %2656 = vmatpush1.msra.mxu0 0.0
  %2657 = vmatprep.subr.mxu0 0.0
  %2658 = vmatpush1.msra.mxu0 0.0
  %2659 = vmatprep.subr.mxu0 0.0
  %2660 = vmatpush1.msra.mxu0 0.0
  %2661 = vmatprep.subr.mxu0 0.0
  %2662 = vmatpush1.msra.mxu0 0.0
  %2663 = vmatprep.subr.mxu0 0.0
  %2664 = vmatpush1.msra.mxu0 0.0
  %2665 = vmatprep.subr.mxu0 0.0
  %2666 = vmatpush1.msra.mxu0 0.0
  %2667 = vmatprep.subr.mxu0 0.0
  %2668 = vmatpush1.msra.mxu0 0.0
  %2669 = vmatprep.subr.mxu0 0.0
  %2670 = vmatpush1.msra.mxu0 0.0
  %2671 = vmatprep.mubr.f32.mxu0 0.0
  %2672 = vmatmul.mubr.f32.gmra.mrb[0].mxu0 %v2605
  %v2673 = vpop.f32.mrb[0].mxu0
  %v2674 = vadd.f32 %v2601, %v2673
  %v2675 = vpop.f32.mrb[0].mxu0
  %2676 = vdwg.mxu0
  %2677 = vrot.lane.b32.xlu0 %v193, 80
  %v2678 = vpop.permute.xlu0 %2677
  %s2680 = scalar_lea.vmem %s17, 48
  %2681 = vst.msk [vmem:[%s2680] sm:$0xff] %vm205, %v2678
  %2682 = vrot.lane.b32.xlu0 %v193, 48
  %v2683 = vpop.permute.xlu0 %2682
  %s2685 = scalar_lea.vmem %s18, 48
  %2686 = vst.msk [vmem:[%s2685] sm:$0xff] %vm205, %v2683
  %s2687 = scalar_lea.vmem %s13, 24
  %v2688 = vld [vmem:[%s2687] sm:$0xf]
  %s2689 = scalar_lea.vmem %s14, 24
  %v2690 = vld [vmem:[%s2689] sm:$0xf]
  %2691 = vrot.lane.b32.xlu0 %v193, 112
  %v2692 = vpop.permute.xlu0 %2691
  %v2693 = vsel %vm205, %v2692, 0
  %v2696 = vsel %vm205, %v2688, 0
  %2698 = vmatprep.subr.mxu0 0.0
  %2699 = vmatpush1.xpose.msra.mxu0 %v2696
  %2700 = vmatprep.subr.mxu0 0.0
  %2701 = vmatpush1.xpose.msra.mxu0 0.0
  %2702 = vmatprep.subr.mxu0 0.0
  %2703 = vmatpush1.xpose.msra.mxu0 0.0
  %2704 = vmatprep.subr.mxu0 0.0
  %2705 = vmatpush1.xpose.msra.mxu0 0.0
  %2706 = vmatprep.subr.mxu0 0.0
  %2707 = vmatpush1.xpose.msra.mxu0 0.0
  %2708 = vmatprep.subr.mxu0 0.0
  %2709 = vmatpush1.xpose.msra.mxu0 0.0
  %2710 = vmatprep.subr.mxu0 0.0
  %2711 = vmatpush1.xpose.msra.mxu0 0.0
  %2712 = vmatprep.subr.mxu0 0.0
  %2713 = vmatpush1.xpose.msra.mxu0 0.0
  %2714 = vmatprep.subr.mxu0 0.0
  %2715 = vmatpush1.xpose.msra.mxu0 0.0
  %2716 = vmatprep.subr.mxu0 0.0
  %2717 = vmatpush1.xpose.msra.mxu0 0.0
  %2718 = vmatprep.subr.mxu0 0.0
  %2719 = vmatpush1.xpose.msra.mxu0 0.0
  %2720 = vmatprep.subr.mxu0 0.0
  %2721 = vmatpush1.xpose.msra.mxu0 0.0
  %2722 = vmatprep.subr.mxu0 0.0
  %2723 = vmatpush1.xpose.msra.mxu0 0.0
  %2724 = vmatprep.subr.mxu0 0.0
  %2725 = vmatpush1.xpose.msra.mxu0 0.0
  %2726 = vmatprep.subr.mxu0 0.0
  %2727 = vmatpush1.xpose.msra.mxu0 0.0
  %2728 = vmatprep.subr.mxu0 0.0
  %2729 = vmatpush1.xpose.msra.mxu0 0.0
  %2730 = vmatprep.subr.mxu0 0.0
  %2731 = vmatpush1.xpose.msra.mxu0 0.0
  %2732 = vmatprep.subr.mxu0 0.0
  %2733 = vmatpush1.xpose.msra.mxu0 0.0
  %2734 = vmatprep.subr.mxu0 0.0
  %2735 = vmatpush1.xpose.msra.mxu0 0.0
  %2736 = vmatprep.subr.mxu0 0.0
  %2737 = vmatpush1.xpose.msra.mxu0 0.0
  %2738 = vmatprep.subr.mxu0 0.0
  %2739 = vmatpush1.xpose.msra.mxu0 0.0
  %2740 = vmatprep.subr.mxu0 0.0
  %2741 = vmatpush1.xpose.msra.mxu0 0.0
  %2742 = vmatprep.subr.mxu0 0.0
  %2743 = vmatpush1.xpose.msra.mxu0 0.0
  %2744 = vmatprep.subr.mxu0 0.0
  %2745 = vmatpush1.xpose.msra.mxu0 0.0
  %2746 = vmatprep.subr.mxu0 0.0
  %2747 = vmatpush1.xpose.msra.mxu0 0.0
  %2748 = vmatprep.subr.mxu0 0.0
  %2749 = vmatpush1.xpose.msra.mxu0 0.0
  %2750 = vmatprep.subr.mxu0 0.0
  %2751 = vmatpush1.xpose.msra.mxu0 0.0
  %2752 = vmatprep.subr.mxu0 0.0
  %2753 = vmatpush1.xpose.msra.mxu0 0.0
  %2754 = vmatprep.subr.mxu0 0.0
  %2755 = vmatpush1.xpose.msra.mxu0 0.0
  %2756 = vmatprep.subr.mxu0 0.0
  %2757 = vmatpush1.xpose.msra.mxu0 0.0
  %2758 = vmatprep.subr.mxu0 0.0
  %2759 = vmatpush1.xpose.msra.mxu0 0.0
  %2760 = vmatprep.subr.mxu0 0.0
  %2761 = vmatpush1.xpose.msra.mxu0 0.0
  %2762 = vmatprep.mubr.f32.mxu0 0.0
  %2763 = vmatmul.mubr.f32.gmra.mrb[0].mxu0 %v2693
  %v2764 = vpop.f32.mrb[0].mxu0
  %v2765 = vadd.f32 0.0, %v2764
  %v2766 = vpop.f32.mrb[0].mxu0
  %2767 = vdwg.mxu0
  %v2768 = vmul.f32 %v2765, 0.35355338
  %v2769 = vadd.f32 %v2768, %v1851
  %v2770 = vsel %vm205, %v2678, 0
  %2772 = vmatprep.subr.mxu0 0.0
  %2773 = vmatpush1.xpose.msra.mxu0 %v2770
  %2774 = vmatprep.subr.mxu0 0.0
  %2775 = vmatpush1.xpose.msra.mxu0 0.0
  %2776 = vmatprep.subr.mxu0 0.0
  %2777 = vmatpush1.xpose.msra.mxu0 0.0
  %2778 = vmatprep.subr.mxu0 0.0
  %2779 = vmatpush1.xpose.msra.mxu0 0.0
  %2780 = vmatprep.subr.mxu0 0.0
  %2781 = vmatpush1.xpose.msra.mxu0 0.0
  %2782 = vmatprep.subr.mxu0 0.0
  %2783 = vmatpush1.xpose.msra.mxu0 0.0
  %2784 = vmatprep.subr.mxu0 0.0
  %2785 = vmatpush1.xpose.msra.mxu0 0.0
  %2786 = vmatprep.subr.mxu0 0.0
  %2787 = vmatpush1.xpose.msra.mxu0 0.0
  %2788 = vmatprep.subr.mxu0 0.0
  %2789 = vmatpush1.xpose.msra.mxu0 0.0
  %2790 = vmatprep.subr.mxu0 0.0
  %2791 = vmatpush1.xpose.msra.mxu0 0.0
  %2792 = vmatprep.subr.mxu0 0.0
  %2793 = vmatpush1.xpose.msra.mxu0 0.0
  %2794 = vmatprep.subr.mxu0 0.0
  %2795 = vmatpush1.xpose.msra.mxu0 0.0
  %2796 = vmatprep.subr.mxu0 0.0
  %2797 = vmatpush1.xpose.msra.mxu0 0.0
  %2798 = vmatprep.subr.mxu0 0.0
  %2799 = vmatpush1.xpose.msra.mxu0 0.0
  %2800 = vmatprep.subr.mxu0 0.0
  %2801 = vmatpush1.xpose.msra.mxu0 0.0
  %2802 = vmatprep.subr.mxu0 0.0
  %2803 = vmatpush1.xpose.msra.mxu0 0.0
  %2804 = vmatprep.subr.mxu0 0.0
  %2805 = vmatpush1.xpose.msra.mxu0 0.0
  %2806 = vmatprep.subr.mxu0 0.0
  %2807 = vmatpush1.xpose.msra.mxu0 0.0
  %2808 = vmatprep.subr.mxu0 0.0
  %2809 = vmatpush1.xpose.msra.mxu0 0.0
  %2810 = vmatprep.subr.mxu0 0.0
  %2811 = vmatpush1.xpose.msra.mxu0 0.0
  %2812 = vmatprep.subr.mxu0 0.0
  %2813 = vmatpush1.xpose.msra.mxu0 0.0
  %2814 = vmatprep.subr.mxu0 0.0
  %2815 = vmatpush1.xpose.msra.mxu0 0.0
  %2816 = vmatprep.subr.mxu0 0.0
  %2817 = vmatpush1.xpose.msra.mxu0 0.0
  %2818 = vmatprep.subr.mxu0 0.0
  %2819 = vmatpush1.xpose.msra.mxu0 0.0
  %2820 = vmatprep.subr.mxu0 0.0
  %2821 = vmatpush1.xpose.msra.mxu0 0.0
  %2822 = vmatprep.subr.mxu0 0.0
  %2823 = vmatpush1.xpose.msra.mxu0 0.0
  %2824 = vmatprep.subr.mxu0 0.0
  %2825 = vmatpush1.xpose.msra.mxu0 0.0
  %2826 = vmatprep.subr.mxu0 0.0
  %2827 = vmatpush1.xpose.msra.mxu0 0.0
  %2828 = vmatprep.subr.mxu0 0.0
  %2829 = vmatpush1.xpose.msra.mxu0 0.0
  %2830 = vmatprep.subr.mxu0 0.0
  %2831 = vmatpush1.xpose.msra.mxu0 0.0
  %2832 = vmatprep.subr.mxu0 0.0
  %2833 = vmatpush1.xpose.msra.mxu0 0.0
  %2834 = vmatprep.subr.mxu0 0.0
  %2835 = vmatpush1.xpose.msra.mxu0 0.0
  %2836 = vmatprep.mubr.f32.mxu0 0.0
  %2837 = vmatmul.mubr.f32.gmra.mrb[0].mxu0 %v2693
  %v2838 = vpop.f32.mrb[0].mxu0
  %v2839 = vadd.f32 0.0, %v2838
  %v2840 = vpop.f32.mrb[0].mxu0
  %2841 = vdwg.mxu0
  %v2842 = vmul.f32 %v2839, 0.35355338
  %v2843 = vadd.f32 %v2842, %v2019
  %v2844 = vsel %vm368, %v2769, -inf
  %2845 = vmax.xlane.f32.xlu0 %v2844
  %v2846 = vpop.xlane.xlu0 %2845
  %v2847 = vsel %vm205, %v2843, -inf
  %2848 = vmax.xlane.f32.xlu0 %v2847
  %v2849 = vpop.xlane.xlu0 %2848
  %v2850 = vmax.f32 %v2846, %v2849
  %v2851 = vsub.f32 %v2769, %v2850
  %v2852 = vmul.f32 %v2851, 1.442695
  %v2853 = vpow.pop %v2852
  %v2854 = vsub.f32 %v2843, %v2850
  %v2855 = vmul.f32 %v2854, 1.442695
  %v2856 = vpow.pop %v2855
  %v2857 = vsel %vm368, %v2853, 0.0
  %2858 = vadd.xlane.f32.xlu0 %v2857
  %v2859 = vpop.xlane.xlu0 %2858
  %v2860 = vsel %vm205, %v2856, 0.0
  %2861 = vadd.xlane.f32.xlu0 %v2860
  %v2862 = vpop.xlane.xlu0 %2861
  %v2863 = vadd.f32 %v2859, %v2862
  %v2864 = vrcp.pop %v2863
  %v2866 = vsel %vm205, %v2856, 0
  %2868 = vmatprep.subr.mxu0 0.0
  %2869 = vmatpush1.msra.mxu0 %v2683
  %2870 = vmatprep.subr.mxu0 0.0
  %2871 = vmatpush1.msra.mxu0 0.0
  %2872 = vmatprep.subr.mxu0 0.0
  %2873 = vmatpush1.msra.mxu0 0.0
  %2874 = vmatprep.subr.mxu0 0.0
  %2875 = vmatpush1.msra.mxu0 0.0
  %2876 = vmatprep.subr.mxu0 0.0
  %2877 = vmatpush1.msra.mxu0 0.0
  %2878 = vmatprep.subr.mxu0 0.0
  %2879 = vmatpush1.msra.mxu0 0.0
  %2880 = vmatprep.subr.mxu0 0.0
  %2881 = vmatpush1.msra.mxu0 0.0
  %2882 = vmatprep.subr.mxu0 0.0
  %2883 = vmatpush1.msra.mxu0 0.0
  %2884 = vmatprep.subr.mxu0 0.0
  %2885 = vmatpush1.msra.mxu0 0.0
  %2886 = vmatprep.subr.mxu0 0.0
  %2887 = vmatpush1.msra.mxu0 0.0
  %2888 = vmatprep.subr.mxu0 0.0
  %2889 = vmatpush1.msra.mxu0 0.0
  %2890 = vmatprep.subr.mxu0 0.0
  %2891 = vmatpush1.msra.mxu0 0.0
  %2892 = vmatprep.subr.mxu0 0.0
  %2893 = vmatpush1.msra.mxu0 0.0
  %2894 = vmatprep.subr.mxu0 0.0
  %2895 = vmatpush1.msra.mxu0 0.0
  %2896 = vmatprep.subr.mxu0 0.0
  %2897 = vmatpush1.msra.mxu0 0.0
  %2898 = vmatprep.subr.mxu0 0.0
  %2899 = vmatpush1.msra.mxu0 0.0
  %2900 = vmatprep.subr.mxu0 0.0
  %2901 = vmatpush1.msra.mxu0 0.0
  %2902 = vmatprep.subr.mxu0 0.0
  %2903 = vmatpush1.msra.mxu0 0.0
  %2904 = vmatprep.subr.mxu0 0.0
  %2905 = vmatpush1.msra.mxu0 0.0
  %2906 = vmatprep.subr.mxu0 0.0
  %2907 = vmatpush1.msra.mxu0 0.0
  %2908 = vmatprep.subr.mxu0 0.0
  %2909 = vmatpush1.msra.mxu0 0.0
  %2910 = vmatprep.subr.mxu0 0.0
  %2911 = vmatpush1.msra.mxu0 0.0
  %2912 = vmatprep.subr.mxu0 0.0
  %2913 = vmatpush1.msra.mxu0 0.0
  %2914 = vmatprep.subr.mxu0 0.0
  %2915 = vmatpush1.msra.mxu0 0.0
  %2916 = vmatprep.subr.mxu0 0.0
  %2917 = vmatpush1.msra.mxu0 0.0
  %2918 = vmatprep.subr.mxu0 0.0
  %2919 = vmatpush1.msra.mxu0 0.0
  %2920 = vmatprep.subr.mxu0 0.0
  %2921 = vmatpush1.msra.mxu0 0.0
  %2922 = vmatprep.subr.mxu0 0.0
  %2923 = vmatpush1.msra.mxu0 0.0
  %2924 = vmatprep.subr.mxu0 0.0
  %2925 = vmatpush1.msra.mxu0 0.0
  %2926 = vmatprep.subr.mxu0 0.0
  %2927 = vmatpush1.msra.mxu0 0.0
  %2928 = vmatprep.subr.mxu0 0.0
  %2929 = vmatpush1.msra.mxu0 0.0
  %2930 = vmatprep.subr.mxu0 0.0
  %2931 = vmatpush1.msra.mxu0 0.0
  %2932 = vmatprep.mubr.f32.mxu0 0.0
  %2933 = vmatmul.mubr.f32.gmra.mrb[0].mxu0 %v2866
  %v2934 = vpop.f32.mrb[0].mxu0
  %v2935 = vadd.f32 0.0, %v2934
  %v2936 = vpop.f32.mrb[0].mxu0
  %2937 = vdwg.mxu0
  %v2939 = vsel %vm368, %v2853, 0
  %v2942 = vsel %vm466, %v2690, 0
  %2944 = vmatprep.subr.mxu0 0.0
  %2945 = vmatpush1.msra.mxu0 %v2942
  %2946 = vmatprep.subr.mxu0 0.0
  %2947 = vmatpush1.msra.mxu0 0.0
  %2948 = vmatprep.subr.mxu0 0.0
  %2949 = vmatpush1.msra.mxu0 0.0
  %2950 = vmatprep.subr.mxu0 0.0
  %2951 = vmatpush1.msra.mxu0 0.0
  %2952 = vmatprep.subr.mxu0 0.0
  %2953 = vmatpush1.msra.mxu0 0.0
  %2954 = vmatprep.subr.mxu0 0.0
  %2955 = vmatpush1.msra.mxu0 0.0
  %2956 = vmatprep.subr.mxu0 0.0
  %2957 = vmatpush1.msra.mxu0 0.0
  %2958 = vmatprep.subr.mxu0 0.0
  %2959 = vmatpush1.msra.mxu0 0.0
  %2960 = vmatprep.subr.mxu0 0.0
  %2961 = vmatpush1.msra.mxu0 0.0
  %2962 = vmatprep.subr.mxu0 0.0
  %2963 = vmatpush1.msra.mxu0 0.0
  %2964 = vmatprep.subr.mxu0 0.0
  %2965 = vmatpush1.msra.mxu0 0.0
  %2966 = vmatprep.subr.mxu0 0.0
  %2967 = vmatpush1.msra.mxu0 0.0
  %2968 = vmatprep.subr.mxu0 0.0
  %2969 = vmatpush1.msra.mxu0 0.0
  %2970 = vmatprep.subr.mxu0 0.0
  %2971 = vmatpush1.msra.mxu0 0.0
  %2972 = vmatprep.subr.mxu0 0.0
  %2973 = vmatpush1.msra.mxu0 0.0
  %2974 = vmatprep.subr.mxu0 0.0
  %2975 = vmatpush1.msra.mxu0 0.0
  %2976 = vmatprep.subr.mxu0 0.0
  %2977 = vmatpush1.msra.mxu0 0.0
  %2978 = vmatprep.subr.mxu0 0.0
  %2979 = vmatpush1.msra.mxu0 0.0
  %2980 = vmatprep.subr.mxu0 0.0
  %2981 = vmatpush1.msra.mxu0 0.0
  %2982 = vmatprep.subr.mxu0 0.0
  %2983 = vmatpush1.msra.mxu0 0.0
  %2984 = vmatprep.subr.mxu0 0.0
  %2985 = vmatpush1.msra.mxu0 0.0
  %2986 = vmatprep.subr.mxu0 0.0
  %2987 = vmatpush1.msra.mxu0 0.0
  %2988 = vmatprep.subr.mxu0 0.0
  %2989 = vmatpush1.msra.mxu0 0.0
  %2990 = vmatprep.subr.mxu0 0.0
  %2991 = vmatpush1.msra.mxu0 0.0
  %2992 = vmatprep.subr.mxu0 0.0
  %2993 = vmatpush1.msra.mxu0 0.0
  %2994 = vmatprep.subr.mxu0 0.0
  %2995 = vmatpush1.msra.mxu0 0.0
  %2996 = vmatprep.subr.mxu0 0.0
  %2997 = vmatpush1.msra.mxu0 0.0
  %2998 = vmatprep.subr.mxu0 0.0
  %2999 = vmatpush1.msra.mxu0 0.0
  %3000 = vmatprep.subr.mxu0 0.0
  %3001 = vmatpush1.msra.mxu0 0.0
  %3002 = vmatprep.subr.mxu0 0.0
  %3003 = vmatpush1.msra.mxu0 0.0
  %3004 = vmatprep.subr.mxu0 0.0
  %3005 = vmatpush1.msra.mxu0 0.0
  %3006 = vmatprep.subr.mxu0 0.0
  %3007 = vmatpush1.msra.mxu0 0.0
  %3008 = vmatprep.mubr.f32.mxu0 0.0
  %3009 = vmatmul.mubr.f32.gmra.mrb[0].mxu0 %v2939
  %v3010 = vpop.f32.mrb[0].mxu0
  %v3011 = vadd.f32 %v2935, %v3010
  %v3012 = vpop.f32.mrb[0].mxu0
  %3013 = vdwg.mxu0
  %v3014 = vmul.f32 %v3011, %v2864
  %v3016 = vsel %vm205, %v3014, 0
  %3018 = vmatprep.subr.mxu0 0.0
  %3019 = vmatpush1.msra.mxu0 %v198
  %3020 = vmatprep.subr.mxu0 0.0
  %3021 = vmatpush1.msra.mxu0 0.0
  %3022 = vmatprep.subr.mxu0 0.0
  %3023 = vmatpush1.msra.mxu0 0.0
  %3024 = vmatprep.subr.mxu0 0.0
  %3025 = vmatpush1.msra.mxu0 0.0
  %3026 = vmatprep.subr.mxu0 0.0
  %3027 = vmatpush1.msra.mxu0 0.0
  %3028 = vmatprep.subr.mxu0 0.0
  %3029 = vmatpush1.msra.mxu0 0.0
  %3030 = vmatprep.subr.mxu0 0.0
  %3031 = vmatpush1.msra.mxu0 0.0
  %3032 = vmatprep.subr.mxu0 0.0
  %3033 = vmatpush1.msra.mxu0 0.0
  %3034 = vmatprep.subr.mxu0 0.0
  %3035 = vmatpush1.msra.mxu0 0.0
  %3036 = vmatprep.subr.mxu0 0.0
  %3037 = vmatpush1.msra.mxu0 0.0
  %3038 = vmatprep.subr.mxu0 0.0
  %3039 = vmatpush1.msra.mxu0 0.0
  %3040 = vmatprep.subr.mxu0 0.0
  %3041 = vmatpush1.msra.mxu0 0.0
  %3042 = vmatprep.subr.mxu0 0.0
  %3043 = vmatpush1.msra.mxu0 0.0
  %3044 = vmatprep.subr.mxu0 0.0
  %3045 = vmatpush1.msra.mxu0 0.0
  %3046 = vmatprep.subr.mxu0 0.0
  %3047 = vmatpush1.msra.mxu0 0.0
  %3048 = vmatprep.subr.mxu0 0.0
  %3049 = vmatpush1.msra.mxu0 0.0
  %3050 = vmatprep.subr.mxu0 0.0
  %3051 = vmatpush1.msra.mxu0 0.0
  %3052 = vmatprep.subr.mxu0 0.0
  %3053 = vmatpush1.msra.mxu0 0.0
  %3054 = vmatprep.subr.mxu0 0.0
  %3055 = vmatpush1.msra.mxu0 0.0
  %3056 = vmatprep.subr.mxu0 0.0
  %3057 = vmatpush1.msra.mxu0 0.0
  %3058 = vmatprep.subr.mxu0 0.0
  %3059 = vmatpush1.msra.mxu0 0.0
  %3060 = vmatprep.subr.mxu0 0.0
  %3061 = vmatpush1.msra.mxu0 0.0
  %3062 = vmatprep.subr.mxu0 0.0
  %3063 = vmatpush1.msra.mxu0 0.0
  %3064 = vmatprep.subr.mxu0 0.0
  %3065 = vmatpush1.msra.mxu0 0.0
  %3066 = vmatprep.subr.mxu0 0.0
  %3067 = vmatpush1.msra.mxu0 0.0
  %3068 = vmatprep.subr.mxu0 0.0
  %3069 = vmatpush1.msra.mxu0 0.0
  %3070 = vmatprep.subr.mxu0 0.0
  %3071 = vmatpush1.msra.mxu0 0.0
  %3072 = vmatprep.subr.mxu0 0.0
  %3073 = vmatpush1.msra.mxu0 0.0
  %3074 = vmatprep.subr.mxu0 0.0
  %3075 = vmatpush1.msra.mxu0 0.0
  %3076 = vmatprep.subr.mxu0 0.0
  %3077 = vmatpush1.msra.mxu0 0.0
  %3078 = vmatprep.subr.mxu0 0.0
  %3079 = vmatpush1.msra.mxu0 0.0
  %3080 = vmatprep.subr.mxu0 0.0
  %3081 = vmatpush1.msra.mxu0 0.0
  %3082 = vmatprep.mubr.f32.mxu0 0.0
  %3083 = vmatmul.mubr.f32.gmra.mrb[0].mxu0 %v3016
  %v3084 = vpop.f32.mrb[0].mxu0
  %v3085 = vadd.f32 0.0, %v3084
  %v3086 = vpop.f32.mrb[0].mxu0
  %3087 = vdwg.mxu0
  %v3088 = vadd.f32 %v2674, %v3085
  %3089 = vrot.lane.b32.xlu0 %v193, 72
  %v3090 = vpop.permute.xlu0 %3089
  %s3092 = scalar_lea.vmem %s17, 56
  %3093 = vst.msk [vmem:[%s3092] sm:$0xff] %vm205, %v3090
  %3094 = vrot.lane.b32.xlu0 %v193, 40
  %v3095 = vpop.permute.xlu0 %3094
  %s3097 = scalar_lea.vmem %s18, 56
  %3098 = vst.msk [vmem:[%s3097] sm:$0xff] %vm205, %v3095
  %s3099 = scalar_lea.vmem %s13, 28
  %v3100 = vld [vmem:[%s3099] sm:$0xf]
  %s3101 = scalar_lea.vmem %s14, 28
  %v3102 = vld [vmem:[%s3101] sm:$0xf]
  %3103 = vrot.lane.b32.xlu0 %v193, 104
  %v3104 = vpop.permute.xlu0 %3103
  %v3105 = vsel %vm205, %v3104, 0
  %v3108 = vsel %vm205, %v3100, 0
  %3110 = vmatprep.subr.mxu0 0.0
  %3111 = vmatpush1.xpose.msra.mxu0 %v3108
  %3112 = vmatprep.subr.mxu0 0.0
  %3113 = vmatpush1.xpose.msra.mxu0 0.0
  %3114 = vmatprep.subr.mxu0 0.0
  %3115 = vmatpush1.xpose.msra.mxu0 0.0
  %3116 = vmatprep.subr.mxu0 0.0
  %3117 = vmatpush1.xpose.msra.mxu0 0.0
  %3118 = vmatprep.subr.mxu0 0.0
  %3119 = vmatpush1.xpose.msra.mxu0 0.0
  %3120 = vmatprep.subr.mxu0 0.0
  %3121 = vmatpush1.xpose.msra.mxu0 0.0
  %3122 = vmatprep.subr.mxu0 0.0
  %3123 = vmatpush1.xpose.msra.mxu0 0.0
  %3124 = vmatprep.subr.mxu0 0.0
  %3125 = vmatpush1.xpose.msra.mxu0 0.0
  %3126 = vmatprep.subr.mxu0 0.0
  %3127 = vmatpush1.xpose.msra.mxu0 0.0
  %3128 = vmatprep.subr.mxu0 0.0
  %3129 = vmatpush1.xpose.msra.mxu0 0.0
  %3130 = vmatprep.subr.mxu0 0.0
  %3131 = vmatpush1.xpose.msra.mxu0 0.0
  %3132 = vmatprep.subr.mxu0 0.0
  %3133 = vmatpush1.xpose.msra.mxu0 0.0
  %3134 = vmatprep.subr.mxu0 0.0
  %3135 = vmatpush1.xpose.msra.mxu0 0.0
  %3136 = vmatprep.subr.mxu0 0.0
  %3137 = vmatpush1.xpose.msra.mxu0 0.0
  %3138 = vmatprep.subr.mxu0 0.0
  %3139 = vmatpush1.xpose.msra.mxu0 0.0
  %3140 = vmatprep.subr.mxu0 0.0
  %3141 = vmatpush1.xpose.msra.mxu0 0.0
  %3142 = vmatprep.subr.mxu0 0.0
  %3143 = vmatpush1.xpose.msra.mxu0 0.0
  %3144 = vmatprep.subr.mxu0 0.0
  %3145 = vmatpush1.xpose.msra.mxu0 0.0
  %3146 = vmatprep.subr.mxu0 0.0
  %3147 = vmatpush1.xpose.msra.mxu0 0.0
  %3148 = vmatprep.subr.mxu0 0.0
  %3149 = vmatpush1.xpose.msra.mxu0 0.0
  %3150 = vmatprep.subr.mxu0 0.0
  %3151 = vmatpush1.xpose.msra.mxu0 0.0
  %3152 = vmatprep.subr.mxu0 0.0
  %3153 = vmatpush1.xpose.msra.mxu0 0.0
  %3154 = vmatprep.subr.mxu0 0.0
  %3155 = vmatpush1.xpose.msra.mxu0 0.0
  %3156 = vmatprep.subr.mxu0 0.0
  %3157 = vmatpush1.xpose.msra.mxu0 0.0
  %3158 = vmatprep.subr.mxu0 0.0
  %3159 = vmatpush1.xpose.msra.mxu0 0.0
  %3160 = vmatprep.subr.mxu0 0.0
  %3161 = vmatpush1.xpose.msra.mxu0 0.0
  %3162 = vmatprep.subr.mxu0 0.0
  %3163 = vmatpush1.xpose.msra.mxu0 0.0
  %3164 = vmatprep.subr.mxu0 0.0
  %3165 = vmatpush1.xpose.msra.mxu0 0.0
  %3166 = vmatprep.subr.mxu0 0.0
  %3167 = vmatpush1.xpose.msra.mxu0 0.0
  %3168 = vmatprep.subr.mxu0 0.0
  %3169 = vmatpush1.xpose.msra.mxu0 0.0
  %3170 = vmatprep.subr.mxu0 0.0
  %3171 = vmatpush1.xpose.msra.mxu0 0.0
  %3172 = vmatprep.subr.mxu0 0.0
  %3173 = vmatpush1.xpose.msra.mxu0 0.0
  %3174 = vmatprep.mubr.f32.mxu0 0.0
  %3175 = vmatmul.mubr.f32.gmra.mrb[0].mxu0 %v3105
  %v3176 = vpop.f32.mrb[0].mxu0
  %v3177 = vadd.f32 0.0, %v3176
  %v3178 = vpop.f32.mrb[0].mxu0
  %3179 = vdwg.mxu0
  %v3180 = vmul.f32 %v3177, 0.35355338
  %v3181 = vadd.f32 %v3180, %v1851
  %v3182 = vsel %vm205, %v3090, 0
  %3184 = vmatprep.subr.mxu0 0.0
  %3185 = vmatpush1.xpose.msra.mxu0 %v3182
  %3186 = vmatprep.subr.mxu0 0.0
  %3187 = vmatpush1.xpose.msra.mxu0 0.0
  %3188 = vmatprep.subr.mxu0 0.0
  %3189 = vmatpush1.xpose.msra.mxu0 0.0
  %3190 = vmatprep.subr.mxu0 0.0
  %3191 = vmatpush1.xpose.msra.mxu0 0.0
  %3192 = vmatprep.subr.mxu0 0.0
  %3193 = vmatpush1.xpose.msra.mxu0 0.0
  %3194 = vmatprep.subr.mxu0 0.0
  %3195 = vmatpush1.xpose.msra.mxu0 0.0
  %3196 = vmatprep.subr.mxu0 0.0
  %3197 = vmatpush1.xpose.msra.mxu0 0.0
  %3198 = vmatprep.subr.mxu0 0.0
  %3199 = vmatpush1.xpose.msra.mxu0 0.0
  %3200 = vmatprep.subr.mxu0 0.0
  %3201 = vmatpush1.xpose.msra.mxu0 0.0
  %3202 = vmatprep.subr.mxu0 0.0
  %3203 = vmatpush1.xpose.msra.mxu0 0.0
  %3204 = vmatprep.subr.mxu0 0.0
  %3205 = vmatpush1.xpose.msra.mxu0 0.0
  %3206 = vmatprep.subr.mxu0 0.0
  %3207 = vmatpush1.xpose.msra.mxu0 0.0
  %3208 = vmatprep.subr.mxu0 0.0
  %3209 = vmatpush1.xpose.msra.mxu0 0.0
  %3210 = vmatprep.subr.mxu0 0.0
  %3211 = vmatpush1.xpose.msra.mxu0 0.0
  %3212 = vmatprep.subr.mxu0 0.0
  %3213 = vmatpush1.xpose.msra.mxu0 0.0
  %3214 = vmatprep.subr.mxu0 0.0
  %3215 = vmatpush1.xpose.msra.mxu0 0.0
  %3216 = vmatprep.subr.mxu0 0.0
  %3217 = vmatpush1.xpose.msra.mxu0 0.0
  %3218 = vmatprep.subr.mxu0 0.0
  %3219 = vmatpush1.xpose.msra.mxu0 0.0
  %3220 = vmatprep.subr.mxu0 0.0
  %3221 = vmatpush1.xpose.msra.mxu0 0.0
  %3222 = vmatprep.subr.mxu0 0.0
  %3223 = vmatpush1.xpose.msra.mxu0 0.0
  %3224 = vmatprep.subr.mxu0 0.0
  %3225 = vmatpush1.xpose.msra.mxu0 0.0
  %3226 = vmatprep.subr.mxu0 0.0
  %3227 = vmatpush1.xpose.msra.mxu0 0.0
  %3228 = vmatprep.subr.mxu0 0.0
  %3229 = vmatpush1.xpose.msra.mxu0 0.0
  %3230 = vmatprep.subr.mxu0 0.0
  %3231 = vmatpush1.xpose.msra.mxu0 0.0
  %3232 = vmatprep.subr.mxu0 0.0
  %3233 = vmatpush1.xpose.msra.mxu0 0.0
  %3234 = vmatprep.subr.mxu0 0.0
  %3235 = vmatpush1.xpose.msra.mxu0 0.0
  %3236 = vmatprep.subr.mxu0 0.0
  %3237 = vmatpush1.xpose.msra.mxu0 0.0
  %3238 = vmatprep.subr.mxu0 0.0
  %3239 = vmatpush1.xpose.msra.mxu0 0.0
  %3240 = vmatprep.subr.mxu0 0.0
  %3241 = vmatpush1.xpose.msra.mxu0 0.0
  %3242 = vmatprep.subr.mxu0 0.0
  %3243 = vmatpush1.xpose.msra.mxu0 0.0
  %3244 = vmatprep.subr.mxu0 0.0
  %3245 = vmatpush1.xpose.msra.mxu0 0.0
  %3246 = vmatprep.subr.mxu0 0.0
  %3247 = vmatpush1.xpose.msra.mxu0 0.0
  %3248 = vmatprep.mubr.f32.mxu0 0.0
  %3249 = vmatmul.mubr.f32.gmra.mrb[0].mxu0 %v3105
  %v3250 = vpop.f32.mrb[0].mxu0
  %v3251 = vadd.f32 0.0, %v3250
  %v3252 = vpop.f32.mrb[0].mxu0
  %3253 = vdwg.mxu0
  %v3254 = vmul.f32 %v3251, 0.35355338
  %v3255 = vadd.f32 %v3254, %v2019
  %v3256 = vsel %vm368, %v3181, -inf
  %3257 = vmax.xlane.f32.xlu0 %v3256
  %v3258 = vpop.xlane.xlu0 %3257
  %v3259 = vsel %vm205, %v3255, -inf
  %3260 = vmax.xlane.f32.xlu0 %v3259
  %v3261 = vpop.xlane.xlu0 %3260
  %v3262 = vmax.f32 %v3258, %v3261
  %v3263 = vsub.f32 %v3181, %v3262
  %v3264 = vmul.f32 %v3263, 1.442695
  %v3265 = vpow.pop %v3264
  %v3266 = vsub.f32 %v3255, %v3262
  %v3267 = vmul.f32 %v3266, 1.442695
  %v3268 = vpow.pop %v3267
  %v3269 = vsel %vm368, %v3265, 0.0
  %3270 = vadd.xlane.f32.xlu0 %v3269
  %v3271 = vpop.xlane.xlu0 %3270
  %v3272 = vsel %vm205, %v3268, 0.0
  %3273 = vadd.xlane.f32.xlu0 %v3272
  %v3274 = vpop.xlane.xlu0 %3273
  %v3275 = vadd.f32 %v3271, %v3274
  %v3276 = vrcp.pop %v3275
  %v3278 = vsel %vm205, %v3268, 0
  %3280 = vmatprep.subr.mxu0 0.0
  %3281 = vmatpush1.msra.mxu0 %v3095
  %3282 = vmatprep.subr.mxu0 0.0
  %3283 = vmatpush1.msra.mxu0 0.0
  %3284 = vmatprep.subr.mxu0 0.0
  %3285 = vmatpush1.msra.mxu0 0.0
  %3286 = vmatprep.subr.mxu0 0.0
  %3287 = vmatpush1.msra.mxu0 0.0
  %3288 = vmatprep.subr.mxu0 0.0
  %3289 = vmatpush1.msra.mxu0 0.0
  %3290 = vmatprep.subr.mxu0 0.0
  %3291 = vmatpush1.msra.mxu0 0.0
  %3292 = vmatprep.subr.mxu0 0.0
  %3293 = vmatpush1.msra.mxu0 0.0
  %3294 = vmatprep.subr.mxu0 0.0
  %3295 = vmatpush1.msra.mxu0 0.0
  %3296 = vmatprep.subr.mxu0 0.0
  %3297 = vmatpush1.msra.mxu0 0.0
  %3298 = vmatprep.subr.mxu0 0.0
  %3299 = vmatpush1.msra.mxu0 0.0
  %3300 = vmatprep.subr.mxu0 0.0
  %3301 = vmatpush1.msra.mxu0 0.0
  %3302 = vmatprep.subr.mxu0 0.0
  %3303 = vmatpush1.msra.mxu0 0.0
  %3304 = vmatprep.subr.mxu0 0.0
  %3305 = vmatpush1.msra.mxu0 0.0
  %3306 = vmatprep.subr.mxu0 0.0
  %3307 = vmatpush1.msra.mxu0 0.0
  %3308 = vmatprep.subr.mxu0 0.0
  %3309 = vmatpush1.msra.mxu0 0.0
  %3310 = vmatprep.subr.mxu0 0.0
  %3311 = vmatpush1.msra.mxu0 0.0
  %3312 = vmatprep.subr.mxu0 0.0
  %3313 = vmatpush1.msra.mxu0 0.0
  %3314 = vmatprep.subr.mxu0 0.0
  %3315 = vmatpush1.msra.mxu0 0.0
  %3316 = vmatprep.subr.mxu0 0.0
  %3317 = vmatpush1.msra.mxu0 0.0
  %3318 = vmatprep.subr.mxu0 0.0
  %3319 = vmatpush1.msra.mxu0 0.0
  %3320 = vmatprep.subr.mxu0 0.0
  %3321 = vmatpush1.msra.mxu0 0.0
  %3322 = vmatprep.subr.mxu0 0.0
  %3323 = vmatpush1.msra.mxu0 0.0
  %3324 = vmatprep.subr.mxu0 0.0
  %3325 = vmatpush1.msra.mxu0 0.0
  %3326 = vmatprep.subr.mxu0 0.0
  %3327 = vmatpush1.msra.mxu0 0.0
  %3328 = vmatprep.subr.mxu0 0.0
  %3329 = vmatpush1.msra.mxu0 0.0
  %3330 = vmatprep.subr.mxu0 0.0
  %3331 = vmatpush1.msra.mxu0 0.0
  %3332 = vmatprep.subr.mxu0 0.0
  %3333 = vmatpush1.msra.mxu0 0.0
  %3334 = vmatprep.subr.mxu0 0.0
  %3335 = vmatpush1.msra.mxu0 0.0
  %3336 = vmatprep.subr.mxu0 0.0
  %3337 = vmatpush1.msra.mxu0 0.0
  %3338 = vmatprep.subr.mxu0 0.0
  %3339 = vmatpush1.msra.mxu0 0.0
  %3340 = vmatprep.subr.mxu0 0.0
  %3341 = vmatpush1.msra.mxu0 0.0
  %3342 = vmatprep.subr.mxu0 0.0
  %3343 = vmatpush1.msra.mxu0 0.0
  %3344 = vmatprep.mubr.f32.mxu0 0.0
  %3345 = vmatmul.mubr.f32.gmra.mrb[0].mxu0 %v3278
  %v3346 = vpop.f32.mrb[0].mxu0
  %v3347 = vadd.f32 0.0, %v3346
  %v3348 = vpop.f32.mrb[0].mxu0
  %3349 = vdwg.mxu0
  %v3351 = vsel %vm368, %v3265, 0
  %v3354 = vsel %vm466, %v3102, 0
  %3356 = vmatprep.subr.mxu0 0.0
  %3357 = vmatpush1.msra.mxu0 %v3354
  %3358 = vmatprep.subr.mxu0 0.0
  %3359 = vmatpush1.msra.mxu0 0.0
  %3360 = vmatprep.subr.mxu0 0.0
  %3361 = vmatpush1.msra.mxu0 0.0
  %3362 = vmatprep.subr.mxu0 0.0
  %3363 = vmatpush1.msra.mxu0 0.0
  %3364 = vmatprep.subr.mxu0 0.0
  %3365 = vmatpush1.msra.mxu0 0.0
  %3366 = vmatprep.subr.mxu0 0.0
  %3367 = vmatpush1.msra.mxu0 0.0
  %3368 = vmatprep.subr.mxu0 0.0
  %3369 = vmatpush1.msra.mxu0 0.0
  %3370 = vmatprep.subr.mxu0 0.0
  %3371 = vmatpush1.msra.mxu0 0.0
  %3372 = vmatprep.subr.mxu0 0.0
  %3373 = vmatpush1.msra.mxu0 0.0
  %3374 = vmatprep.subr.mxu0 0.0
  %3375 = vmatpush1.msra.mxu0 0.0
  %3376 = vmatprep.subr.mxu0 0.0
  %3377 = vmatpush1.msra.mxu0 0.0
  %3378 = vmatprep.subr.mxu0 0.0
  %3379 = vmatpush1.msra.mxu0 0.0
  %3380 = vmatprep.subr.mxu0 0.0
  %3381 = vmatpush1.msra.mxu0 0.0
  %3382 = vmatprep.subr.mxu0 0.0
  %3383 = vmatpush1.msra.mxu0 0.0
  %3384 = vmatprep.subr.mxu0 0.0
  %3385 = vmatpush1.msra.mxu0 0.0
  %3386 = vmatprep.subr.mxu0 0.0
  %3387 = vmatpush1.msra.mxu0 0.0
  %3388 = vmatprep.subr.mxu0 0.0
  %3389 = vmatpush1.msra.mxu0 0.0
  %3390 = vmatprep.subr.mxu0 0.0
  %3391 = vmatpush1.msra.mxu0 0.0
  %3392 = vmatprep.subr.mxu0 0.0
  %3393 = vmatpush1.msra.mxu0 0.0
  %3394 = vmatprep.subr.mxu0 0.0
  %3395 = vmatpush1.msra.mxu0 0.0
  %3396 = vmatprep.subr.mxu0 0.0
  %3397 = vmatpush1.msra.mxu0 0.0
  %3398 = vmatprep.subr.mxu0 0.0
  %3399 = vmatpush1.msra.mxu0 0.0
  %3400 = vmatprep.subr.mxu0 0.0
  %3401 = vmatpush1.msra.mxu0 0.0
  %3402 = vmatprep.subr.mxu0 0.0
  %3403 = vmatpush1.msra.mxu0 0.0
  %3404 = vmatprep.subr.mxu0 0.0
  %3405 = vmatpush1.msra.mxu0 0.0
  %3406 = vmatprep.subr.mxu0 0.0
  %3407 = vmatpush1.msra.mxu0 0.0
  %3408 = vmatprep.subr.mxu0 0.0
  %3409 = vmatpush1.msra.mxu0 0.0
  %3410 = vmatprep.subr.mxu0 0.0
  %3411 = vmatpush1.msra.mxu0 0.0
  %3412 = vmatprep.subr.mxu0 0.0
  %3413 = vmatpush1.msra.mxu0 0.0
  %3414 = vmatprep.subr.mxu0 0.0
  %3415 = vmatpush1.msra.mxu0 0.0
  %3416 = vmatprep.subr.mxu0 0.0
  %3417 = vmatpush1.msra.mxu0 0.0
  %3418 = vmatprep.subr.mxu0 0.0
  %3419 = vmatpush1.msra.mxu0 0.0
  %3420 = vmatprep.mubr.f32.mxu0 0.0
  %3421 = vmatmul.mubr.f32.gmra.mrb[0].mxu0 %v3351
  %v3422 = vpop.f32.mrb[0].mxu0
  %v3423 = vadd.f32 %v3347, %v3422
  %v3424 = vpop.f32.mrb[0].mxu0
  %3425 = vdwg.mxu0
  %v3426 = vmul.f32 %v3423, %v3276
  %v3428 = vsel %vm205, %v3426, 0
  %3430 = vmatprep.subr.mxu0 0.0
  %3431 = vmatpush1.msra.mxu0 %v199
  %3432 = vmatprep.subr.mxu0 0.0
  %3433 = vmatpush1.msra.mxu0 0.0
  %3434 = vmatprep.subr.mxu0 0.0
  %3435 = vmatpush1.msra.mxu0 0.0
  %3436 = vmatprep.subr.mxu0 0.0
  %3437 = vmatpush1.msra.mxu0 0.0
  %3438 = vmatprep.subr.mxu0 0.0
  %3439 = vmatpush1.msra.mxu0 0.0
  %3440 = vmatprep.subr.mxu0 0.0
  %3441 = vmatpush1.msra.mxu0 0.0
  %3442 = vmatprep.subr.mxu0 0.0
  %3443 = vmatpush1.msra.mxu0 0.0
  %3444 = vmatprep.subr.mxu0 0.0
  %3445 = vmatpush1.msra.mxu0 0.0
  %3446 = vmatprep.subr.mxu0 0.0
  %3447 = vmatpush1.msra.mxu0 0.0
  %3448 = vmatprep.subr.mxu0 0.0
  %3449 = vmatpush1.msra.mxu0 0.0
  %3450 = vmatprep.subr.mxu0 0.0
  %3451 = vmatpush1.msra.mxu0 0.0
  %3452 = vmatprep.subr.mxu0 0.0
  %3453 = vmatpush1.msra.mxu0 0.0
  %3454 = vmatprep.subr.mxu0 0.0
  %3455 = vmatpush1.msra.mxu0 0.0
  %3456 = vmatprep.subr.mxu0 0.0
  %3457 = vmatpush1.msra.mxu0 0.0
  %3458 = vmatprep.subr.mxu0 0.0
  %3459 = vmatpush1.msra.mxu0 0.0
  %3460 = vmatprep.subr.mxu0 0.0
  %3461 = vmatpush1.msra.mxu0 0.0
  %3462 = vmatprep.subr.mxu0 0.0
  %3463 = vmatpush1.msra.mxu0 0.0
  %3464 = vmatprep.subr.mxu0 0.0
  %3465 = vmatpush1.msra.mxu0 0.0
  %3466 = vmatprep.subr.mxu0 0.0
  %3467 = vmatpush1.msra.mxu0 0.0
  %3468 = vmatprep.subr.mxu0 0.0
  %3469 = vmatpush1.msra.mxu0 0.0
  %3470 = vmatprep.subr.mxu0 0.0
  %3471 = vmatpush1.msra.mxu0 0.0
  %3472 = vmatprep.subr.mxu0 0.0
  %3473 = vmatpush1.msra.mxu0 0.0
  %3474 = vmatprep.subr.mxu0 0.0
  %3475 = vmatpush1.msra.mxu0 0.0
  %3476 = vmatprep.subr.mxu0 0.0
  %3477 = vmatpush1.msra.mxu0 0.0
  %3478 = vmatprep.subr.mxu0 0.0
  %3479 = vmatpush1.msra.mxu0 0.0
  %3480 = vmatprep.subr.mxu0 0.0
  %3481 = vmatpush1.msra.mxu0 0.0
  %3482 = vmatprep.subr.mxu0 0.0
  %3483 = vmatpush1.msra.mxu0 0.0
  %3484 = vmatprep.subr.mxu0 0.0
  %3485 = vmatpush1.msra.mxu0 0.0
  %3486 = vmatprep.subr.mxu0 0.0
  %3487 = vmatpush1.msra.mxu0 0.0
  %3488 = vmatprep.subr.mxu0 0.0
  %3489 = vmatpush1.msra.mxu0 0.0
  %3490 = vmatprep.subr.mxu0 0.0
  %3491 = vmatpush1.msra.mxu0 0.0
  %3492 = vmatprep.subr.mxu0 0.0
  %3493 = vmatpush1.msra.mxu0 0.0
  %3494 = vmatprep.mubr.f32.mxu0 0.0
  %3495 = vmatmul.mubr.f32.gmra.mrb[0].mxu0 %v3428
  %v3496 = vpop.f32.mrb[0].mxu0
  %v3497 = vadd.f32 0.0, %v3496
  %v3498 = vpop.f32.mrb[0].mxu0
  %3499 = vdwg.mxu0
  %v3500 = vadd.f32 %v3088, %v3497
  %3501 = vst.msk [vmem:[#allocation2 + $0x8] sm:$0xff] %vm60, %v3500
  %v3502 = vld [vmem:[#allocation2] sm:$0xff]
  %v3503 = vld [vmem:[#allocation2 + $0x8] sm:$0xff]
  %v3504 = vadd.f32 %v56, %v3502
  %v3505 = vadd.f32 %v57, %v3503
  %v3506 = vld [vmem:[%s6] sm:$0x1]
  %v3508 = vlaneseq
  %v3509 = vshrl.u32 %v3508, 7
  %v3510 = vsub.s32 0, %v3509
  %v3511 = vrot.slane %v3506, %v3510
  %v3513 = vadd.f32 %v3504, %v3511
  %v3514 = vadd.f32 %v3505, %v3511
  %v3515 = vld [vmem:[%s7] sm:$0x1]
  %v3516 = vld [vmem:[%s8] sm:$0x1]
  %v3517 = vsel %vm60, %v3513, 0.0
  %3518 = vadd.xlane.f32.xlu0 %v3517
  %v3519 = vpop.xlane.xlu0 %3518
  %v3520 = vsel %vm60, %v3514, 0.0
  %3521 = vadd.xlane.f32.xlu0 %v3520
  %v3522 = vpop.xlane.xlu0 %3521
  %v3523 = vmul.f32 %v3519, %v67
  %v3524 = vmul.f32 %v3522, %v67
  %v3525 = vsub.f32 %v3513, %v3523
  %v3526 = vsub.f32 %v3514, %v3524
  %v3527 = vmul.f32 %v3525, %v3525
  %v3528 = vmul.f32 %v3526, %v3526
  %v3529 = vsel %vm60, %v3527, 0.0
  %3530 = vadd.xlane.f32.xlu0 %v3529
  %v3531 = vpop.xlane.xlu0 %3530
  %v3532 = vsel %vm60, %v3528, 0.0
  %3533 = vadd.xlane.f32.xlu0 %v3532
  %v3534 = vpop.xlane.xlu0 %3533
  %v3535 = vmul.f32 %v3531, %v67
  %v3536 = vmul.f32 %v3534, %v67
  %v3537 = vadd.f32 %v3535, 1e-05
  %v3538 = vadd.f32 %v3536, 1e-05
  %v3539 = vrsqrt.pop %v3537
  %v3540 = vrsqrt.pop %v3538
  %v3541 = vmul.f32 %v3525, %v3539
  %v3542 = vmul.f32 %v3526, %v3540
  %v3544 = vlaneseq
  %v3545 = vshrl.u32 %v3544, 7
  %v3546 = vsub.s32 0, %v3545
  %v3547 = vrot.slane %v3515, %v3546
  %v3549 = vmul.f32 %v3541, %v3547
  %v3550 = vmul.f32 %v3542, %v3547
  %v3552 = vlaneseq
  %v3553 = vshrl.u32 %v3552, 7
  %v3554 = vsub.s32 0, %v3553
  %v3555 = vrot.slane %v3516, %v3554
  %v3557 = vadd.f32 %v3549, %v3555
  %v3558 = vadd.f32 %v3550, %v3555
  %v3559 = vld [vmem:[%s9] sm:$0xff]
  %v3560 = vld [vmem:[%s9 + $0x8] sm:$0xff]
  %v3561 = vld [vmem:[%s9 + $0x10] sm:$0xff]
  %v3562 = vld [vmem:[%s9 + $0x18] sm:$0xff]
  %v3563 = vld [vmem:[%s10] sm:$0x1]
  %v3565 = vlaneseq
  %v3566 = vshrl.u32 %v3565, 7
  %v3567 = vsub.s32 0, %v3566
  %v3568 = vrot.slane %v3563, %v3567
  %v3571 = vsel %vm60, %v3557, 0
  %v3574 = vsel %vm60, %v3558, 0
  %3576 = vmatprep.subr.mxu0 0.0
  %3577 = vmatpush1.msra.mxu0 %v3559
  %3578 = vmatprep.subr.mxu0 0.0
  %3579 = vmatpush1.msra.mxu0 %v3560
  %3580 = vmatprep.subr.mxu0 0.0
  %3581 = vmatpush1.msra.mxu0 %v3561
  %3582 = vmatprep.subr.mxu0 0.0
  %3583 = vmatpush1.msra.mxu0 %v3562
  %3584 = vmatprep.subr.mxu0 0.0
  %3585 = vmatpush1.msra.mxu0 0.0
  %3586 = vmatprep.subr.mxu0 0.0
  %3587 = vmatpush1.msra.mxu0 0.0
  %3588 = vmatprep.subr.mxu0 0.0
  %3589 = vmatpush1.msra.mxu0 0.0
  %3590 = vmatprep.subr.mxu0 0.0
  %3591 = vmatpush1.msra.mxu0 0.0
  %3592 = vmatprep.subr.mxu0 0.0
  %3593 = vmatpush1.msra.mxu0 0.0
  %3594 = vmatprep.subr.mxu0 0.0
  %3595 = vmatpush1.msra.mxu0 0.0
  %3596 = vmatprep.subr.mxu0 0.0
  %3597 = vmatpush1.msra.mxu0 0.0
  %3598 = vmatprep.subr.mxu0 0.0
  %3599 = vmatpush1.msra.mxu0 0.0
  %3600 = vmatprep.subr.mxu0 0.0
  %3601 = vmatpush1.msra.mxu0 0.0
  %3602 = vmatprep.subr.mxu0 0.0
  %3603 = vmatpush1.msra.mxu0 0.0
  %3604 = vmatprep.subr.mxu0 0.0
  %3605 = vmatpush1.msra.mxu0 0.0
  %3606 = vmatprep.subr.mxu0 0.0
  %3607 = vmatpush1.msra.mxu0 0.0
  %3608 = vmatprep.subr.mxu0 0.0
  %3609 = vmatpush1.msra.mxu0 0.0
  %3610 = vmatprep.subr.mxu0 0.0
  %3611 = vmatpush1.msra.mxu0 0.0
  %3612 = vmatprep.subr.mxu0 0.0
  %3613 = vmatpush1.msra.mxu0 0.0
  %3614 = vmatprep.subr.mxu0 0.0
  %3615 = vmatpush1.msra.mxu0 0.0
  %3616 = vmatprep.subr.mxu0 0.0
  %3617 = vmatpush1.msra.mxu0 0.0
  %3618 = vmatprep.subr.mxu0 0.0
  %3619 = vmatpush1.msra.mxu0 0.0
  %3620 = vmatprep.subr.mxu0 0.0
  %3621 = vmatpush1.msra.mxu0 0.0
  %3622 = vmatprep.subr.mxu0 0.0
  %3623 = vmatpush1.msra.mxu0 0.0
  %3624 = vmatprep.subr.mxu0 0.0
  %3625 = vmatpush1.msra.mxu0 0.0
  %3626 = vmatprep.subr.mxu0 0.0
  %3627 = vmatpush1.msra.mxu0 0.0
  %3628 = vmatprep.subr.mxu0 0.0
  %3629 = vmatpush1.msra.mxu0 0.0
  %3630 = vmatprep.subr.mxu0 0.0
  %3631 = vmatpush1.msra.mxu0 0.0
  %3632 = vmatprep.subr.mxu0 0.0
  %3633 = vmatpush1.msra.mxu0 0.0
  %3634 = vmatprep.subr.mxu0 0.0
  %3635 = vmatpush1.msra.mxu0 0.0
  %3636 = vmatprep.subr.mxu0 0.0
  %3637 = vmatpush1.msra.mxu0 0.0
  %3638 = vmatprep.subr.mxu0 0.0
  %3639 = vmatpush1.msra.mxu0 0.0
  %3640 = vmatprep.mubr.f32.mxu0 0.0
  %3641 = vmatmul.mubr.f32.gmra.mrb[0].mxu0 %v3571
  %v3642 = vpop.f32.mrb[0].mxu0
  %v3643 = vadd.f32 %v3568, %v3642
  %v3644 = vpop.f32.mrb[0].mxu0
  %3645 = vmatprep.mubr.f32.mxu0 0.0
  %3646 = vmatmul.mubr.f32.gmra.mrb[0].mxu0 %v3574
  %v3647 = vpop.f32.mrb[0].mxu0
  %v3648 = vadd.f32 %v3568, %v3647
  %v3649 = vpop.f32.mrb[0].mxu0
  %3650 = vdwg.mxu0
  %v3651 = vmul.f32 %v3643, 0.5
  %v3652 = vmul.f32 %v3648, 0.5
  %v3653 = vmul.f32 %v3643, 0.044715
  %v3654 = vmul.f32 %v3648, 0.044715
  %v3655 = vmul.f32 %v3653, %v3643
  %v3656 = vmul.f32 %v3654, %v3648
  %v3657 = vmul.f32 %v3655, %v3643
  %v3658 = vmul.f32 %v3656, %v3648
  %v3659 = vadd.f32 %v3643, %v3657
  %v3660 = vadd.f32 %v3648, %v3658
  %v3661 = vmul.f32 %v3659, 0.7978846
  %v3662 = vmul.f32 %v3660, 0.7978846
  %v3663 = vtanh.pop %v3661
  %v3664 = vtanh.pop %v3662
  %v3665 = vadd.f32 %v3663, 1.0
  %v3666 = vadd.f32 %v3664, 1.0
  %v3667 = vmul.f32 %v3651, %v3665
  %v3668 = vmul.f32 %v3652, %v3666
  %v3669 = vld [vmem:[%s11] sm:$0xff]
  %v3670 = vld [vmem:[%s11 + $0x8] sm:$0xff]
  %v3671 = vld [vmem:[%s11 + $0x10] sm:$0xff]
  %v3672 = vld [vmem:[%s11 + $0x18] sm:$0xff]
  %v3673 = vld [vmem:[%s11 + $0x20] sm:$0xff]
  %v3674 = vld [vmem:[%s11 + $0x28] sm:$0xff]
  %v3675 = vld [vmem:[%s11 + $0x30] sm:$0xff]
  %v3676 = vld [vmem:[%s11 + $0x38] sm:$0xff]
  %v3677 = vld [vmem:[%s11 + $0x40] sm:$0xff]
  %v3678 = vld [vmem:[%s11 + $0x48] sm:$0xff]
  %v3679 = vld [vmem:[%s11 + $0x50] sm:$0xff]
  %v3680 = vld [vmem:[%s11 + $0x58] sm:$0xff]
  %v3681 = vld [vmem:[%s11 + $0x60] sm:$0xff]
  %v3682 = vld [vmem:[%s11 + $0x68] sm:$0xff]
  %v3683 = vld [vmem:[%s11 + $0x70] sm:$0xff]
  %v3684 = vld [vmem:[%s11 + $0x78] sm:$0xff]
  %v3685 = vld [vmem:[%s12] sm:$0x1]
  %v3687 = vlaneseq
  %v3688 = vshrl.u32 %v3687, 7
  %v3689 = vsub.s32 0, %v3688
  %v3690 = vrot.slane %v3685, %v3689
  %3692 = vmatprep.subr.mxu0 0.0
  %3693 = vmatpush1.msra.mxu0 %v3669
  %3694 = vmatprep.subr.mxu0 0.0
  %3695 = vmatpush1.msra.mxu0 %v3670
  %3696 = vmatprep.subr.mxu0 0.0
  %3697 = vmatpush1.msra.mxu0 %v3671
  %3698 = vmatprep.subr.mxu0 0.0
  %3699 = vmatpush1.msra.mxu0 %v3672
  %3700 = vmatprep.subr.mxu0 0.0
  %3701 = vmatpush1.msra.mxu0 %v3673
  %3702 = vmatprep.subr.mxu0 0.0
  %3703 = vmatpush1.msra.mxu0 %v3674
  %3704 = vmatprep.subr.mxu0 0.0
  %3705 = vmatpush1.msra.mxu0 %v3675
  %3706 = vmatprep.subr.mxu0 0.0
  %3707 = vmatpush1.msra.mxu0 %v3676
  %3708 = vmatprep.subr.mxu0 0.0
  %3709 = vmatpush1.msra.mxu0 %v3677
  %3710 = vmatprep.subr.mxu0 0.0
  %3711 = vmatpush1.msra.mxu0 %v3678
  %3712 = vmatprep.subr.mxu0 0.0
  %3713 = vmatpush1.msra.mxu0 %v3679
  %3714 = vmatprep.subr.mxu0 0.0
  %3715 = vmatpush1.msra.mxu0 %v3680
  %3716 = vmatprep.subr.mxu0 0.0
  %3717 = vmatpush1.msra.mxu0 %v3681
  %3718 = vmatprep.subr.mxu0 0.0
  %3719 = vmatpush1.msra.mxu0 %v3682
  %3720 = vmatprep.subr.mxu0 0.0
  %3721 = vmatpush1.msra.mxu0 %v3683
  %3722 = vmatprep.subr.mxu0 0.0
  %3723 = vmatpush1.msra.mxu0 %v3684
  %3724 = vmatprep.subr.mxu0 0.0
  %3725 = vmatpush1.msra.mxu0 0.0
  %3726 = vmatprep.subr.mxu0 0.0
  %3727 = vmatpush1.msra.mxu0 0.0
  %3728 = vmatprep.subr.mxu0 0.0
  %3729 = vmatpush1.msra.mxu0 0.0
  %3730 = vmatprep.subr.mxu0 0.0
  %3731 = vmatpush1.msra.mxu0 0.0
  %3732 = vmatprep.subr.mxu0 0.0
  %3733 = vmatpush1.msra.mxu0 0.0
  %3734 = vmatprep.subr.mxu0 0.0
  %3735 = vmatpush1.msra.mxu0 0.0
  %3736 = vmatprep.subr.mxu0 0.0
  %3737 = vmatpush1.msra.mxu0 0.0
  %3738 = vmatprep.subr.mxu0 0.0
  %3739 = vmatpush1.msra.mxu0 0.0
  %3740 = vmatprep.subr.mxu0 0.0
  %3741 = vmatpush1.msra.mxu0 0.0
  %3742 = vmatprep.subr.mxu0 0.0
  %3743 = vmatpush1.msra.mxu0 0.0
  %3744 = vmatprep.subr.mxu0 0.0
  %3745 = vmatpush1.msra.mxu0 0.0
  %3746 = vmatprep.subr.mxu0 0.0
  %3747 = vmatpush1.msra.mxu0 0.0
  %3748 = vmatprep.subr.mxu0 0.0
  %3749 = vmatpush1.msra.mxu0 0.0
  %3750 = vmatprep.subr.mxu0 0.0
  %3751 = vmatpush1.msra.mxu0 0.0
  %3752 = vmatprep.subr.mxu0 0.0
  %3753 = vmatpush1.msra.mxu0 0.0
  %3754 = vmatprep.subr.mxu0 0.0
  %3755 = vmatpush1.msra.mxu0 0.0
  %3756 = vmatprep.mubr.f32.mxu0 0.0
  %3757 = vmatmul.mubr.f32.gmra.mrb[0].mxu0 %v3667
  %v3758 = vpop.f32.mrb[0].mxu0
  %v3759 = vadd.f32 %v3690, %v3758
  %v3760 = vpop.f32.mrb[0].mxu0
  %3761 = vmatprep.mubr.f32.mxu0 0.0
  %3762 = vmatmul.mubr.f32.gmra.mrb[0].mxu0 %v3668
  %v3763 = vpop.f32.mrb[0].mxu0
  %v3764 = vadd.f32 %v3690, %v3763
  %v3765 = vpop.f32.mrb[0].mxu0
  %3766 = vdwg.mxu0
  %v3767 = vadd.f32 %v3513, %v3759
  %v3768 = vadd.f32 %v3514, %v3764
  %3769 = vst.msk [vmem:[%s16] sm:$0xff] %vm60, %v3767
  %3770 = vst.msk [vmem:[%s16 + $0x8] sm:$0xff] %vm60, %v3768
  // Predicated region
  $region66: #{gpt2_forward.3} parent=0 // pred_check
    _
  $region67: #{gpt2_forward.3} parent=0 // pred_check_branch
    %3772 = sbr.rel (0) target = $region69
  $region68: #{gpt2_forward.3} parent=0 // pred_region
    _
  $region69: #{gpt2_forward.3} parent=0 // pred_fallthru
    _
  // Predicated region
  $region70: #{gpt2_forward.3} parent=0 // pred_check
    _
  $region71: #{gpt2_forward.3} parent=0 // pred_check_branch
    %3774 = sbr.rel (0) target = $region73
  $region72: #{gpt2_forward.3} parent=0 // pred_region
    _
  $region73: #{gpt2_forward.3} parent=0 // pred_fallthru
    _
  // Predicated region
  $region74: #{gpt2_forward.3} parent=0 // pred_check
    _
  $region75: #{gpt2_forward.3} parent=0 // pred_check_branch
    %3776 = sbr.rel (0) target = $region77
  $region76: #{gpt2_forward.3} parent=0 // pred_region
    _
  $region77: #{gpt2_forward.3} parent=0 // pred_fallthru
    _
  // Predicated region
  $region78: #{gpt2_forward.3} parent=0 // pred_check
    _
  $region79: #{gpt2_forward.3} parent=0 // pred_check_branch
    %3778 = sbr.rel (0) target = $region81
  $region80: #{gpt2_forward.3} parent=0 // pred_region
    _
  $region81: #{gpt2_forward.3} parent=0 // pred_fallthru
    _
  // Predicated region
  $region82: #{gpt2_forward.3} parent=0 // pred_check
    _
  $region83: #{gpt2_forward.3} parent=0 // pred_check_branch
    %3780 = sbr.rel (0) target = $region85
  $region84: #{gpt2_forward.3} parent=0 // pred_region
    _
  $region85: #{gpt2_forward.3} parent=0 // pred_fallthru
    _
  // Predicated region
  $region86: #{gpt2_forward.3} parent=0 // pred_check
    _
  $region87: #{gpt2_forward.3} parent=0 // pred_check_branch
    %3782 = sbr.rel (0) target = $region89
  $region88: #{gpt2_forward.3} parent=0 // pred_region
    _
  $region89: #{gpt2_forward.3} parent=0 // pred_fallthru
    _

</llo_original>
